<compile_context>
chip_gen: v7x
topology: tpu7x:2x2x1
jax: 0.10.0
libtpu: 0.0.40
codegen_flags: <defaults>
</compile_context>

<pallas_src>
import jax
import jax.numpy as jnp
from jax.experimental import pallas as pl
from jax.experimental.pallas import tpu as pltpu

H = W = 8                          # chess board spatial size
C_IN = 14
C_MID = 16
POOL = H // 2                      # 4
FC1_IN = C_MID * POOL * POOL       # 256
FC1_OUT = 64

PAD_W = 17                         # padded-row scratch width (cols 7..16 used)
DATA_COL = 8                       # sublane-aligned column where the 8 real cols live


def _vmem_spec():
    # whole array resident in VMEM (grid=() -> single kernel invocation)
    return pl.BlockSpec(memory_space=pltpu.MemorySpace.VMEM)


def _conv3x3_relu(xs_ref, w, b_row, batch, cin):
    """3x3 'same' conv + bias + ReLU on the zero-padded VMEM scratch xs_ref.

    xs_ref: (B, H+2, PAD_W, cin) scratch, zeroed, input stored at rows 1..8 and
            columns DATA_COL..DATA_COL+7 (pad columns are 7 and 16).
    w     : (3, 3, cin, C_MID) weight value.   b_row: (1, C_MID) bias value.
    Returns the (B, H, W, C_MID) activation as a value.
    """
    xp = xs_ref[...]
    acc = jnp.zeros((batch * H * W, C_MID), jnp.float32)
    for ky in range(3):
        for kx in range(3):
            col0 = DATA_COL - 1 + kx          # 7, 8, 9
            patch = xp[:, ky:ky + H, col0:col0 + W, :].reshape(batch * H * W, cin)
            acc = acc + jnp.dot(patch, w[ky, kx],
                                preferred_element_type=jnp.float32)
    acc = jnp.maximum(acc + b_row, 0.0)
    return acc.reshape(batch, H, W, C_MID)


# ---------------------------------------------------------------------------
# Single fused kernel: conv1 -> relu -> conv2 -> relu -> pool -> fc1 -> relu
# -> fc2 -> sigmoid.  All intermediates live in VMEM / vregs.
# ---------------------------------------------------------------------------
def chessnet_kernel(x_ref, wc1_ref, bc1_ref, wc2_ref, bc2_ref,
                    wf1_ref, bf1_ref, wf2_ref, bf2_ref,
                    o_ref, xs1_ref, xs2_ref, flat_ref):
    batch = x_ref.shape[0]

    # ---- conv1 + ReLU (zero padding built in VMEM scratch, aligned store) ----
    xs1_ref[...] = jnp.zeros(xs1_ref.shape, xs1_ref.dtype)
    xs1_ref[:, 1:1 + H, DATA_COL:DATA_COL + W, :] = x_ref[...]
    h1 = _conv3x3_relu(xs1_ref, wc1_ref[...], bc1_ref[...], batch, C_IN)

    # ---- conv2 + ReLU ----
    xs2_ref[...] = jnp.zeros(xs2_ref.shape, xs2_ref.dtype)
    xs2_ref[:, 1:1 + H, DATA_COL:DATA_COL + W, :] = h1
    h2 = _conv3x3_relu(xs2_ref, wc2_ref[...], bc2_ref[...], batch, C_MID)

    # ---- maxpool(2,2) -> lane-dense flatten (B,256) -> fc1 -> ReLU ----
    # Pool: 8 row maxes (static leading-dim indices) + 16 sublane extracts.
    # Pooled values are packed channel-contiguously into a lane-dense scratch,
    # then fc1 is a single (B,256) x (256,64) MXU dot.
    for j in range(POOL):
        rmax = jnp.maximum(h2[:, 2 * j, :, :], h2[:, 2 * j + 1, :, :])   # (B, W, C_MID)
        for i in range(POOL):
            p = jnp.maximum(rmax[:, 2 * i, :], rmax[:, 2 * i + 1, :])    # (B, C_MID)
            base = (j * POOL + i) * C_MID                                # NHWC flatten order
            flat_ref[:, base:base + C_MID] = p
    z1 = jnp.dot(flat_ref[...], wf1_ref[...], preferred_element_type=jnp.float32)
    z1 = jnp.maximum(z1 + bf1_ref[...], 0.0)

    # ---- fc2 + sigmoid ----   (dropout = inference-mode identity)
    z2 = jnp.dot(z1, wf2_ref[...], preferred_element_type=jnp.float32) + bf2_ref[...]
    o_ref[...] = jax.nn.sigmoid(z2)


# ---------------------------------------------------------------------------
# Full forward (NCHW in, (B, 1) out), matching ChessNet.forward semantics.
# ---------------------------------------------------------------------------
@jax.jit
def chessnet_forward(x_nchw, params):
    x = jnp.transpose(x_nchw, (0, 2, 3, 1)).astype(jnp.float32)  # NCHW -> NHWC
    batch = x.shape[0]
    return pl.pallas_call(
        chessnet_kernel,
        out_shape=jax.ShapeDtypeStruct((batch, 1), jnp.float32),
        in_specs=[_vmem_spec()] * 9,
        out_specs=_vmem_spec(),
        scratch_shapes=[
            pltpu.VMEM((batch, H + 2, PAD_W, C_IN), jnp.float32),
            pltpu.VMEM((batch, H + 2, PAD_W, C_MID), jnp.float32),
            pltpu.VMEM((batch, FC1_IN), jnp.float32),
        ],
    )(x, params["wc1"], params["bc1"].reshape(1, C_MID),
      params["wc2"], params["bc2"].reshape(1, C_MID),
      params["wf1"], params["bf1"].reshape(1, FC1_OUT),
      params["wf2"], params["bf2"].reshape(1, 1))


# ---------------------------------------------------------------------------
# Deterministic synthetic parameters (PyTorch-style uniform(-1/sqrt(fan_in), .))
# Conv weights stored as (kh, kw, Cin, Cout); fc weights as (in, out), with
# fc1 defined against the NHWC flatten order (h*W*C + w*C + c).
# ---------------------------------------------------------------------------
def init_params(key):
    ks = jax.random.split(key, 8)

    def u(k, shape, fan_in):
        bound = 1.0 / jnp.sqrt(jnp.asarray(fan_in, jnp.float32))
        return jax.random.uniform(k, shape, jnp.float32, -bound, bound)

    return {
        "wc1": u(ks[0], (3, 3, C_IN, C_MID), 3 * 3 * C_IN),
        "bc1": u(ks[1], (C_MID,), 3 * 3 * C_IN),
        "wc2": u(ks[2], (3, 3, C_MID, C_MID), 3 * 3 * C_MID),
        "bc2": u(ks[3], (C_MID,), 3 * 3 * C_MID),
        "wf1": u(ks[4], (FC1_IN, FC1_OUT), FC1_IN),
        "bf1": u(ks[5], (FC1_OUT,), FC1_IN),
        "wf2": u(ks[6], (FC1_OUT, 1), FC1_OUT),
        "bf2": u(ks[7], (1,), FC1_OUT),
    }


# Pure-JAX reference (no Pallas) for a correctness cross-check.
def reference_forward(x_nchw, p):
    x = jnp.transpose(x_nchw, (0, 2, 3, 1)).astype(jnp.float32)

    def conv(xn, w, b):
        xp = jnp.pad(xn, ((0, 0), (1, 1), (1, 1), (0, 0)))
        out = jnp.zeros(xn.shape[:3] + (w.shape[-1],), jnp.float32)
        for ky in range(3):
            for kx in range(3):
                out = out + jnp.einsum("bhwc,cd->bhwd",
                                       xp[:, ky:ky + H, kx:kx + W, :], w[ky, kx])
        return jnp.maximum(out + b, 0.0)

    h = conv(conv(x, p["wc1"], p["bc1"]), p["wc2"], p["bc2"])
    pooled = jnp.max(h.reshape(-1, H // 2, 2, W // 2, 2, C_MID), axis=(2, 4))
    flat = pooled.reshape(h.shape[0], FC1_IN)
    z1 = jnp.maximum(flat @ p["wf1"] + p["bf1"], 0.0)
    return jax.nn.sigmoid(z1 @ p["wf2"] + p["bf2"])


if __name__ == "__main__":
    key = jax.random.PRNGKey(0)
    pkey, xkey = jax.random.split(key)
    params = init_params(pkey)

    # input implied by the module: 14-plane 8x8 chess board encoding, batch=2
    x = jax.random.normal(xkey, (2, C_IN, H, W), jnp.float32)

    out = jax.block_until_ready(chessnet_forward(x, params))
    ref = jax.block_until_ready(reference_forward(x, params))

    assert out.shape == (2, 1), out.shape
    assert jnp.allclose(out, ref, atol=1e-4, rtol=1e-4), (out, ref)
    print("KERNEL_OK")
</pallas_src>

<mosaic_0001>
module attributes {stable_mosaic.version = 11 : i64} {
  func.func @chessnet_kernel(%arg0: memref<2x8x8x14xf32, #tpu.memory_space<vmem>>, %arg1: memref<3x3x14x16xf32, #tpu.memory_space<vmem>>, %arg2: memref<1x16xf32, #tpu.memory_space<vmem>>, %arg3: memref<3x3x16x16xf32, #tpu.memory_space<vmem>>, %arg4: memref<1x16xf32, #tpu.memory_space<vmem>>, %arg5: memref<256x64xf32, #tpu.memory_space<vmem>>, %arg6: memref<1x64xf32, #tpu.memory_space<vmem>>, %arg7: memref<64x1xf32, #tpu.memory_space<vmem>>, %arg8: memref<1x1xf32, #tpu.memory_space<vmem>>, %arg9: memref<2x1xf32, #tpu.memory_space<vmem>>, %arg10: memref<2x10x17x14xf32, #tpu.memory_space<vmem>>, %arg11: memref<2x10x17x16xf32, #tpu.memory_space<vmem>>, %arg12: memref<2x256xf32, #tpu.memory_space<vmem>>) attributes {dimension_semantics = [], scalar_prefetch = 0 : i64, scratch_operands = 3 : i64, tpu.core_type = #tpu.core_type<tc>} {
    %cst = arith.constant 0.000000e+00 : f32
    %0 = vector.broadcast %cst : f32 to vector<2x10x17x14xf32>
    %c0 = arith.constant 0 : index
    %c0_0 = arith.constant 0 : index
    %c0_1 = arith.constant 0 : index
    %c0_2 = arith.constant 0 : index
    %1 = vector.load %arg10[%c0, %c0_0, %c0_1, %c0_2] : memref<2x10x17x14xf32, #tpu.memory_space<vmem>>, vector<2x10x17x14xf32>
    tpu.vector_store %arg10[%c0, %c0_0, %c0_1, %c0_2], %0 {strides = array<i32>} : memref<2x10x17x14xf32, #tpu.memory_space<vmem>>, vector<2x10x17x14xf32>,
    %c0_3 = arith.constant 0 : index
    %c0_4 = arith.constant 0 : index
    %c0_5 = arith.constant 0 : index
    %c0_6 = arith.constant 0 : index
    %2 = vector.load %arg0[%c0_3, %c0_4, %c0_5, %c0_6] : memref<2x8x8x14xf32, #tpu.memory_space<vmem>>, vector<2x8x8x14xf32>
    %c0_7 = arith.constant 0 : index
    %c1 = arith.constant 1 : index
    %c8 = arith.constant 8 : index
    %c0_8 = arith.constant 0 : index
    %3 = vector.load %arg10[%c0_7, %c1, %c8, %c0_8] : memref<2x10x17x14xf32, #tpu.memory_space<vmem>>, vector<2x8x8x14xf32>
    tpu.vector_store %arg10[%c0_7, %c1, %c8, %c0_8], %2 {strides = array<i32>} : memref<2x10x17x14xf32, #tpu.memory_space<vmem>>, vector<2x8x8x14xf32>,
    %c0_9 = arith.constant 0 : index
    %c0_10 = arith.constant 0 : index
    %c0_11 = arith.constant 0 : index
    %c0_12 = arith.constant 0 : index
    %4 = vector.load %arg1[%c0_9, %c0_10, %c0_11, %c0_12] : memref<3x3x14x16xf32, #tpu.memory_space<vmem>>, vector<3x3x14x16xf32>
    %c0_13 = arith.constant 0 : index
    %c0_14 = arith.constant 0 : index
    %5 = vector.load %arg2[%c0_13, %c0_14] : memref<1x16xf32, #tpu.memory_space<vmem>>, vector<1x16xf32>
    %c0_15 = arith.constant 0 : index
    %c0_16 = arith.constant 0 : index
    %c0_17 = arith.constant 0 : index
    %c0_18 = arith.constant 0 : index
    %6 = vector.load %arg10[%c0_15, %c0_16, %c0_17, %c0_18] : memref<2x10x17x14xf32, #tpu.memory_space<vmem>>, vector<2x10x17x14xf32>
    %cst_19 = arith.constant 0.000000e+00 : f32
    %7 = vector.broadcast %cst_19 : f32 to vector<128x16xf32>
    %8 = vector.extract_strided_slice %6 {offsets = [0, 0, 7, 0], sizes = [2, 8, 8, 14], strides = [1, 1, 1, 1]} : vector<2x10x17x14xf32> to vector<2x8x8x14xf32>
    %9 = vector.shape_cast %8 : vector<2x8x8x14xf32> to vector<128x14xf32>
    %10 = vector.extract_strided_slice %4 {offsets = [0, 0, 0, 0], sizes = [1, 1, 14, 16], strides = [1, 1, 1, 1]} : vector<3x3x14x16xf32> to vector<1x1x14x16xf32>
    %11 = vector.shape_cast %10 : vector<1x1x14x16xf32> to vector<14x16xf32>
    %cst_20 = arith.constant dense<0.000000e+00> : vector<128x16xf32>
    %12 = tpu.matmul %9, %11, %cst_20 {dimension_numbers = #tpu.dot_dimension_numbers<[1], [0], [0], [1], [0, 0, 1, 1], [], []>} : vector<128x14xf32>, vector<14x16xf32>, vector<128x16xf32> -> vector<128x16xf32>
    %13 = arith.addf %7, %12 : vector<128x16xf32>
    %14 = vector.extract_strided_slice %6 {offsets = [0, 0, 8, 0], sizes = [2, 8, 8, 14], strides = [1, 1, 1, 1]} : vector<2x10x17x14xf32> to vector<2x8x8x14xf32>
    %15 = vector.shape_cast %14 : vector<2x8x8x14xf32> to vector<128x14xf32>
    %16 = vector.extract_strided_slice %4 {offsets = [0, 1, 0, 0], sizes = [1, 1, 14, 16], strides = [1, 1, 1, 1]} : vector<3x3x14x16xf32> to vector<1x1x14x16xf32>
    %17 = vector.shape_cast %16 : vector<1x1x14x16xf32> to vector<14x16xf32>
    %cst_21 = arith.constant dense<0.000000e+00> : vector<128x16xf32>
    %18 = tpu.matmul %15, %17, %cst_21 {dimension_numbers = #tpu.dot_dimension_numbers<[1], [0], [0], [1], [0, 0, 1, 1], [], []>} : vector<128x14xf32>, vector<14x16xf32>, vector<128x16xf32> -> vector<128x16xf32>
    %19 = arith.addf %13, %18 : vector<128x16xf32>
    %20 = vector.extract_strided_slice %6 {offsets = [0, 0, 9, 0], sizes = [2, 8, 8, 14], strides = [1, 1, 1, 1]} : vector<2x10x17x14xf32> to vector<2x8x8x14xf32>
    %21 = vector.shape_cast %20 : vector<2x8x8x14xf32> to vector<128x14xf32>
    %22 = vector.extract_strided_slice %4 {offsets = [0, 2, 0, 0], sizes = [1, 1, 14, 16], strides = [1, 1, 1, 1]} : vector<3x3x14x16xf32> to vector<1x1x14x16xf32>
    %23 = vector.shape_cast %22 : vector<1x1x14x16xf32> to vector<14x16xf32>
    %cst_22 = arith.constant dense<0.000000e+00> : vector<128x16xf32>
    %24 = tpu.matmul %21, %23, %cst_22 {dimension_numbers = #tpu.dot_dimension_numbers<[1], [0], [0], [1], [0, 0, 1, 1], [], []>} : vector<128x14xf32>, vector<14x16xf32>, vector<128x16xf32> -> vector<128x16xf32>
    %25 = arith.addf %19, %24 : vector<128x16xf32>
    %26 = vector.extract_strided_slice %6 {offsets = [0, 1, 7, 0], sizes = [2, 8, 8, 14], strides = [1, 1, 1, 1]} : vector<2x10x17x14xf32> to vector<2x8x8x14xf32>
    %27 = vector.shape_cast %26 : vector<2x8x8x14xf32> to vector<128x14xf32>
    %28 = vector.extract_strided_slice %4 {offsets = [1, 0, 0, 0], sizes = [1, 1, 14, 16], strides = [1, 1, 1, 1]} : vector<3x3x14x16xf32> to vector<1x1x14x16xf32>
    %29 = vector.shape_cast %28 : vector<1x1x14x16xf32> to vector<14x16xf32>
    %cst_23 = arith.constant dense<0.000000e+00> : vector<128x16xf32>
    %30 = tpu.matmul %27, %29, %cst_23 {dimension_numbers = #tpu.dot_dimension_numbers<[1], [0], [0], [1], [0, 0, 1, 1], [], []>} : vector<128x14xf32>, vector<14x16xf32>, vector<128x16xf32> -> vector<128x16xf32>
    %31 = arith.addf %25, %30 : vector<128x16xf32>
    %32 = vector.extract_strided_slice %6 {offsets = [0, 1, 8, 0], sizes = [2, 8, 8, 14], strides = [1, 1, 1, 1]} : vector<2x10x17x14xf32> to vector<2x8x8x14xf32>
    %33 = vector.shape_cast %32 : vector<2x8x8x14xf32> to vector<128x14xf32>
    %34 = vector.extract_strided_slice %4 {offsets = [1, 1, 0, 0], sizes = [1, 1, 14, 16], strides = [1, 1, 1, 1]} : vector<3x3x14x16xf32> to vector<1x1x14x16xf32>
    %35 = vector.shape_cast %34 : vector<1x1x14x16xf32> to vector<14x16xf32>
    %cst_24 = arith.constant dense<0.000000e+00> : vector<128x16xf32>
    %36 = tpu.matmul %33, %35, %cst_24 {dimension_numbers = #tpu.dot_dimension_numbers<[1], [0], [0], [1], [0, 0, 1, 1], [], []>} : vector<128x14xf32>, vector<14x16xf32>, vector<128x16xf32> -> vector<128x16xf32>
    %37 = arith.addf %31, %36 : vector<128x16xf32>
    %38 = vector.extract_strided_slice %6 {offsets = [0, 1, 9, 0], sizes = [2, 8, 8, 14], strides = [1, 1, 1, 1]} : vector<2x10x17x14xf32> to vector<2x8x8x14xf32>
    %39 = vector.shape_cast %38 : vector<2x8x8x14xf32> to vector<128x14xf32>
    %40 = vector.extract_strided_slice %4 {offsets = [1, 2, 0, 0], sizes = [1, 1, 14, 16], strides = [1, 1, 1, 1]} : vector<3x3x14x16xf32> to vector<1x1x14x16xf32>
    %41 = vector.shape_cast %40 : vector<1x1x14x16xf32> to vector<14x16xf32>
    %cst_25 = arith.constant dense<0.000000e+00> : vector<128x16xf32>
    %42 = tpu.matmul %39, %41, %cst_25 {dimension_numbers = #tpu.dot_dimension_numbers<[1], [0], [0], [1], [0, 0, 1, 1], [], []>} : vector<128x14xf32>, vector<14x16xf32>, vector<128x16xf32> -> vector<128x16xf32>
    %43 = arith.addf %37, %42 : vector<128x16xf32>
    %44 = vector.extract_strided_slice %6 {offsets = [0, 2, 7, 0], sizes = [2, 8, 8, 14], strides = [1, 1, 1, 1]} : vector<2x10x17x14xf32> to vector<2x8x8x14xf32>
    %45 = vector.shape_cast %44 : vector<2x8x8x14xf32> to vector<128x14xf32>
    %46 = vector.extract_strided_slice %4 {offsets = [2, 0, 0, 0], sizes = [1, 1, 14, 16], strides = [1, 1, 1, 1]} : vector<3x3x14x16xf32> to vector<1x1x14x16xf32>
    %47 = vector.shape_cast %46 : vector<1x1x14x16xf32> to vector<14x16xf32>
    %cst_26 = arith.constant dense<0.000000e+00> : vector<128x16xf32>
    %48 = tpu.matmul %45, %47, %cst_26 {dimension_numbers = #tpu.dot_dimension_numbers<[1], [0], [0], [1], [0, 0, 1, 1], [], []>} : vector<128x14xf32>, vector<14x16xf32>, vector<128x16xf32> -> vector<128x16xf32>
    %49 = arith.addf %43, %48 : vector<128x16xf32>
    %50 = vector.extract_strided_slice %6 {offsets = [0, 2, 8, 0], sizes = [2, 8, 8, 14], strides = [1, 1, 1, 1]} : vector<2x10x17x14xf32> to vector<2x8x8x14xf32>
    %51 = vector.shape_cast %50 : vector<2x8x8x14xf32> to vector<128x14xf32>
    %52 = vector.extract_strided_slice %4 {offsets = [2, 1, 0, 0], sizes = [1, 1, 14, 16], strides = [1, 1, 1, 1]} : vector<3x3x14x16xf32> to vector<1x1x14x16xf32>
    %53 = vector.shape_cast %52 : vector<1x1x14x16xf32> to vector<14x16xf32>
    %cst_27 = arith.constant dense<0.000000e+00> : vector<128x16xf32>
    %54 = tpu.matmul %51, %53, %cst_27 {dimension_numbers = #tpu.dot_dimension_numbers<[1], [0], [0], [1], [0, 0, 1, 1], [], []>} : vector<128x14xf32>, vector<14x16xf32>, vector<128x16xf32> -> vector<128x16xf32>
    %55 = arith.addf %49, %54 : vector<128x16xf32>
    %56 = vector.extract_strided_slice %6 {offsets = [0, 2, 9, 0], sizes = [2, 8, 8, 14], strides = [1, 1, 1, 1]} : vector<2x10x17x14xf32> to vector<2x8x8x14xf32>
    %57 = vector.shape_cast %56 : vector<2x8x8x14xf32> to vector<128x14xf32>
    %58 = vector.extract_strided_slice %4 {offsets = [2, 2, 0, 0], sizes = [1, 1, 14, 16], strides = [1, 1, 1, 1]} : vector<3x3x14x16xf32> to vector<1x1x14x16xf32>
    %59 = vector.shape_cast %58 : vector<1x1x14x16xf32> to vector<14x16xf32>
    %cst_28 = arith.constant dense<0.000000e+00> : vector<128x16xf32>
    %60 = tpu.matmul %57, %59, %cst_28 {dimension_numbers = #tpu.dot_dimension_numbers<[1], [0], [0], [1], [0, 0, 1, 1], [], []>} : vector<128x14xf32>, vector<14x16xf32>, vector<128x16xf32> -> vector<128x16xf32>
    %61 = arith.addf %55, %60 : vector<128x16xf32>
    %62 = vector.broadcast %5 : vector<1x16xf32> to vector<128x16xf32>
    %63 = arith.addf %61, %62 : vector<128x16xf32>
    %cst_29 = arith.constant 0.000000e+00 : f32
    %64 = vector.broadcast %cst_29 : f32 to vector<128x16xf32>
    %65 = arith.maximumf %63, %64 : vector<128x16xf32>
    %66 = vector.shape_cast %65 : vector<128x16xf32> to vector<2x8x8x16xf32>
    %cst_30 = arith.constant 0.000000e+00 : f32
    %67 = vector.broadcast %cst_30 : f32 to vector<2x10x17x16xf32>
    %c0_31 = arith.constant 0 : index
    %c0_32 = arith.constant 0 : index
    %c0_33 = arith.constant 0 : index
    %c0_34 = arith.constant 0 : index
    %68 = vector.load %arg11[%c0_31, %c0_32, %c0_33, %c0_34] : memref<2x10x17x16xf32, #tpu.memory_space<vmem>>, vector<2x10x17x16xf32>
    tpu.vector_store %arg11[%c0_31, %c0_32, %c0_33, %c0_34], %67 {strides = array<i32>} : memref<2x10x17x16xf32, #tpu.memory_space<vmem>>, vector<2x10x17x16xf32>,
    %c0_35 = arith.constant 0 : index
    %c1_36 = arith.constant 1 : index
    %c8_37 = arith.constant 8 : index
    %c0_38 = arith.constant 0 : index
    %69 = vector.load %arg11[%c0_35, %c1_36, %c8_37, %c0_38] : memref<2x10x17x16xf32, #tpu.memory_space<vmem>>, vector<2x8x8x16xf32>
    tpu.vector_store %arg11[%c0_35, %c1_36, %c8_37, %c0_38], %66 {strides = array<i32>} : memref<2x10x17x16xf32, #tpu.memory_space<vmem>>, vector<2x8x8x16xf32>,
    %c0_39 = arith.constant 0 : index
    %c0_40 = arith.constant 0 : index
    %c0_41 = arith.constant 0 : index
    %c0_42 = arith.constant 0 : index
    %70 = vector.load %arg3[%c0_39, %c0_40, %c0_41, %c0_42] : memref<3x3x16x16xf32, #tpu.memory_space<vmem>>, vector<3x3x16x16xf32>
    %c0_43 = arith.constant 0 : index
    %c0_44 = arith.constant 0 : index
    %71 = vector.load %arg4[%c0_43, %c0_44] : memref<1x16xf32, #tpu.memory_space<vmem>>, vector<1x16xf32>
    %c0_45 = arith.constant 0 : index
    %c0_46 = arith.constant 0 : index
    %c0_47 = arith.constant 0 : index
    %c0_48 = arith.constant 0 : index
    %72 = vector.load %arg11[%c0_45, %c0_46, %c0_47, %c0_48] : memref<2x10x17x16xf32, #tpu.memory_space<vmem>>, vector<2x10x17x16xf32>
    %cst_49 = arith.constant 0.000000e+00 : f32
    %73 = vector.broadcast %cst_49 : f32 to vector<128x16xf32>
    %74 = vector.extract_strided_slice %72 {offsets = [0, 0, 7, 0], sizes = [2, 8, 8, 16], strides = [1, 1, 1, 1]} : vector<2x10x17x16xf32> to vector<2x8x8x16xf32>
    %75 = vector.shape_cast %74 : vector<2x8x8x16xf32> to vector<128x16xf32>
    %76 = vector.extract_strided_slice %70 {offsets = [0, 0, 0, 0], sizes = [1, 1, 16, 16], strides = [1, 1, 1, 1]} : vector<3x3x16x16xf32> to vector<1x1x16x16xf32>
    %77 = vector.shape_cast %76 : vector<1x1x16x16xf32> to vector<16x16xf32>
    %cst_50 = arith.constant dense<0.000000e+00> : vector<128x16xf32>
    %78 = tpu.matmul %75, %77, %cst_50 {dimension_numbers = #tpu.dot_dimension_numbers<[1], [0], [0], [1], [0, 0, 1, 1], [], []>} : vector<128x16xf32>, vector<16x16xf32>, vector<128x16xf32> -> vector<128x16xf32>
    %79 = arith.addf %73, %78 : vector<128x16xf32>
    %80 = vector.extract_strided_slice %72 {offsets = [0, 0, 8, 0], sizes = [2, 8, 8, 16], strides = [1, 1, 1, 1]} : vector<2x10x17x16xf32> to vector<2x8x8x16xf32>
    %81 = vector.shape_cast %80 : vector<2x8x8x16xf32> to vector<128x16xf32>
    %82 = vector.extract_strided_slice %70 {offsets = [0, 1, 0, 0], sizes = [1, 1, 16, 16], strides = [1, 1, 1, 1]} : vector<3x3x16x16xf32> to vector<1x1x16x16xf32>
    %83 = vector.shape_cast %82 : vector<1x1x16x16xf32> to vector<16x16xf32>
    %cst_51 = arith.constant dense<0.000000e+00> : vector<128x16xf32>
    %84 = tpu.matmul %81, %83, %cst_51 {dimension_numbers = #tpu.dot_dimension_numbers<[1], [0], [0], [1], [0, 0, 1, 1], [], []>} : vector<128x16xf32>, vector<16x16xf32>, vector<128x16xf32> -> vector<128x16xf32>
    %85 = arith.addf %79, %84 : vector<128x16xf32>
    %86 = vector.extract_strided_slice %72 {offsets = [0, 0, 9, 0], sizes = [2, 8, 8, 16], strides = [1, 1, 1, 1]} : vector<2x10x17x16xf32> to vector<2x8x8x16xf32>
    %87 = vector.shape_cast %86 : vector<2x8x8x16xf32> to vector<128x16xf32>
    %88 = vector.extract_strided_slice %70 {offsets = [0, 2, 0, 0], sizes = [1, 1, 16, 16], strides = [1, 1, 1, 1]} : vector<3x3x16x16xf32> to vector<1x1x16x16xf32>
    %89 = vector.shape_cast %88 : vector<1x1x16x16xf32> to vector<16x16xf32>
    %cst_52 = arith.constant dense<0.000000e+00> : vector<128x16xf32>
    %90 = tpu.matmul %87, %89, %cst_52 {dimension_numbers = #tpu.dot_dimension_numbers<[1], [0], [0], [1], [0, 0, 1, 1], [], []>} : vector<128x16xf32>, vector<16x16xf32>, vector<128x16xf32> -> vector<128x16xf32>
    %91 = arith.addf %85, %90 : vector<128x16xf32>
    %92 = vector.extract_strided_slice %72 {offsets = [0, 1, 7, 0], sizes = [2, 8, 8, 16], strides = [1, 1, 1, 1]} : vector<2x10x17x16xf32> to vector<2x8x8x16xf32>
    %93 = vector.shape_cast %92 : vector<2x8x8x16xf32> to vector<128x16xf32>
    %94 = vector.extract_strided_slice %70 {offsets = [1, 0, 0, 0], sizes = [1, 1, 16, 16], strides = [1, 1, 1, 1]} : vector<3x3x16x16xf32> to vector<1x1x16x16xf32>
    %95 = vector.shape_cast %94 : vector<1x1x16x16xf32> to vector<16x16xf32>
    %cst_53 = arith.constant dense<0.000000e+00> : vector<128x16xf32>
    %96 = tpu.matmul %93, %95, %cst_53 {dimension_numbers = #tpu.dot_dimension_numbers<[1], [0], [0], [1], [0, 0, 1, 1], [], []>} : vector<128x16xf32>, vector<16x16xf32>, vector<128x16xf32> -> vector<128x16xf32>
    %97 = arith.addf %91, %96 : vector<128x16xf32>
    %98 = vector.extract_strided_slice %72 {offsets = [0, 1, 8, 0], sizes = [2, 8, 8, 16], strides = [1, 1, 1, 1]} : vector<2x10x17x16xf32> to vector<2x8x8x16xf32>
    %99 = vector.shape_cast %98 : vector<2x8x8x16xf32> to vector<128x16xf32>
    %100 = vector.extract_strided_slice %70 {offsets = [1, 1, 0, 0], sizes = [1, 1, 16, 16], strides = [1, 1, 1, 1]} : vector<3x3x16x16xf32> to vector<1x1x16x16xf32>
    %101 = vector.shape_cast %100 : vector<1x1x16x16xf32> to vector<16x16xf32>
    %cst_54 = arith.constant dense<0.000000e+00> : vector<128x16xf32>
    %102 = tpu.matmul %99, %101, %cst_54 {dimension_numbers = #tpu.dot_dimension_numbers<[1], [0], [0], [1], [0, 0, 1, 1], [], []>} : vector<128x16xf32>, vector<16x16xf32>, vector<128x16xf32> -> vector<128x16xf32>
    %103 = arith.addf %97, %102 : vector<128x16xf32>
    %104 = vector.extract_strided_slice %72 {offsets = [0, 1, 9, 0], sizes = [2, 8, 8, 16], strides = [1, 1, 1, 1]} : vector<2x10x17x16xf32> to vector<2x8x8x16xf32>
    %105 = vector.shape_cast %104 : vector<2x8x8x16xf32> to vector<128x16xf32>
    %106 = vector.extract_strided_slice %70 {offsets = [1, 2, 0, 0], sizes = [1, 1, 16, 16], strides = [1, 1, 1, 1]} : vector<3x3x16x16xf32> to vector<1x1x16x16xf32>
    %107 = vector.shape_cast %106 : vector<1x1x16x16xf32> to vector<16x16xf32>
    %cst_55 = arith.constant dense<0.000000e+00> : vector<128x16xf32>
    %108 = tpu.matmul %105, %107, %cst_55 {dimension_numbers = #tpu.dot_dimension_numbers<[1], [0], [0], [1], [0, 0, 1, 1], [], []>} : vector<128x16xf32>, vector<16x16xf32>, vector<128x16xf32> -> vector<128x16xf32>
    %109 = arith.addf %103, %108 : vector<128x16xf32>
    %110 = vector.extract_strided_slice %72 {offsets = [0, 2, 7, 0], sizes = [2, 8, 8, 16], strides = [1, 1, 1, 1]} : vector<2x10x17x16xf32> to vector<2x8x8x16xf32>
    %111 = vector.shape_cast %110 : vector<2x8x8x16xf32> to vector<128x16xf32>
    %112 = vector.extract_strided_slice %70 {offsets = [2, 0, 0, 0], sizes = [1, 1, 16, 16], strides = [1, 1, 1, 1]} : vector<3x3x16x16xf32> to vector<1x1x16x16xf32>
    %113 = vector.shape_cast %112 : vector<1x1x16x16xf32> to vector<16x16xf32>
    %cst_56 = arith.constant dense<0.000000e+00> : vector<128x16xf32>
    %114 = tpu.matmul %111, %113, %cst_56 {dimension_numbers = #tpu.dot_dimension_numbers<[1], [0], [0], [1], [0, 0, 1, 1], [], []>} : vector<128x16xf32>, vector<16x16xf32>, vector<128x16xf32> -> vector<128x16xf32>
    %115 = arith.addf %109, %114 : vector<128x16xf32>
    %116 = vector.extract_strided_slice %72 {offsets = [0, 2, 8, 0], sizes = [2, 8, 8, 16], strides = [1, 1, 1, 1]} : vector<2x10x17x16xf32> to vector<2x8x8x16xf32>
    %117 = vector.shape_cast %116 : vector<2x8x8x16xf32> to vector<128x16xf32>
    %118 = vector.extract_strided_slice %70 {offsets = [2, 1, 0, 0], sizes = [1, 1, 16, 16], strides = [1, 1, 1, 1]} : vector<3x3x16x16xf32> to vector<1x1x16x16xf32>
    %119 = vector.shape_cast %118 : vector<1x1x16x16xf32> to vector<16x16xf32>
    %cst_57 = arith.constant dense<0.000000e+00> : vector<128x16xf32>
    %120 = tpu.matmul %117, %119, %cst_57 {dimension_numbers = #tpu.dot_dimension_numbers<[1], [0], [0], [1], [0, 0, 1, 1], [], []>} : vector<128x16xf32>, vector<16x16xf32>, vector<128x16xf32> -> vector<128x16xf32>
    %121 = arith.addf %115, %120 : vector<128x16xf32>
    %122 = vector.extract_strided_slice %72 {offsets = [0, 2, 9, 0], sizes = [2, 8, 8, 16], strides = [1, 1, 1, 1]} : vector<2x10x17x16xf32> to vector<2x8x8x16xf32>
    %123 = vector.shape_cast %122 : vector<2x8x8x16xf32> to vector<128x16xf32>
    %124 = vector.extract_strided_slice %70 {offsets = [2, 2, 0, 0], sizes = [1, 1, 16, 16], strides = [1, 1, 1, 1]} : vector<3x3x16x16xf32> to vector<1x1x16x16xf32>
    %125 = vector.shape_cast %124 : vector<1x1x16x16xf32> to vector<16x16xf32>
    %cst_58 = arith.constant dense<0.000000e+00> : vector<128x16xf32>
    %126 = tpu.matmul %123, %125, %cst_58 {dimension_numbers = #tpu.dot_dimension_numbers<[1], [0], [0], [1], [0, 0, 1, 1], [], []>} : vector<128x16xf32>, vector<16x16xf32>, vector<128x16xf32> -> vector<128x16xf32>
    %127 = arith.addf %121, %126 : vector<128x16xf32>
    %128 = vector.broadcast %71 : vector<1x16xf32> to vector<128x16xf32>
    %129 = arith.addf %127, %128 : vector<128x16xf32>
    %cst_59 = arith.constant 0.000000e+00 : f32
    %130 = vector.broadcast %cst_59 : f32 to vector<128x16xf32>
    %131 = arith.maximumf %129, %130 : vector<128x16xf32>
    %132 = vector.shape_cast %131 : vector<128x16xf32> to vector<2x8x8x16xf32>
    %133 = vector.extract_strided_slice %132 {offsets = [0, 0, 0, 0], sizes = [2, 1, 8, 16], strides = [1, 1, 1, 1]} : vector<2x8x8x16xf32> to vector<2x1x8x16xf32>
    %134 = vector.shape_cast %133 : vector<2x1x8x16xf32> to vector<2x8x16xf32>
    %135 = vector.extract_strided_slice %132 {offsets = [0, 1, 0, 0], sizes = [2, 1, 8, 16], strides = [1, 1, 1, 1]} : vector<2x8x8x16xf32> to vector<2x1x8x16xf32>
    %136 = vector.shape_cast %135 : vector<2x1x8x16xf32> to vector<2x8x16xf32>
    %137 = arith.maximumf %134, %136 : vector<2x8x16xf32>
    %138 = vector.extract_strided_slice %137 {offsets = [0, 0, 0], sizes = [2, 1, 16], strides = [1, 1, 1]} : vector<2x8x16xf32> to vector<2x1x16xf32>
    %139 = vector.shape_cast %138 : vector<2x1x16xf32> to vector<2x16xf32>
    %140 = vector.extract_strided_slice %137 {offsets = [0, 1, 0], sizes = [2, 1, 16], strides = [1, 1, 1]} : vector<2x8x16xf32> to vector<2x1x16xf32>
    %141 = vector.shape_cast %140 : vector<2x1x16xf32> to vector<2x16xf32>
    %142 = arith.maximumf %139, %141 : vector<2x16xf32>
    %c0_60 = arith.constant 0 : index
    %c0_61 = arith.constant 0 : index
    %143 = vector.load %arg12[%c0_60, %c0_61] : memref<2x256xf32, #tpu.memory_space<vmem>>, vector<2x16xf32>
    tpu.vector_store %arg12[%c0_60, %c0_61], %142 {strides = array<i32>} : memref<2x256xf32, #tpu.memory_space<vmem>>, vector<2x16xf32>,
    %144 = vector.extract_strided_slice %137 {offsets = [0, 2, 0], sizes = [2, 1, 16], strides = [1, 1, 1]} : vector<2x8x16xf32> to vector<2x1x16xf32>
    %145 = vector.shape_cast %144 : vector<2x1x16xf32> to vector<2x16xf32>
    %146 = vector.extract_strided_slice %137 {offsets = [0, 3, 0], sizes = [2, 1, 16], strides = [1, 1, 1]} : vector<2x8x16xf32> to vector<2x1x16xf32>
    %147 = vector.shape_cast %146 : vector<2x1x16xf32> to vector<2x16xf32>
    %148 = arith.maximumf %145, %147 : vector<2x16xf32>
    %c0_62 = arith.constant 0 : index
    %c16 = arith.constant 16 : index
    %149 = vector.load %arg12[%c0_62, %c16] : memref<2x256xf32, #tpu.memory_space<vmem>>, vector<2x16xf32>
    tpu.vector_store %arg12[%c0_62, %c16], %148 {strides = array<i32>} : memref<2x256xf32, #tpu.memory_space<vmem>>, vector<2x16xf32>,
    %150 = vector.extract_strided_slice %137 {offsets = [0, 4, 0], sizes = [2, 1, 16], strides = [1, 1, 1]} : vector<2x8x16xf32> to vector<2x1x16xf32>
    %151 = vector.shape_cast %150 : vector<2x1x16xf32> to vector<2x16xf32>
    %152 = vector.extract_strided_slice %137 {offsets = [0, 5, 0], sizes = [2, 1, 16], strides = [1, 1, 1]} : vector<2x8x16xf32> to vector<2x1x16xf32>
    %153 = vector.shape_cast %152 : vector<2x1x16xf32> to vector<2x16xf32>
    %154 = arith.maximumf %151, %153 : vector<2x16xf32>
    %c0_63 = arith.constant 0 : index
    %c32 = arith.constant 32 : index
    %155 = vector.load %arg12[%c0_63, %c32] : memref<2x256xf32, #tpu.memory_space<vmem>>, vector<2x16xf32>
    tpu.vector_store %arg12[%c0_63, %c32], %154 {strides = array<i32>} : memref<2x256xf32, #tpu.memory_space<vmem>>, vector<2x16xf32>,
    %156 = vector.extract_strided_slice %137 {offsets = [0, 6, 0], sizes = [2, 1, 16], strides = [1, 1, 1]} : vector<2x8x16xf32> to vector<2x1x16xf32>
    %157 = vector.shape_cast %156 : vector<2x1x16xf32> to vector<2x16xf32>
    %158 = vector.extract_strided_slice %137 {offsets = [0, 7, 0], sizes = [2, 1, 16], strides = [1, 1, 1]} : vector<2x8x16xf32> to vector<2x1x16xf32>
    %159 = vector.shape_cast %158 : vector<2x1x16xf32> to vector<2x16xf32>
    %160 = arith.maximumf %157, %159 : vector<2x16xf32>
    %c0_64 = arith.constant 0 : index
    %c48 = arith.constant 48 : index
    %161 = vector.load %arg12[%c0_64, %c48] : memref<2x256xf32, #tpu.memory_space<vmem>>, vector<2x16xf32>
    tpu.vector_store %arg12[%c0_64, %c48], %160 {strides = array<i32>} : memref<2x256xf32, #tpu.memory_space<vmem>>, vector<2x16xf32>,
    %162 = vector.extract_strided_slice %132 {offsets = [0, 2, 0, 0], sizes = [2, 1, 8, 16], strides = [1, 1, 1, 1]} : vector<2x8x8x16xf32> to vector<2x1x8x16xf32>
    %163 = vector.shape_cast %162 : vector<2x1x8x16xf32> to vector<2x8x16xf32>
    %164 = vector.extract_strided_slice %132 {offsets = [0, 3, 0, 0], sizes = [2, 1, 8, 16], strides = [1, 1, 1, 1]} : vector<2x8x8x16xf32> to vector<2x1x8x16xf32>
    %165 = vector.shape_cast %164 : vector<2x1x8x16xf32> to vector<2x8x16xf32>
    %166 = arith.maximumf %163, %165 : vector<2x8x16xf32>
    %167 = vector.extract_strided_slice %166 {offsets = [0, 0, 0], sizes = [2, 1, 16], strides = [1, 1, 1]} : vector<2x8x16xf32> to vector<2x1x16xf32>
    %168 = vector.shape_cast %167 : vector<2x1x16xf32> to vector<2x16xf32>
    %169 = vector.extract_strided_slice %166 {offsets = [0, 1, 0], sizes = [2, 1, 16], strides = [1, 1, 1]} : vector<2x8x16xf32> to vector<2x1x16xf32>
    %170 = vector.shape_cast %169 : vector<2x1x16xf32> to vector<2x16xf32>
    %171 = arith.maximumf %168, %170 : vector<2x16xf32>
    %c0_65 = arith.constant 0 : index
    %c64 = arith.constant 64 : index
    %172 = vector.load %arg12[%c0_65, %c64] : memref<2x256xf32, #tpu.memory_space<vmem>>, vector<2x16xf32>
    tpu.vector_store %arg12[%c0_65, %c64], %171 {strides = array<i32>} : memref<2x256xf32, #tpu.memory_space<vmem>>, vector<2x16xf32>,
    %173 = vector.extract_strided_slice %166 {offsets = [0, 2, 0], sizes = [2, 1, 16], strides = [1, 1, 1]} : vector<2x8x16xf32> to vector<2x1x16xf32>
    %174 = vector.shape_cast %173 : vector<2x1x16xf32> to vector<2x16xf32>
    %175 = vector.extract_strided_slice %166 {offsets = [0, 3, 0], sizes = [2, 1, 16], strides = [1, 1, 1]} : vector<2x8x16xf32> to vector<2x1x16xf32>
    %176 = vector.shape_cast %175 : vector<2x1x16xf32> to vector<2x16xf32>
    %177 = arith.maximumf %174, %176 : vector<2x16xf32>
    %c0_66 = arith.constant 0 : index
    %c80 = arith.constant 80 : index
    %178 = vector.load %arg12[%c0_66, %c80] : memref<2x256xf32, #tpu.memory_space<vmem>>, vector<2x16xf32>
    tpu.vector_store %arg12[%c0_66, %c80], %177 {strides = array<i32>} : memref<2x256xf32, #tpu.memory_space<vmem>>, vector<2x16xf32>,
    %179 = vector.extract_strided_slice %166 {offsets = [0, 4, 0], sizes = [2, 1, 16], strides = [1, 1, 1]} : vector<2x8x16xf32> to vector<2x1x16xf32>
    %180 = vector.shape_cast %179 : vector<2x1x16xf32> to vector<2x16xf32>
    %181 = vector.extract_strided_slice %166 {offsets = [0, 5, 0], sizes = [2, 1, 16], strides = [1, 1, 1]} : vector<2x8x16xf32> to vector<2x1x16xf32>
    %182 = vector.shape_cast %181 : vector<2x1x16xf32> to vector<2x16xf32>
    %183 = arith.maximumf %180, %182 : vector<2x16xf32>
    %c0_67 = arith.constant 0 : index
    %c96 = arith.constant 96 : index
    %184 = vector.load %arg12[%c0_67, %c96] : memref<2x256xf32, #tpu.memory_space<vmem>>, vector<2x16xf32>
    tpu.vector_store %arg12[%c0_67, %c96], %183 {strides = array<i32>} : memref<2x256xf32, #tpu.memory_space<vmem>>, vector<2x16xf32>,
    %185 = vector.extract_strided_slice %166 {offsets = [0, 6, 0], sizes = [2, 1, 16], strides = [1, 1, 1]} : vector<2x8x16xf32> to vector<2x1x16xf32>
    %186 = vector.shape_cast %185 : vector<2x1x16xf32> to vector<2x16xf32>
    %187 = vector.extract_strided_slice %166 {offsets = [0, 7, 0], sizes = [2, 1, 16], strides = [1, 1, 1]} : vector<2x8x16xf32> to vector<2x1x16xf32>
    %188 = vector.shape_cast %187 : vector<2x1x16xf32> to vector<2x16xf32>
    %189 = arith.maximumf %186, %188 : vector<2x16xf32>
    %c0_68 = arith.constant 0 : index
    %c112 = arith.constant 112 : index
    %190 = vector.load %arg12[%c0_68, %c112] : memref<2x256xf32, #tpu.memory_space<vmem>>, vector<2x16xf32>
    tpu.vector_store %arg12[%c0_68, %c112], %189 {strides = array<i32>} : memref<2x256xf32, #tpu.memory_space<vmem>>, vector<2x16xf32>,
    %191 = vector.extract_strided_slice %132 {offsets = [0, 4, 0, 0], sizes = [2, 1, 8, 16], strides = [1, 1, 1, 1]} : vector<2x8x8x16xf32> to vector<2x1x8x16xf32>
    %192 = vector.shape_cast %191 : vector<2x1x8x16xf32> to vector<2x8x16xf32>
    %193 = vector.extract_strided_slice %132 {offsets = [0, 5, 0, 0], sizes = [2, 1, 8, 16], strides = [1, 1, 1, 1]} : vector<2x8x8x16xf32> to vector<2x1x8x16xf32>
    %194 = vector.shape_cast %193 : vector<2x1x8x16xf32> to vector<2x8x16xf32>
    %195 = arith.maximumf %192, %194 : vector<2x8x16xf32>
    %196 = vector.extract_strided_slice %195 {offsets = [0, 0, 0], sizes = [2, 1, 16], strides = [1, 1, 1]} : vector<2x8x16xf32> to vector<2x1x16xf32>
    %197 = vector.shape_cast %196 : vector<2x1x16xf32> to vector<2x16xf32>
    %198 = vector.extract_strided_slice %195 {offsets = [0, 1, 0], sizes = [2, 1, 16], strides = [1, 1, 1]} : vector<2x8x16xf32> to vector<2x1x16xf32>
    %199 = vector.shape_cast %198 : vector<2x1x16xf32> to vector<2x16xf32>
    %200 = arith.maximumf %197, %199 : vector<2x16xf32>
    %c0_69 = arith.constant 0 : index
    %c128 = arith.constant 128 : index
    %201 = vector.load %arg12[%c0_69, %c128] : memref<2x256xf32, #tpu.memory_space<vmem>>, vector<2x16xf32>
    tpu.vector_store %arg12[%c0_69, %c128], %200 {strides = array<i32>} : memref<2x256xf32, #tpu.memory_space<vmem>>, vector<2x16xf32>,
    %202 = vector.extract_strided_slice %195 {offsets = [0, 2, 0], sizes = [2, 1, 16], strides = [1, 1, 1]} : vector<2x8x16xf32> to vector<2x1x16xf32>
    %203 = vector.shape_cast %202 : vector<2x1x16xf32> to vector<2x16xf32>
    %204 = vector.extract_strided_slice %195 {offsets = [0, 3, 0], sizes = [2, 1, 16], strides = [1, 1, 1]} : vector<2x8x16xf32> to vector<2x1x16xf32>
    %205 = vector.shape_cast %204 : vector<2x1x16xf32> to vector<2x16xf32>
    %206 = arith.maximumf %203, %205 : vector<2x16xf32>
    %c0_70 = arith.constant 0 : index
    %c144 = arith.constant 144 : index
    %207 = vector.load %arg12[%c0_70, %c144] : memref<2x256xf32, #tpu.memory_space<vmem>>, vector<2x16xf32>
    tpu.vector_store %arg12[%c0_70, %c144], %206 {strides = array<i32>} : memref<2x256xf32, #tpu.memory_space<vmem>>, vector<2x16xf32>,
    %208 = vector.extract_strided_slice %195 {offsets = [0, 4, 0], sizes = [2, 1, 16], strides = [1, 1, 1]} : vector<2x8x16xf32> to vector<2x1x16xf32>
    %209 = vector.shape_cast %208 : vector<2x1x16xf32> to vector<2x16xf32>
    %210 = vector.extract_strided_slice %195 {offsets = [0, 5, 0], sizes = [2, 1, 16], strides = [1, 1, 1]} : vector<2x8x16xf32> to vector<2x1x16xf32>
    %211 = vector.shape_cast %210 : vector<2x1x16xf32> to vector<2x16xf32>
    %212 = arith.maximumf %209, %211 : vector<2x16xf32>
    %c0_71 = arith.constant 0 : index
    %c160 = arith.constant 160 : index
    %213 = vector.load %arg12[%c0_71, %c160] : memref<2x256xf32, #tpu.memory_space<vmem>>, vector<2x16xf32>
    tpu.vector_store %arg12[%c0_71, %c160], %212 {strides = array<i32>} : memref<2x256xf32, #tpu.memory_space<vmem>>, vector<2x16xf32>,
    %214 = vector.extract_strided_slice %195 {offsets = [0, 6, 0], sizes = [2, 1, 16], strides = [1, 1, 1]} : vector<2x8x16xf32> to vector<2x1x16xf32>
    %215 = vector.shape_cast %214 : vector<2x1x16xf32> to vector<2x16xf32>
    %216 = vector.extract_strided_slice %195 {offsets = [0, 7, 0], sizes = [2, 1, 16], strides = [1, 1, 1]} : vector<2x8x16xf32> to vector<2x1x16xf32>
    %217 = vector.shape_cast %216 : vector<2x1x16xf32> to vector<2x16xf32>
    %218 = arith.maximumf %215, %217 : vector<2x16xf32>
    %c0_72 = arith.constant 0 : index
    %c176 = arith.constant 176 : index
    %219 = vector.load %arg12[%c0_72, %c176] : memref<2x256xf32, #tpu.memory_space<vmem>>, vector<2x16xf32>
    tpu.vector_store %arg12[%c0_72, %c176], %218 {strides = array<i32>} : memref<2x256xf32, #tpu.memory_space<vmem>>, vector<2x16xf32>,
    %220 = vector.extract_strided_slice %132 {offsets = [0, 6, 0, 0], sizes = [2, 1, 8, 16], strides = [1, 1, 1, 1]} : vector<2x8x8x16xf32> to vector<2x1x8x16xf32>
    %221 = vector.shape_cast %220 : vector<2x1x8x16xf32> to vector<2x8x16xf32>
    %222 = vector.extract_strided_slice %132 {offsets = [0, 7, 0, 0], sizes = [2, 1, 8, 16], strides = [1, 1, 1, 1]} : vector<2x8x8x16xf32> to vector<2x1x8x16xf32>
    %223 = vector.shape_cast %222 : vector<2x1x8x16xf32> to vector<2x8x16xf32>
    %224 = arith.maximumf %221, %223 : vector<2x8x16xf32>
    %225 = vector.extract_strided_slice %224 {offsets = [0, 0, 0], sizes = [2, 1, 16], strides = [1, 1, 1]} : vector<2x8x16xf32> to vector<2x1x16xf32>
    %226 = vector.shape_cast %225 : vector<2x1x16xf32> to vector<2x16xf32>
    %227 = vector.extract_strided_slice %224 {offsets = [0, 1, 0], sizes = [2, 1, 16], strides = [1, 1, 1]} : vector<2x8x16xf32> to vector<2x1x16xf32>
    %228 = vector.shape_cast %227 : vector<2x1x16xf32> to vector<2x16xf32>
    %229 = arith.maximumf %226, %228 : vector<2x16xf32>
    %c0_73 = arith.constant 0 : index
    %c192 = arith.constant 192 : index
    %230 = vector.load %arg12[%c0_73, %c192] : memref<2x256xf32, #tpu.memory_space<vmem>>, vector<2x16xf32>
    tpu.vector_store %arg12[%c0_73, %c192], %229 {strides = array<i32>} : memref<2x256xf32, #tpu.memory_space<vmem>>, vector<2x16xf32>,
    %231 = vector.extract_strided_slice %224 {offsets = [0, 2, 0], sizes = [2, 1, 16], strides = [1, 1, 1]} : vector<2x8x16xf32> to vector<2x1x16xf32>
    %232 = vector.shape_cast %231 : vector<2x1x16xf32> to vector<2x16xf32>
    %233 = vector.extract_strided_slice %224 {offsets = [0, 3, 0], sizes = [2, 1, 16], strides = [1, 1, 1]} : vector<2x8x16xf32> to vector<2x1x16xf32>
    %234 = vector.shape_cast %233 : vector<2x1x16xf32> to vector<2x16xf32>
    %235 = arith.maximumf %232, %234 : vector<2x16xf32>
    %c0_74 = arith.constant 0 : index
    %c208 = arith.constant 208 : index
    %236 = vector.load %arg12[%c0_74, %c208] : memref<2x256xf32, #tpu.memory_space<vmem>>, vector<2x16xf32>
    tpu.vector_store %arg12[%c0_74, %c208], %235 {strides = array<i32>} : memref<2x256xf32, #tpu.memory_space<vmem>>, vector<2x16xf32>,
    %237 = vector.extract_strided_slice %224 {offsets = [0, 4, 0], sizes = [2, 1, 16], strides = [1, 1, 1]} : vector<2x8x16xf32> to vector<2x1x16xf32>
    %238 = vector.shape_cast %237 : vector<2x1x16xf32> to vector<2x16xf32>
    %239 = vector.extract_strided_slice %224 {offsets = [0, 5, 0], sizes = [2, 1, 16], strides = [1, 1, 1]} : vector<2x8x16xf32> to vector<2x1x16xf32>
    %240 = vector.shape_cast %239 : vector<2x1x16xf32> to vector<2x16xf32>
    %241 = arith.maximumf %238, %240 : vector<2x16xf32>
    %c0_75 = arith.constant 0 : index
    %c224 = arith.constant 224 : index
    %242 = vector.load %arg12[%c0_75, %c224] : memref<2x256xf32, #tpu.memory_space<vmem>>, vector<2x16xf32>
    tpu.vector_store %arg12[%c0_75, %c224], %241 {strides = array<i32>} : memref<2x256xf32, #tpu.memory_space<vmem>>, vector<2x16xf32>,
    %243 = vector.extract_strided_slice %224 {offsets = [0, 6, 0], sizes = [2, 1, 16], strides = [1, 1, 1]} : vector<2x8x16xf32> to vector<2x1x16xf32>
    %244 = vector.shape_cast %243 : vector<2x1x16xf32> to vector<2x16xf32>
    %245 = vector.extract_strided_slice %224 {offsets = [0, 7, 0], sizes = [2, 1, 16], strides = [1, 1, 1]} : vector<2x8x16xf32> to vector<2x1x16xf32>
    %246 = vector.shape_cast %245 : vector<2x1x16xf32> to vector<2x16xf32>
    %247 = arith.maximumf %244, %246 : vector<2x16xf32>
    %c0_76 = arith.constant 0 : index
    %c240 = arith.constant 240 : index
    %248 = vector.load %arg12[%c0_76, %c240] : memref<2x256xf32, #tpu.memory_space<vmem>>, vector<2x16xf32>
    tpu.vector_store %arg12[%c0_76, %c240], %247 {strides = array<i32>} : memref<2x256xf32, #tpu.memory_space<vmem>>, vector<2x16xf32>,
    %c0_77 = arith.constant 0 : index
    %c0_78 = arith.constant 0 : index
    %249 = vector.load %arg12[%c0_77, %c0_78] : memref<2x256xf32, #tpu.memory_space<vmem>>, vector<2x256xf32>
    %c0_79 = arith.constant 0 : index
    %c0_80 = arith.constant 0 : index
    %250 = vector.load %arg5[%c0_79, %c0_80] : memref<256x64xf32, #tpu.memory_space<vmem>>, vector<256x64xf32>
    %cst_81 = arith.constant dense<0.000000e+00> : vector<2x64xf32>
    %251 = tpu.matmul %249, %250, %cst_81 {dimension_numbers = #tpu.dot_dimension_numbers<[1], [0], [0], [1], [0, 0, 1, 1], [], []>} : vector<2x256xf32>, vector<256x64xf32>, vector<2x64xf32> -> vector<2x64xf32>
    %c0_82 = arith.constant 0 : index
    %c0_83 = arith.constant 0 : index
    %252 = vector.load %arg6[%c0_82, %c0_83] : memref<1x64xf32, #tpu.memory_space<vmem>>, vector<1x64xf32>
    %253 = vector.broadcast %252 : vector<1x64xf32> to vector<2x64xf32>
    %254 = arith.addf %251, %253 : vector<2x64xf32>
    %cst_84 = arith.constant 0.000000e+00 : f32
    %255 = vector.broadcast %cst_84 : f32 to vector<2x64xf32>
    %256 = arith.maximumf %254, %255 : vector<2x64xf32>
    %c0_85 = arith.constant 0 : index
    %c0_86 = arith.constant 0 : index
    %257 = vector.load %arg7[%c0_85, %c0_86] : memref<64x1xf32, #tpu.memory_space<vmem>>, vector<64x1xf32>
    %cst_87 = arith.constant dense<0.000000e+00> : vector<2x1xf32>
    %258 = tpu.matmul %256, %257, %cst_87 {dimension_numbers = #tpu.dot_dimension_numbers<[1], [0], [0], [1], [0, 0, 1, 1], [], []>} : vector<2x64xf32>, vector<64x1xf32>, vector<2x1xf32> -> vector<2x1xf32>
    %c0_88 = arith.constant 0 : index
    %c0_89 = arith.constant 0 : index
    %259 = vector.load %arg8[%c0_88, %c0_89] : memref<1x1xf32, #tpu.memory_space<vmem>>, vector<1x1xf32>
    %260 = vector.broadcast %259 : vector<1x1xf32> to vector<2x1xf32>
    %261 = arith.addf %258, %260 : vector<2x1xf32>
    %262 = arith.negf %261 : vector<2x1xf32>
    %263 = math.exp %262 : vector<2x1xf32>
    %cst_90 = arith.constant 1.000000e+00 : f32
    %264 = vector.broadcast %cst_90 : f32 to vector<2x1xf32>
    %265 = arith.addf %264, %263 : vector<2x1xf32>
    %266 = arith.divf %264, %265 : vector<2x1xf32>
    %c0_91 = arith.constant 0 : index
    %c0_92 = arith.constant 0 : index
    %267 = vector.load %arg9[%c0_91, %c0_92] : memref<2x1xf32, #tpu.memory_space<vmem>>, vector<2x1xf32>
    tpu.vector_store %arg9[%c0_91, %c0_92], %266 {strides = array<i32>} : memref<2x1xf32, #tpu.memory_space<vmem>>, vector<2x1xf32>,
    return
  }
}

</mosaic_0001>

<llo_original>
// kernel: chessnet_forward.1
$region0: #{chessnet_forward.1}
  #allocation0 [shape = 'u32[]', space=smem, size = 0x4, offset = 0x4, fixed_abs, tag = 'smem constant byte address 0x4 - core index']
  #allocation1 [shape = 'u32[144,128]{1,0:T(1,128)}', space=vmem, size = 0x12000, scoped, tag = 'internal scratch']
  #allocation2 [shape = 'f32[2,10,17,14]{3,2,1,0:T(8,128)}', space=vmem, size = 0x3c000, scoped, tag = 'scratch operand']
  #allocation3 [shape = 'f32[2,10,17,16]{3,2,1,0:T(8,128)}', space=vmem, size = 0x3c000, scoped, tag = 'scratch operand']
  #allocation4 [shape = 'f32[2,256]{1,0:T(2,128)}', space=vmem, size = 0x800, scoped, tag = 'scratch operand']
  #allocation5 [shape = 'f32[1,1]{1,0:T(1,128)S(1)}', space=vmem, size = 0x200, scoped, tag = 'scoped memory for chessnet_forward.1']
  %s0 = inlined_call_operand.vmem [shape: f32[2,8,8,14], index: 0, kind: input, shape index: {}]
  %s1 = inlined_call_operand.vmem [shape: f32[3,3,14,16], index: 1, kind: input, shape index: {}]
  %s2 = inlined_call_operand.vmem [shape: f32[1,16], index: 2, kind: input, shape index: {}]
  %s3 = inlined_call_operand.vmem [shape: f32[3,3,16,16], index: 3, kind: input, shape index: {}]
  %s4 = inlined_call_operand.vmem [shape: f32[1,16], index: 4, kind: input, shape index: {}]
  %s5 = inlined_call_operand.vmem [shape: f32[256,64], index: 5, kind: input, shape index: {}]
  %s6 = inlined_call_operand.vmem [shape: f32[1,64], index: 6, kind: input, shape index: {}]
  %s7 = inlined_call_operand.vmem [shape: f32[64,1], index: 7, kind: input, shape index: {}]
  %s8 = inlined_call_operand.<no memory space> [shape: f32[1,1], index: 8, kind: input, shape index: {}]
  %s9 = inlined_call_operand.vmem [shape: f32[2,1], index: 9, kind: output, shape index: {}]
  %s10 = sld [smem:[#allocation0]]
  $region46: #{chessnet_forward.1} parent=0
    _
  %s12 = ssub.s32 1, %s10
  %s13 = scalar_select 0, %s12, %s10
  %v14 = vstv %s8
  %15 = vst [vmem:[#allocation5] sm:$0x1] %v14
  // Predicated region
  $region2: #{chessnet_forward.1} parent=0 // pred_check
    _
  $region3: #{chessnet_forward.1} parent=0 // pred_check_branch
    %17 = sbr.rel (0) target = $region5
  $region4: #{chessnet_forward.1} parent=0 // pred_region
    _
  $region5: #{chessnet_forward.1} parent=0 // pred_fallthru
    _
  // Predicated region
  $region6: #{chessnet_forward.1} parent=0 // pred_check
    _
  $region7: #{chessnet_forward.1} parent=0 // pred_check_branch
    %19 = sbr.rel (0) target = $region9
  $region8: #{chessnet_forward.1} parent=0 // pred_region
    _
  $region9: #{chessnet_forward.1} parent=0 // pred_fallthru
    _
  // Predicated region
  $region10: #{chessnet_forward.1} parent=0 // pred_check
    _
  $region11: #{chessnet_forward.1} parent=0 // pred_check_branch
    %21 = sbr.rel (0) target = $region13
  $region12: #{chessnet_forward.1} parent=0 // pred_region
    _
  $region13: #{chessnet_forward.1} parent=0 // pred_fallthru
    _
  // Predicated region
  $region14: #{chessnet_forward.1} parent=0 // pred_check
    _
  $region15: #{chessnet_forward.1} parent=0 // pred_check_branch
    %23 = sbr.rel (0) target = $region17
  $region16: #{chessnet_forward.1} parent=0 // pred_region
    _
  $region17: #{chessnet_forward.1} parent=0 // pred_fallthru
    _
  // Predicated region
  $region18: #{chessnet_forward.1} parent=0 // pred_check
    _
  $region19: #{chessnet_forward.1} parent=0 // pred_check_branch
    %25 = sbr.rel (0) target = $region21
  $region20: #{chessnet_forward.1} parent=0 // pred_region
    _
  $region21: #{chessnet_forward.1} parent=0 // pred_fallthru
    _
  // Predicated region
  $region22: #{chessnet_forward.1} parent=0 // pred_check
    _
  $region23: #{chessnet_forward.1} parent=0 // pred_check_branch
    %27 = sbr.rel (0) target = $region25
  $region24: #{chessnet_forward.1} parent=0 // pred_region
    _
  $region25: #{chessnet_forward.1} parent=0 // pred_fallthru
    _
  // Predicated region
  $region26: #{chessnet_forward.1} parent=0 // pred_check
    _
  $region27: #{chessnet_forward.1} parent=0 // pred_check_branch
    %29 = sbr.rel (0) target = $region29
  $region28: #{chessnet_forward.1} parent=0 // pred_region
    _
  $region29: #{chessnet_forward.1} parent=0 // pred_fallthru
    _
  // Predicated region
  $region30: #{chessnet_forward.1} parent=0 // pred_check
    _
  $region31: #{chessnet_forward.1} parent=0 // pred_check_branch
    %31 = sbr.rel (0) target = $region33
  $region32: #{chessnet_forward.1} parent=0 // pred_region
    _
  $region33: #{chessnet_forward.1} parent=0 // pred_fallthru
    _
  // Predicated region
  $region34: #{chessnet_forward.1} parent=0 // pred_check
    _
  $region35: #{chessnet_forward.1} parent=0 // pred_check_branch
    %33 = sbr.rel (0) target = $region37
  $region36: #{chessnet_forward.1} parent=0 // pred_region
    _
  $region37: #{chessnet_forward.1} parent=0 // pred_fallthru
    _
  %vm34 = vcmask 113664
  %35 = vst.msk [vmem:[#allocation2] sm:$0xff] %vm34, 0.0
  %36 = vst.msk [vmem:[#allocation2 + $0x8] sm:$0xff] %vm34, 0.0
  %vm37 = vcmask 106496
  %38 = vst.msk [vmem:[#allocation2 + $0x10] sm:$0x1] %vm37, 0.0
  %39 = vst.msk [vmem:[#allocation2 + $0x18] sm:$0xff] %vm34, 0.0
  %40 = vst.msk [vmem:[#allocation2 + $0x20] sm:$0xff] %vm34, 0.0
  %41 = vst.msk [vmem:[#allocation2 + $0x28] sm:$0x1] %vm37, 0.0
  %42 = vst.msk [vmem:[#allocation2 + $0x30] sm:$0xff] %vm34, 0.0
  %43 = vst.msk [vmem:[#allocation2 + $0x38] sm:$0xff] %vm34, 0.0
  %44 = vst.msk [vmem:[#allocation2 + $0x40] sm:$0x1] %vm37, 0.0
  %45 = vst.msk [vmem:[#allocation2 + $0x48] sm:$0xff] %vm34, 0.0
  %46 = vst.msk [vmem:[#allocation2 + $0x50] sm:$0xff] %vm34, 0.0
  %47 = vst.msk [vmem:[#allocation2 + $0x58] sm:$0x1] %vm37, 0.0
  %48 = vst.msk [vmem:[#allocation2 + $0x60] sm:$0xff] %vm34, 0.0
  %49 = vst.msk [vmem:[#allocation2 + $0x68] sm:$0xff] %vm34, 0.0
  %50 = vst.msk [vmem:[#allocation2 + $0x70] sm:$0x1] %vm37, 0.0
  %51 = vst.msk [vmem:[#allocation2 + $0x78] sm:$0xff] %vm34, 0.0
  %52 = vst.msk [vmem:[#allocation2 + $0x80] sm:$0xff] %vm34, 0.0
  %53 = vst.msk [vmem:[#allocation2 + $0x88] sm:$0x1] %vm37, 0.0
  %54 = vst.msk [vmem:[#allocation2 + $0x90] sm:$0xff] %vm34, 0.0
  %55 = vst.msk [vmem:[#allocation2 + $0x98] sm:$0xff] %vm34, 0.0
  %56 = vst.msk [vmem:[#allocation2 + $0xa0] sm:$0x1] %vm37, 0.0
  %57 = vst.msk [vmem:[#allocation2 + $0xa8] sm:$0xff] %vm34, 0.0
  %58 = vst.msk [vmem:[#allocation2 + $0xb0] sm:$0xff] %vm34, 0.0
  %59 = vst.msk [vmem:[#allocation2 + $0xb8] sm:$0x1] %vm37, 0.0
  %60 = vst.msk [vmem:[#allocation2 + $0xc0] sm:$0xff] %vm34, 0.0
  %61 = vst.msk [vmem:[#allocation2 + $0xc8] sm:$0xff] %vm34, 0.0
  %62 = vst.msk [vmem:[#allocation2 + $0xd0] sm:$0x1] %vm37, 0.0
  %63 = vst.msk [vmem:[#allocation2 + $0xd8] sm:$0xff] %vm34, 0.0
  %64 = vst.msk [vmem:[#allocation2 + $0xe0] sm:$0xff] %vm34, 0.0
  %65 = vst.msk [vmem:[#allocation2 + $0xe8] sm:$0x1] %vm37, 0.0
  %66 = vst.msk [vmem:[#allocation2 + $0xf0] sm:$0xff] %vm34, 0.0
  %67 = vst.msk [vmem:[#allocation2 + $0xf8] sm:$0xff] %vm34, 0.0
  %68 = vst.msk [vmem:[#allocation2 + $0x100] sm:$0x1] %vm37, 0.0
  %69 = vst.msk [vmem:[#allocation2 + $0x108] sm:$0xff] %vm34, 0.0
  %70 = vst.msk [vmem:[#allocation2 + $0x110] sm:$0xff] %vm34, 0.0
  %71 = vst.msk [vmem:[#allocation2 + $0x118] sm:$0x1] %vm37, 0.0
  %72 = vst.msk [vmem:[#allocation2 + $0x120] sm:$0xff] %vm34, 0.0
  %73 = vst.msk [vmem:[#allocation2 + $0x128] sm:$0xff] %vm34, 0.0
  %74 = vst.msk [vmem:[#allocation2 + $0x130] sm:$0x1] %vm37, 0.0
  %75 = vst.msk [vmem:[#allocation2 + $0x138] sm:$0xff] %vm34, 0.0
  %76 = vst.msk [vmem:[#allocation2 + $0x140] sm:$0xff] %vm34, 0.0
  %77 = vst.msk [vmem:[#allocation2 + $0x148] sm:$0x1] %vm37, 0.0
  %78 = vst.msk [vmem:[#allocation2 + $0x150] sm:$0xff] %vm34, 0.0
  %79 = vst.msk [vmem:[#allocation2 + $0x158] sm:$0xff] %vm34, 0.0
  %80 = vst.msk [vmem:[#allocation2 + $0x160] sm:$0x1] %vm37, 0.0
  %81 = vst.msk [vmem:[#allocation2 + $0x168] sm:$0xff] %vm34, 0.0
  %82 = vst.msk [vmem:[#allocation2 + $0x170] sm:$0xff] %vm34, 0.0
  %83 = vst.msk [vmem:[#allocation2 + $0x178] sm:$0x1] %vm37, 0.0
  %84 = vst.msk [vmem:[#allocation2 + $0x180] sm:$0xff] %vm34, 0.0
  %85 = vst.msk [vmem:[#allocation2 + $0x188] sm:$0xff] %vm34, 0.0
  %86 = vst.msk [vmem:[#allocation2 + $0x190] sm:$0x1] %vm37, 0.0
  %87 = vst.msk [vmem:[#allocation2 + $0x198] sm:$0xff] %vm34, 0.0
  %88 = vst.msk [vmem:[#allocation2 + $0x1a0] sm:$0xff] %vm34, 0.0
  %89 = vst.msk [vmem:[#allocation2 + $0x1a8] sm:$0x1] %vm37, 0.0
  %90 = vst.msk [vmem:[#allocation2 + $0x1b0] sm:$0xff] %vm34, 0.0
  %91 = vst.msk [vmem:[#allocation2 + $0x1b8] sm:$0xff] %vm34, 0.0
  %92 = vst.msk [vmem:[#allocation2 + $0x1c0] sm:$0x1] %vm37, 0.0
  %93 = vst.msk [vmem:[#allocation2 + $0x1c8] sm:$0xff] %vm34, 0.0
  %94 = vst.msk [vmem:[#allocation2 + $0x1d0] sm:$0xff] %vm34, 0.0
  %95 = vst.msk [vmem:[#allocation2 + $0x1d8] sm:$0x1] %vm37, 0.0
  %v96 = vld [vmem:[%s0] sm:$0xff]
  %v97 = vld [vmem:[%s0 + $0x8] sm:$0xff]
  %v98 = vld [vmem:[%s0 + $0x10] sm:$0xff]
  %v99 = vld [vmem:[%s0 + $0x18] sm:$0xff]
  %v100 = vld [vmem:[%s0 + $0x20] sm:$0xff]
  %v101 = vld [vmem:[%s0 + $0x28] sm:$0xff]
  %v102 = vld [vmem:[%s0 + $0x30] sm:$0xff]
  %v103 = vld [vmem:[%s0 + $0x38] sm:$0xff]
  %v104 = vld [vmem:[%s0 + $0x40] sm:$0xff]
  %v105 = vld [vmem:[%s0 + $0x48] sm:$0xff]
  %v106 = vld [vmem:[%s0 + $0x50] sm:$0xff]
  %v107 = vld [vmem:[%s0 + $0x58] sm:$0xff]
  %v108 = vld [vmem:[%s0 + $0x60] sm:$0xff]
  %v109 = vld [vmem:[%s0 + $0x68] sm:$0xff]
  %v110 = vld [vmem:[%s0 + $0x70] sm:$0xff]
  %v111 = vld [vmem:[%s0 + $0x78] sm:$0xff]
  %s112 = scalar_lea.vmem [#allocation2], 24
  %113 = vst.msk [vmem:[%s112 + $0x8] sm:$0xff] %vm34, %v96
  %114 = vst.msk [vmem:[%s112 + $0x20] sm:$0xff] %vm34, %v97
  %115 = vst.msk [vmem:[%s112 + $0x38] sm:$0xff] %vm34, %v98
  %116 = vst.msk [vmem:[%s112 + $0x50] sm:$0xff] %vm34, %v99
  %117 = vst.msk [vmem:[%s112 + $0x68] sm:$0xff] %vm34, %v100
  %118 = vst.msk [vmem:[%s112 + $0x80] sm:$0xff] %vm34, %v101
  %119 = vst.msk [vmem:[%s112 + $0x98] sm:$0xff] %vm34, %v102
  %120 = vst.msk [vmem:[%s112 + $0xb0] sm:$0xff] %vm34, %v103
  %121 = vst.msk [vmem:[%s112 + $0xf8] sm:$0xff] %vm34, %v104
  %122 = vst.msk [vmem:[%s112 + $0x110] sm:$0xff] %vm34, %v105
  %123 = vst.msk [vmem:[%s112 + $0x128] sm:$0xff] %vm34, %v106
  %124 = vst.msk [vmem:[%s112 + $0x140] sm:$0xff] %vm34, %v107
  %125 = vst.msk [vmem:[%s112 + $0x158] sm:$0xff] %vm34, %v108
  %126 = vst.msk [vmem:[%s112 + $0x170] sm:$0xff] %vm34, %v109
  %127 = vst.msk [vmem:[%s112 + $0x188] sm:$0xff] %vm34, %v110
  %128 = vst.msk [vmem:[%s112 + $0x1a0] sm:$0xff] %vm34, %v111
  %v129 = vld [vmem:[%s1] sm:$0xff]
  %v130 = vld [vmem:[%s1 + $0x8] sm:$0x3f]
  %v131 = vld [vmem:[%s1 + $0x10] sm:$0xff]
  %v132 = vld [vmem:[%s1 + $0x18] sm:$0x3f]
  %v133 = vld [vmem:[%s1 + $0x20] sm:$0xff]
  %v134 = vld [vmem:[%s1 + $0x28] sm:$0x3f]
  %v135 = vld [vmem:[%s1 + $0x30] sm:$0xff]
  %v136 = vld [vmem:[%s1 + $0x38] sm:$0x3f]
  %v137 = vld [vmem:[%s1 + $0x40] sm:$0xff]
  %v138 = vld [vmem:[%s1 + $0x48] sm:$0x3f]
  %v139 = vld [vmem:[%s1 + $0x50] sm:$0xff]
  %v140 = vld [vmem:[%s1 + $0x58] sm:$0x3f]
  %v141 = vld [vmem:[%s1 + $0x60] sm:$0xff]
  %v142 = vld [vmem:[%s1 + $0x68] sm:$0x3f]
  %v143 = vld [vmem:[%s1 + $0x70] sm:$0xff]
  %v144 = vld [vmem:[%s1 + $0x78] sm:$0x3f]
  %v145 = vld [vmem:[%s1 + $0x80] sm:$0xff]
  %v146 = vld [vmem:[%s1 + $0x88] sm:$0x3f]
  %v147 = vld [vmem:[%s2] sm:$0x1]
  %v148 = vld [vmem:[#allocation2] sm:$0xff]
  %v149 = vld [vmem:[#allocation2 + $0x8] sm:$0xff]
  %v150 = vld [vmem:[#allocation2 + $0x10] sm:$0x1]
  %v151 = vld [vmem:[#allocation2 + $0x18] sm:$0xff]
  %v152 = vld [vmem:[#allocation2 + $0x20] sm:$0xff]
  %v153 = vld [vmem:[#allocation2 + $0x28] sm:$0x1]
  %v154 = vld [vmem:[#allocation2 + $0x30] sm:$0xff]
  %v155 = vld [vmem:[#allocation2 + $0x38] sm:$0xff]
  %v156 = vld [vmem:[#allocation2 + $0x40] sm:$0x1]
  %v157 = vld [vmem:[#allocation2 + $0x48] sm:$0xff]
  %v158 = vld [vmem:[#allocation2 + $0x50] sm:$0xff]
  %v159 = vld [vmem:[#allocation2 + $0x58] sm:$0x1]
  %v160 = vld [vmem:[#allocation2 + $0x60] sm:$0xff]
  %v161 = vld [vmem:[#allocation2 + $0x68] sm:$0xff]
  %v162 = vld [vmem:[#allocation2 + $0x70] sm:$0x1]
  %v163 = vld [vmem:[#allocation2 + $0x78] sm:$0xff]
  %v164 = vld [vmem:[#allocation2 + $0x80] sm:$0xff]
  %v165 = vld [vmem:[#allocation2 + $0x88] sm:$0x1]
  %v166 = vld [vmem:[#allocation2 + $0x90] sm:$0xff]
  %v167 = vld [vmem:[#allocation2 + $0x98] sm:$0xff]
  %v168 = vld [vmem:[#allocation2 + $0xa0] sm:$0x1]
  %v169 = vld [vmem:[#allocation2 + $0xa8] sm:$0xff]
  %v170 = vld [vmem:[#allocation2 + $0xb0] sm:$0xff]
  %v171 = vld [vmem:[#allocation2 + $0xb8] sm:$0x1]
  %v172 = vld [vmem:[#allocation2 + $0xc0] sm:$0xff]
  %v173 = vld [vmem:[#allocation2 + $0xc8] sm:$0xff]
  %v174 = vld [vmem:[#allocation2 + $0xd0] sm:$0x1]
  %v175 = vld [vmem:[#allocation2 + $0xd8] sm:$0xff]
  %v176 = vld [vmem:[#allocation2 + $0xe0] sm:$0xff]
  %v177 = vld [vmem:[#allocation2 + $0xe8] sm:$0x1]
  %v178 = vld [vmem:[#allocation2 + $0xf0] sm:$0xff]
  %v179 = vld [vmem:[#allocation2 + $0xf8] sm:$0xff]
  %v180 = vld [vmem:[#allocation2 + $0x100] sm:$0x1]
  %v181 = vld [vmem:[#allocation2 + $0x108] sm:$0xff]
  %v182 = vld [vmem:[#allocation2 + $0x110] sm:$0xff]
  %v183 = vld [vmem:[#allocation2 + $0x118] sm:$0x1]
  %v184 = vld [vmem:[#allocation2 + $0x120] sm:$0xff]
  %v185 = vld [vmem:[#allocation2 + $0x128] sm:$0xff]
  %v186 = vld [vmem:[#allocation2 + $0x130] sm:$0x1]
  %v187 = vld [vmem:[#allocation2 + $0x138] sm:$0xff]
  %v188 = vld [vmem:[#allocation2 + $0x140] sm:$0xff]
  %v189 = vld [vmem:[#allocation2 + $0x148] sm:$0x1]
  %v190 = vld [vmem:[#allocation2 + $0x150] sm:$0xff]
  %v191 = vld [vmem:[#allocation2 + $0x158] sm:$0xff]
  %v192 = vld [vmem:[#allocation2 + $0x160] sm:$0x1]
  %v193 = vld [vmem:[#allocation2 + $0x168] sm:$0xff]
  %v194 = vld [vmem:[#allocation2 + $0x170] sm:$0xff]
  %v195 = vld [vmem:[#allocation2 + $0x178] sm:$0x1]
  %v196 = vld [vmem:[#allocation2 + $0x180] sm:$0xff]
  %v197 = vld [vmem:[#allocation2 + $0x188] sm:$0xff]
  %v198 = vld [vmem:[#allocation2 + $0x190] sm:$0x1]
  %v199 = vld [vmem:[#allocation2 + $0x198] sm:$0xff]
  %v200 = vld [vmem:[#allocation2 + $0x1a0] sm:$0xff]
  %v201 = vld [vmem:[#allocation2 + $0x1a8] sm:$0x1]
  %v202 = vld [vmem:[#allocation2 + $0x1b0] sm:$0xff]
  %v203 = vld [vmem:[#allocation2 + $0x1b8] sm:$0xff]
  %v204 = vld [vmem:[#allocation2 + $0x1c0] sm:$0x1]
  %v205 = vld [vmem:[#allocation2 + $0x1c8] sm:$0xff]
  %v206 = vld [vmem:[#allocation2 + $0x1d0] sm:$0xff]
  %v207 = vld [vmem:[#allocation2 + $0x1d8] sm:$0x1]
  %vm240 = vcmask 1040384
  %v241 = vrot.slane %v148, 7
  %v242 = vrot.slane %v149, 7
  %v243 = vsel %vm240, %v241, %v242
  %v244 = vrot.slane %v151, 7
  %v245 = vrot.slane %v152, 7
  %v246 = vsel %vm240, %v244, %v245
  %v247 = vrot.slane %v154, 7
  %v248 = vrot.slane %v155, 7
  %v249 = vsel %vm240, %v247, %v248
  %v250 = vrot.slane %v157, 7
  %v251 = vrot.slane %v158, 7
  %v252 = vsel %vm240, %v250, %v251
  %v253 = vrot.slane %v160, 7
  %v254 = vrot.slane %v161, 7
  %v255 = vsel %vm240, %v253, %v254
  %v256 = vrot.slane %v163, 7
  %v257 = vrot.slane %v164, 7
  %v258 = vsel %vm240, %v256, %v257
  %v259 = vrot.slane %v166, 7
  %v260 = vrot.slane %v167, 7
  %v261 = vsel %vm240, %v259, %v260
  %v262 = vrot.slane %v169, 7
  %v263 = vrot.slane %v170, 7
  %v264 = vsel %vm240, %v262, %v263
  %v265 = vrot.slane %v178, 7
  %v266 = vrot.slane %v179, 7
  %v267 = vsel %vm240, %v265, %v266
  %v268 = vrot.slane %v181, 7
  %v269 = vrot.slane %v182, 7
  %v270 = vsel %vm240, %v268, %v269
  %v271 = vrot.slane %v184, 7
  %v272 = vrot.slane %v185, 7
  %v273 = vsel %vm240, %v271, %v272
  %v274 = vrot.slane %v187, 7
  %v275 = vrot.slane %v188, 7
  %v276 = vsel %vm240, %v274, %v275
  %v277 = vrot.slane %v190, 7
  %v278 = vrot.slane %v191, 7
  %v279 = vsel %vm240, %v277, %v278
  %v280 = vrot.slane %v193, 7
  %v281 = vrot.slane %v194, 7
  %v282 = vsel %vm240, %v280, %v281
  %v283 = vrot.slane %v196, 7
  %v284 = vrot.slane %v197, 7
  %v285 = vsel %vm240, %v283, %v284
  %v286 = vrot.slane %v199, 7
  %v287 = vrot.slane %v200, 7
  %v288 = vsel %vm240, %v286, %v287
  %v289 = vsel %vm34, %v149, 0
  %v291 = vsel %vm34, %v152, 0
  %v293 = vsel %vm34, %v155, 0
  %v295 = vsel %vm34, %v158, 0
  %v297 = vsel %vm34, %v161, 0
  %v299 = vsel %vm34, %v164, 0
  %v301 = vsel %vm34, %v167, 0
  %v303 = vsel %vm34, %v170, 0
  %v305 = vsel %vm34, %v179, 0
  %v307 = vsel %vm34, %v182, 0
  %v309 = vsel %vm34, %v185, 0
  %v311 = vsel %vm34, %v188, 0
  %v313 = vsel %vm34, %v191, 0
  %v315 = vsel %vm34, %v194, 0
  %v317 = vsel %vm34, %v197, 0
  %v319 = vsel %vm34, %v200, 0
  %vm321 = vcmask 1045504
  %v323 = vsel %vm321, %v132, 0
  %325 = vmatprep.subr.mxu0 0.0
  %326 = vmatpush1.msra.mxu0 %v131
  %327 = vmatprep.subr.mxu0 0.0
  %328 = vmatpush1.msra.mxu0 %v323
  %329 = vmatprep.subr.mxu0 0.0
  %330 = vmatpush1.msra.mxu0 0.0
  %331 = vmatprep.subr.mxu0 0.0
  %332 = vmatpush1.msra.mxu0 0.0
  %333 = vmatprep.subr.mxu0 0.0
  %334 = vmatpush1.msra.mxu0 0.0
  %335 = vmatprep.subr.mxu0 0.0
  %336 = vmatpush1.msra.mxu0 0.0
  %337 = vmatprep.subr.mxu0 0.0
  %338 = vmatpush1.msra.mxu0 0.0
  %339 = vmatprep.subr.mxu0 0.0
  %340 = vmatpush1.msra.mxu0 0.0
  %341 = vmatprep.subr.mxu0 0.0
  %342 = vmatpush1.msra.mxu0 0.0
  %343 = vmatprep.subr.mxu0 0.0
  %344 = vmatpush1.msra.mxu0 0.0
  %345 = vmatprep.subr.mxu0 0.0
  %346 = vmatpush1.msra.mxu0 0.0
  %347 = vmatprep.subr.mxu0 0.0
  %348 = vmatpush1.msra.mxu0 0.0
  %349 = vmatprep.subr.mxu0 0.0
  %350 = vmatpush1.msra.mxu0 0.0
  %351 = vmatprep.subr.mxu0 0.0
  %352 = vmatpush1.msra.mxu0 0.0
  %353 = vmatprep.subr.mxu0 0.0
  %354 = vmatpush1.msra.mxu0 0.0
  %355 = vmatprep.subr.mxu0 0.0
  %356 = vmatpush1.msra.mxu0 0.0
  %357 = vmatprep.subr.mxu0 0.0
  %358 = vmatpush1.msra.mxu0 0.0
  %359 = vmatprep.subr.mxu0 0.0
  %360 = vmatpush1.msra.mxu0 0.0
  %361 = vmatprep.subr.mxu0 0.0
  %362 = vmatpush1.msra.mxu0 0.0
  %363 = vmatprep.subr.mxu0 0.0
  %364 = vmatpush1.msra.mxu0 0.0
  %365 = vmatprep.subr.mxu0 0.0
  %366 = vmatpush1.msra.mxu0 0.0
  %367 = vmatprep.subr.mxu0 0.0
  %368 = vmatpush1.msra.mxu0 0.0
  %369 = vmatprep.subr.mxu0 0.0
  %370 = vmatpush1.msra.mxu0 0.0
  %371 = vmatprep.subr.mxu0 0.0
  %372 = vmatpush1.msra.mxu0 0.0
  %373 = vmatprep.subr.mxu0 0.0
  %374 = vmatpush1.msra.mxu0 0.0
  %375 = vmatprep.subr.mxu0 0.0
  %376 = vmatpush1.msra.mxu0 0.0
  %377 = vmatprep.subr.mxu0 0.0
  %378 = vmatpush1.msra.mxu0 0.0
  %379 = vmatprep.subr.mxu0 0.0
  %380 = vmatpush1.msra.mxu0 0.0
  %381 = vmatprep.subr.mxu0 0.0
  %382 = vmatpush1.msra.mxu0 0.0
  %383 = vmatprep.subr.mxu0 0.0
  %384 = vmatpush1.msra.mxu0 0.0
  %385 = vmatprep.subr.mxu0 0.0
  %386 = vmatpush1.msra.mxu0 0.0
  %387 = vmatprep.subr.mxu0 0.0
  %388 = vmatpush1.msra.mxu0 0.0
  %389 = vmatprep.mubr.f32.mxu0 0.0
  %390 = vmatmul.mubr.f32.gmra.mrb[0].mxu0 %v289
  %v391 = vpop.f32.mrb[0].mxu0
  %v392 = vadd.f32 0.0, %v391
  %v393 = vpop.f32.mrb[0].mxu0
  %394 = vmatprep.mubr.f32.mxu0 0.0
  %395 = vmatmul.mubr.f32.gmra.mrb[0].mxu0 %v291
  %v396 = vpop.f32.mrb[0].mxu0
  %v397 = vadd.f32 0.0, %v396
  %v398 = vpop.f32.mrb[0].mxu0
  %399 = vmatprep.mubr.f32.mxu0 0.0
  %400 = vmatmul.mubr.f32.gmra.mrb[0].mxu0 %v293
  %v401 = vpop.f32.mrb[0].mxu0
  %v402 = vadd.f32 0.0, %v401
  %v403 = vpop.f32.mrb[0].mxu0
  %404 = vmatprep.mubr.f32.mxu0 0.0
  %405 = vmatmul.mubr.f32.gmra.mrb[0].mxu0 %v295
  %v406 = vpop.f32.mrb[0].mxu0
  %v407 = vadd.f32 0.0, %v406
  %v408 = vpop.f32.mrb[0].mxu0
  %409 = vmatprep.mubr.f32.mxu0 0.0
  %410 = vmatmul.mubr.f32.gmra.mrb[0].mxu0 %v297
  %v411 = vpop.f32.mrb[0].mxu0
  %v412 = vadd.f32 0.0, %v411
  %v413 = vpop.f32.mrb[0].mxu0
  %414 = vmatprep.mubr.f32.mxu0 0.0
  %415 = vmatmul.mubr.f32.gmra.mrb[0].mxu0 %v299
  %v416 = vpop.f32.mrb[0].mxu0
  %v417 = vadd.f32 0.0, %v416
  %v418 = vpop.f32.mrb[0].mxu0
  %419 = vmatprep.mubr.f32.mxu0 0.0
  %420 = vmatmul.mubr.f32.gmra.mrb[0].mxu0 %v301
  %v421 = vpop.f32.mrb[0].mxu0
  %v422 = vadd.f32 0.0, %v421
  %v423 = vpop.f32.mrb[0].mxu0
  %424 = vmatprep.mubr.f32.mxu0 0.0
  %425 = vmatmul.mubr.f32.gmra.mrb[0].mxu0 %v303
  %v426 = vpop.f32.mrb[0].mxu0
  %v427 = vadd.f32 0.0, %v426
  %v428 = vpop.f32.mrb[0].mxu0
  %429 = vmatprep.mubr.f32.mxu0 0.0
  %430 = vmatmul.mubr.f32.gmra.mrb[0].mxu0 %v305
  %v431 = vpop.f32.mrb[0].mxu0
  %v432 = vadd.f32 0.0, %v431
  %v433 = vpop.f32.mrb[0].mxu0
  %434 = vmatprep.mubr.f32.mxu0 0.0
  %435 = vmatmul.mubr.f32.gmra.mrb[0].mxu0 %v307
  %v436 = vpop.f32.mrb[0].mxu0
  %v437 = vadd.f32 0.0, %v436
  %v438 = vpop.f32.mrb[0].mxu0
  %439 = vmatprep.mubr.f32.mxu0 0.0
  %440 = vmatmul.mubr.f32.gmra.mrb[0].mxu0 %v309
  %v441 = vpop.f32.mrb[0].mxu0
  %v442 = vadd.f32 0.0, %v441
  %v443 = vpop.f32.mrb[0].mxu0
  %444 = vmatprep.mubr.f32.mxu0 0.0
  %445 = vmatmul.mubr.f32.gmra.mrb[0].mxu0 %v311
  %v446 = vpop.f32.mrb[0].mxu0
  %v447 = vadd.f32 0.0, %v446
  %v448 = vpop.f32.mrb[0].mxu0
  %449 = vmatprep.mubr.f32.mxu0 0.0
  %450 = vmatmul.mubr.f32.gmra.mrb[0].mxu0 %v313
  %v451 = vpop.f32.mrb[0].mxu0
  %v452 = vadd.f32 0.0, %v451
  %v453 = vpop.f32.mrb[0].mxu0
  %454 = vmatprep.mubr.f32.mxu0 0.0
  %455 = vmatmul.mubr.f32.gmra.mrb[0].mxu0 %v315
  %v456 = vpop.f32.mrb[0].mxu0
  %v457 = vadd.f32 0.0, %v456
  %v458 = vpop.f32.mrb[0].mxu0
  %459 = vmatprep.mubr.f32.mxu0 0.0
  %460 = vmatmul.mubr.f32.gmra.mrb[0].mxu0 %v317
  %v461 = vpop.f32.mrb[0].mxu0
  %v462 = vadd.f32 0.0, %v461
  %v463 = vpop.f32.mrb[0].mxu0
  %464 = vmatprep.mubr.f32.mxu0 0.0
  %465 = vmatmul.mubr.f32.gmra.mrb[0].mxu0 %v319
  %v466 = vpop.f32.mrb[0].mxu0
  %v467 = vadd.f32 0.0, %v466
  %v468 = vpop.f32.mrb[0].mxu0
  %469 = vdwg.mxu0
  %v470 = vsel %vm34, %v243, 0
  %v472 = vsel %vm34, %v246, 0
  %v474 = vsel %vm34, %v249, 0
  %v476 = vsel %vm34, %v252, 0
  %v478 = vsel %vm34, %v255, 0
  %v480 = vsel %vm34, %v258, 0
  %v482 = vsel %vm34, %v261, 0
  %v484 = vsel %vm34, %v264, 0
  %v486 = vsel %vm34, %v267, 0
  %v488 = vsel %vm34, %v270, 0
  %v490 = vsel %vm34, %v273, 0
  %v492 = vsel %vm34, %v276, 0
  %v494 = vsel %vm34, %v279, 0
  %v496 = vsel %vm34, %v282, 0
  %v498 = vsel %vm34, %v285, 0
  %v500 = vsel %vm34, %v288, 0
  %v503 = vsel %vm321, %v130, 0
  %505 = vmatprep.subr.mxu0 0.0
  %506 = vmatpush1.msra.mxu0 %v129
  %507 = vmatprep.subr.mxu0 0.0
  %508 = vmatpush1.msra.mxu0 %v503
  %509 = vmatprep.subr.mxu0 0.0
  %510 = vmatpush1.msra.mxu0 0.0
  %511 = vmatprep.subr.mxu0 0.0
  %512 = vmatpush1.msra.mxu0 0.0
  %513 = vmatprep.subr.mxu0 0.0
  %514 = vmatpush1.msra.mxu0 0.0
  %515 = vmatprep.subr.mxu0 0.0
  %516 = vmatpush1.msra.mxu0 0.0
  %517 = vmatprep.subr.mxu0 0.0
  %518 = vmatpush1.msra.mxu0 0.0
  %519 = vmatprep.subr.mxu0 0.0
  %520 = vmatpush1.msra.mxu0 0.0
  %521 = vmatprep.subr.mxu0 0.0
  %522 = vmatpush1.msra.mxu0 0.0
  %523 = vmatprep.subr.mxu0 0.0
  %524 = vmatpush1.msra.mxu0 0.0
  %525 = vmatprep.subr.mxu0 0.0
  %526 = vmatpush1.msra.mxu0 0.0
  %527 = vmatprep.subr.mxu0 0.0
  %528 = vmatpush1.msra.mxu0 0.0
  %529 = vmatprep.subr.mxu0 0.0
  %530 = vmatpush1.msra.mxu0 0.0
  %531 = vmatprep.subr.mxu0 0.0
  %532 = vmatpush1.msra.mxu0 0.0
  %533 = vmatprep.subr.mxu0 0.0
  %534 = vmatpush1.msra.mxu0 0.0
  %535 = vmatprep.subr.mxu0 0.0
  %536 = vmatpush1.msra.mxu0 0.0
  %537 = vmatprep.subr.mxu0 0.0
  %538 = vmatpush1.msra.mxu0 0.0
  %539 = vmatprep.subr.mxu0 0.0
  %540 = vmatpush1.msra.mxu0 0.0
  %541 = vmatprep.subr.mxu0 0.0
  %542 = vmatpush1.msra.mxu0 0.0
  %543 = vmatprep.subr.mxu0 0.0
  %544 = vmatpush1.msra.mxu0 0.0
  %545 = vmatprep.subr.mxu0 0.0
  %546 = vmatpush1.msra.mxu0 0.0
  %547 = vmatprep.subr.mxu0 0.0
  %548 = vmatpush1.msra.mxu0 0.0
  %549 = vmatprep.subr.mxu0 0.0
  %550 = vmatpush1.msra.mxu0 0.0
  %551 = vmatprep.subr.mxu0 0.0
  %552 = vmatpush1.msra.mxu0 0.0
  %553 = vmatprep.subr.mxu0 0.0
  %554 = vmatpush1.msra.mxu0 0.0
  %555 = vmatprep.subr.mxu0 0.0
  %556 = vmatpush1.msra.mxu0 0.0
  %557 = vmatprep.subr.mxu0 0.0
  %558 = vmatpush1.msra.mxu0 0.0
  %559 = vmatprep.subr.mxu0 0.0
  %560 = vmatpush1.msra.mxu0 0.0
  %561 = vmatprep.subr.mxu0 0.0
  %562 = vmatpush1.msra.mxu0 0.0
  %563 = vmatprep.subr.mxu0 0.0
  %564 = vmatpush1.msra.mxu0 0.0
  %565 = vmatprep.subr.mxu0 0.0
  %566 = vmatpush1.msra.mxu0 0.0
  %567 = vmatprep.subr.mxu0 0.0
  %568 = vmatpush1.msra.mxu0 0.0
  %569 = vmatprep.mubr.f32.mxu0 0.0
  %570 = vmatmul.mubr.f32.gmra.mrb[0].mxu0 %v470
  %v571 = vpop.f32.mrb[0].mxu0
  %v572 = vadd.f32 %v392, %v571
  %v573 = vpop.f32.mrb[0].mxu0
  %574 = vmatprep.mubr.f32.mxu0 0.0
  %575 = vmatmul.mubr.f32.gmra.mrb[0].mxu0 %v472
  %v576 = vpop.f32.mrb[0].mxu0
  %v577 = vadd.f32 %v397, %v576
  %v578 = vpop.f32.mrb[0].mxu0
  %579 = vmatprep.mubr.f32.mxu0 0.0
  %580 = vmatmul.mubr.f32.gmra.mrb[0].mxu0 %v474
  %v581 = vpop.f32.mrb[0].mxu0
  %v582 = vadd.f32 %v402, %v581
  %v583 = vpop.f32.mrb[0].mxu0
  %584 = vmatprep.mubr.f32.mxu0 0.0
  %585 = vmatmul.mubr.f32.gmra.mrb[0].mxu0 %v476
  %v586 = vpop.f32.mrb[0].mxu0
  %v587 = vadd.f32 %v407, %v586
  %v588 = vpop.f32.mrb[0].mxu0
  %589 = vmatprep.mubr.f32.mxu0 0.0
  %590 = vmatmul.mubr.f32.gmra.mrb[0].mxu0 %v478
  %v591 = vpop.f32.mrb[0].mxu0
  %v592 = vadd.f32 %v412, %v591
  %v593 = vpop.f32.mrb[0].mxu0
  %594 = vmatprep.mubr.f32.mxu0 0.0
  %595 = vmatmul.mubr.f32.gmra.mrb[0].mxu0 %v480
  %v596 = vpop.f32.mrb[0].mxu0
  %v597 = vadd.f32 %v417, %v596
  %v598 = vpop.f32.mrb[0].mxu0
  %599 = vmatprep.mubr.f32.mxu0 0.0
  %600 = vmatmul.mubr.f32.gmra.mrb[0].mxu0 %v482
  %v601 = vpop.f32.mrb[0].mxu0
  %v602 = vadd.f32 %v422, %v601
  %v603 = vpop.f32.mrb[0].mxu0
  %604 = vmatprep.mubr.f32.mxu0 0.0
  %605 = vmatmul.mubr.f32.gmra.mrb[0].mxu0 %v484
  %v606 = vpop.f32.mrb[0].mxu0
  %v607 = vadd.f32 %v427, %v606
  %v608 = vpop.f32.mrb[0].mxu0
  %609 = vmatprep.mubr.f32.mxu0 0.0
  %610 = vmatmul.mubr.f32.gmra.mrb[0].mxu0 %v486
  %v611 = vpop.f32.mrb[0].mxu0
  %v612 = vadd.f32 %v432, %v611
  %v613 = vpop.f32.mrb[0].mxu0
  %614 = vmatprep.mubr.f32.mxu0 0.0
  %615 = vmatmul.mubr.f32.gmra.mrb[0].mxu0 %v488
  %v616 = vpop.f32.mrb[0].mxu0
  %v617 = vadd.f32 %v437, %v616
  %v618 = vpop.f32.mrb[0].mxu0
  %619 = vmatprep.mubr.f32.mxu0 0.0
  %620 = vmatmul.mubr.f32.gmra.mrb[0].mxu0 %v490
  %v621 = vpop.f32.mrb[0].mxu0
  %v622 = vadd.f32 %v442, %v621
  %v623 = vpop.f32.mrb[0].mxu0
  %624 = vmatprep.mubr.f32.mxu0 0.0
  %625 = vmatmul.mubr.f32.gmra.mrb[0].mxu0 %v492
  %v626 = vpop.f32.mrb[0].mxu0
  %v627 = vadd.f32 %v447, %v626
  %v628 = vpop.f32.mrb[0].mxu0
  %629 = vmatprep.mubr.f32.mxu0 0.0
  %630 = vmatmul.mubr.f32.gmra.mrb[0].mxu0 %v494
  %v631 = vpop.f32.mrb[0].mxu0
  %v632 = vadd.f32 %v452, %v631
  %v633 = vpop.f32.mrb[0].mxu0
  %634 = vmatprep.mubr.f32.mxu0 0.0
  %635 = vmatmul.mubr.f32.gmra.mrb[0].mxu0 %v496
  %v636 = vpop.f32.mrb[0].mxu0
  %v637 = vadd.f32 %v457, %v636
  %v638 = vpop.f32.mrb[0].mxu0
  %639 = vmatprep.mubr.f32.mxu0 0.0
  %640 = vmatmul.mubr.f32.gmra.mrb[0].mxu0 %v498
  %v641 = vpop.f32.mrb[0].mxu0
  %v642 = vadd.f32 %v462, %v641
  %v643 = vpop.f32.mrb[0].mxu0
  %644 = vmatprep.mubr.f32.mxu0 0.0
  %645 = vmatmul.mubr.f32.gmra.mrb[0].mxu0 %v500
  %v646 = vpop.f32.mrb[0].mxu0
  %v647 = vadd.f32 %v467, %v646
  %v648 = vpop.f32.mrb[0].mxu0
  %649 = vdwg.mxu0
  %vm666 = vcmask 1046528
  %v667 = vrot.slane %v149, 1
  %v668 = vrot.slane %v150, 1
  %v669 = vsel %vm666, %v667, %v668
  %v670 = vrot.slane %v152, 1
  %v671 = vrot.slane %v153, 1
  %v672 = vsel %vm666, %v670, %v671
  %v673 = vrot.slane %v155, 1
  %v674 = vrot.slane %v156, 1
  %v675 = vsel %vm666, %v673, %v674
  %v676 = vrot.slane %v158, 1
  %v677 = vrot.slane %v159, 1
  %v678 = vsel %vm666, %v676, %v677
  %v679 = vrot.slane %v161, 1
  %v680 = vrot.slane %v162, 1
  %v681 = vsel %vm666, %v679, %v680
  %v682 = vrot.slane %v164, 1
  %v683 = vrot.slane %v165, 1
  %v684 = vsel %vm666, %v682, %v683
  %v685 = vrot.slane %v167, 1
  %v686 = vrot.slane %v168, 1
  %v687 = vsel %vm666, %v685, %v686
  %v688 = vrot.slane %v170, 1
  %v689 = vrot.slane %v171, 1
  %v690 = vsel %vm666, %v688, %v689
  %v691 = vrot.slane %v179, 1
  %v692 = vrot.slane %v180, 1
  %v693 = vsel %vm666, %v691, %v692
  %v694 = vrot.slane %v182, 1
  %v695 = vrot.slane %v183, 1
  %v696 = vsel %vm666, %v694, %v695
  %v697 = vrot.slane %v185, 1
  %v698 = vrot.slane %v186, 1
  %v699 = vsel %vm666, %v697, %v698
  %v700 = vrot.slane %v188, 1
  %v701 = vrot.slane %v189, 1
  %v702 = vsel %vm666, %v700, %v701
  %v703 = vrot.slane %v191, 1
  %v704 = vrot.slane %v192, 1
  %v705 = vsel %vm666, %v703, %v704
  %v706 = vrot.slane %v194, 1
  %v707 = vrot.slane %v195, 1
  %v708 = vsel %vm666, %v706, %v707
  %v709 = vrot.slane %v197, 1
  %v710 = vrot.slane %v198, 1
  %v711 = vsel %vm666, %v709, %v710
  %v712 = vrot.slane %v200, 1
  %v713 = vrot.slane %v201, 1
  %v714 = vsel %vm666, %v712, %v713
  %v715 = vsel %vm34, %v669, 0
  %v717 = vsel %vm34, %v672, 0
  %v719 = vsel %vm34, %v675, 0
  %v721 = vsel %vm34, %v678, 0
  %v723 = vsel %vm34, %v681, 0
  %v725 = vsel %vm34, %v684, 0
  %v727 = vsel %vm34, %v687, 0
  %v729 = vsel %vm34, %v690, 0
  %v731 = vsel %vm34, %v693, 0
  %v733 = vsel %vm34, %v696, 0
  %v735 = vsel %vm34, %v699, 0
  %v737 = vsel %vm34, %v702, 0
  %v739 = vsel %vm34, %v705, 0
  %v741 = vsel %vm34, %v708, 0
  %v743 = vsel %vm34, %v711, 0
  %v745 = vsel %vm34, %v714, 0
  %v748 = vsel %vm321, %v134, 0
  %750 = vmatprep.subr.mxu0 0.0
  %751 = vmatpush1.msra.mxu0 %v133
  %752 = vmatprep.subr.mxu0 0.0
  %753 = vmatpush1.msra.mxu0 %v748
  %754 = vmatprep.subr.mxu0 0.0
  %755 = vmatpush1.msra.mxu0 0.0
  %756 = vmatprep.subr.mxu0 0.0
  %757 = vmatpush1.msra.mxu0 0.0
  %758 = vmatprep.subr.mxu0 0.0
  %759 = vmatpush1.msra.mxu0 0.0
  %760 = vmatprep.subr.mxu0 0.0
  %761 = vmatpush1.msra.mxu0 0.0
  %762 = vmatprep.subr.mxu0 0.0
  %763 = vmatpush1.msra.mxu0 0.0
  %764 = vmatprep.subr.mxu0 0.0
  %765 = vmatpush1.msra.mxu0 0.0
  %766 = vmatprep.subr.mxu0 0.0
  %767 = vmatpush1.msra.mxu0 0.0
  %768 = vmatprep.subr.mxu0 0.0
  %769 = vmatpush1.msra.mxu0 0.0
  %770 = vmatprep.subr.mxu0 0.0
  %771 = vmatpush1.msra.mxu0 0.0
  %772 = vmatprep.subr.mxu0 0.0
  %773 = vmatpush1.msra.mxu0 0.0
  %774 = vmatprep.subr.mxu0 0.0
  %775 = vmatpush1.msra.mxu0 0.0
  %776 = vmatprep.subr.mxu0 0.0
  %777 = vmatpush1.msra.mxu0 0.0
  %778 = vmatprep.subr.mxu0 0.0
  %779 = vmatpush1.msra.mxu0 0.0
  %780 = vmatprep.subr.mxu0 0.0
  %781 = vmatpush1.msra.mxu0 0.0
  %782 = vmatprep.subr.mxu0 0.0
  %783 = vmatpush1.msra.mxu0 0.0
  %784 = vmatprep.subr.mxu0 0.0
  %785 = vmatpush1.msra.mxu0 0.0
  %786 = vmatprep.subr.mxu0 0.0
  %787 = vmatpush1.msra.mxu0 0.0
  %788 = vmatprep.subr.mxu0 0.0
  %789 = vmatpush1.msra.mxu0 0.0
  %790 = vmatprep.subr.mxu0 0.0
  %791 = vmatpush1.msra.mxu0 0.0
  %792 = vmatprep.subr.mxu0 0.0
  %793 = vmatpush1.msra.mxu0 0.0
  %794 = vmatprep.subr.mxu0 0.0
  %795 = vmatpush1.msra.mxu0 0.0
  %796 = vmatprep.subr.mxu0 0.0
  %797 = vmatpush1.msra.mxu0 0.0
  %798 = vmatprep.subr.mxu0 0.0
  %799 = vmatpush1.msra.mxu0 0.0
  %800 = vmatprep.subr.mxu0 0.0
  %801 = vmatpush1.msra.mxu0 0.0
  %802 = vmatprep.subr.mxu0 0.0
  %803 = vmatpush1.msra.mxu0 0.0
  %804 = vmatprep.subr.mxu0 0.0
  %805 = vmatpush1.msra.mxu0 0.0
  %806 = vmatprep.subr.mxu0 0.0
  %807 = vmatpush1.msra.mxu0 0.0
  %808 = vmatprep.subr.mxu0 0.0
  %809 = vmatpush1.msra.mxu0 0.0
  %810 = vmatprep.subr.mxu0 0.0
  %811 = vmatpush1.msra.mxu0 0.0
  %812 = vmatprep.subr.mxu0 0.0
  %813 = vmatpush1.msra.mxu0 0.0
  %814 = vmatprep.mubr.f32.mxu0 0.0
  %815 = vmatmul.mubr.f32.gmra.mrb[0].mxu0 %v715
  %v816 = vpop.f32.mrb[0].mxu0
  %v817 = vadd.f32 0.0, %v816
  %v818 = vpop.f32.mrb[0].mxu0
  %819 = vmatprep.mubr.f32.mxu0 0.0
  %820 = vmatmul.mubr.f32.gmra.mrb[0].mxu0 %v717
  %v821 = vpop.f32.mrb[0].mxu0
  %v822 = vadd.f32 0.0, %v821
  %v823 = vpop.f32.mrb[0].mxu0
  %824 = vmatprep.mubr.f32.mxu0 0.0
  %825 = vmatmul.mubr.f32.gmra.mrb[0].mxu0 %v719
  %v826 = vpop.f32.mrb[0].mxu0
  %v827 = vadd.f32 0.0, %v826
  %v828 = vpop.f32.mrb[0].mxu0
  %829 = vmatprep.mubr.f32.mxu0 0.0
  %830 = vmatmul.mubr.f32.gmra.mrb[0].mxu0 %v721
  %v831 = vpop.f32.mrb[0].mxu0
  %v832 = vadd.f32 0.0, %v831
  %v833 = vpop.f32.mrb[0].mxu0
  %834 = vmatprep.mubr.f32.mxu0 0.0
  %835 = vmatmul.mubr.f32.gmra.mrb[0].mxu0 %v723
  %v836 = vpop.f32.mrb[0].mxu0
  %v837 = vadd.f32 0.0, %v836
  %v838 = vpop.f32.mrb[0].mxu0
  %839 = vmatprep.mubr.f32.mxu0 0.0
  %840 = vmatmul.mubr.f32.gmra.mrb[0].mxu0 %v725
  %v841 = vpop.f32.mrb[0].mxu0
  %v842 = vadd.f32 0.0, %v841
  %v843 = vpop.f32.mrb[0].mxu0
  %844 = vmatprep.mubr.f32.mxu0 0.0
  %845 = vmatmul.mubr.f32.gmra.mrb[0].mxu0 %v727
  %v846 = vpop.f32.mrb[0].mxu0
  %v847 = vadd.f32 0.0, %v846
  %v848 = vpop.f32.mrb[0].mxu0
  %849 = vmatprep.mubr.f32.mxu0 0.0
  %850 = vmatmul.mubr.f32.gmra.mrb[0].mxu0 %v729
  %v851 = vpop.f32.mrb[0].mxu0
  %v852 = vadd.f32 0.0, %v851
  %v853 = vpop.f32.mrb[0].mxu0
  %854 = vmatprep.mubr.f32.mxu0 0.0
  %855 = vmatmul.mubr.f32.gmra.mrb[0].mxu0 %v731
  %v856 = vpop.f32.mrb[0].mxu0
  %v857 = vadd.f32 0.0, %v856
  %v858 = vpop.f32.mrb[0].mxu0
  %859 = vmatprep.mubr.f32.mxu0 0.0
  %860 = vmatmul.mubr.f32.gmra.mrb[0].mxu0 %v733
  %v861 = vpop.f32.mrb[0].mxu0
  %v862 = vadd.f32 0.0, %v861
  %v863 = vpop.f32.mrb[0].mxu0
  %864 = vmatprep.mubr.f32.mxu0 0.0
  %865 = vmatmul.mubr.f32.gmra.mrb[0].mxu0 %v735
  %v866 = vpop.f32.mrb[0].mxu0
  %v867 = vadd.f32 0.0, %v866
  %v868 = vpop.f32.mrb[0].mxu0
  %869 = vmatprep.mubr.f32.mxu0 0.0
  %870 = vmatmul.mubr.f32.gmra.mrb[0].mxu0 %v737
  %v871 = vpop.f32.mrb[0].mxu0
  %v872 = vadd.f32 0.0, %v871
  %v873 = vpop.f32.mrb[0].mxu0
  %874 = vmatprep.mubr.f32.mxu0 0.0
  %875 = vmatmul.mubr.f32.gmra.mrb[0].mxu0 %v739
  %v876 = vpop.f32.mrb[0].mxu0
  %v877 = vadd.f32 0.0, %v876
  %v878 = vpop.f32.mrb[0].mxu0
  %879 = vmatprep.mubr.f32.mxu0 0.0
  %880 = vmatmul.mubr.f32.gmra.mrb[0].mxu0 %v741
  %v881 = vpop.f32.mrb[0].mxu0
  %v882 = vadd.f32 0.0, %v881
  %v883 = vpop.f32.mrb[0].mxu0
  %884 = vmatprep.mubr.f32.mxu0 0.0
  %885 = vmatmul.mubr.f32.gmra.mrb[0].mxu0 %v743
  %v886 = vpop.f32.mrb[0].mxu0
  %v887 = vadd.f32 0.0, %v886
  %v888 = vpop.f32.mrb[0].mxu0
  %889 = vmatprep.mubr.f32.mxu0 0.0
  %890 = vmatmul.mubr.f32.gmra.mrb[0].mxu0 %v745
  %v891 = vpop.f32.mrb[0].mxu0
  %v892 = vadd.f32 0.0, %v891
  %v893 = vpop.f32.mrb[0].mxu0
  %894 = vdwg.mxu0
  %v895 = vadd.f32 %v572, %v817
  %v896 = vadd.f32 %v577, %v822
  %v897 = vadd.f32 %v582, %v827
  %v898 = vadd.f32 %v587, %v832
  %v899 = vadd.f32 %v592, %v837
  %v900 = vadd.f32 %v597, %v842
  %v901 = vadd.f32 %v602, %v847
  %v902 = vadd.f32 %v607, %v852
  %v903 = vadd.f32 %v612, %v857
  %v904 = vadd.f32 %v617, %v862
  %v905 = vadd.f32 %v622, %v867
  %v906 = vadd.f32 %v627, %v872
  %v907 = vadd.f32 %v632, %v877
  %v908 = vadd.f32 %v637, %v882
  %v909 = vadd.f32 %v642, %v887
  %v910 = vadd.f32 %v647, %v892
  %v915 = vrot.slane %v172, 7
  %v916 = vrot.slane %v173, 7
  %v917 = vsel %vm240, %v915, %v916
  %v918 = vrot.slane %v202, 7
  %v919 = vrot.slane %v203, 7
  %v920 = vsel %vm240, %v918, %v919
  %v921 = vsel %vm34, %v917, 0
  %v923 = vsel %vm34, %v920, 0
  %v926 = vsel %vm321, %v136, 0
  %928 = vmatprep.subr.mxu0 0.0
  %929 = vmatpush1.msra.mxu0 %v135
  %930 = vmatprep.subr.mxu0 0.0
  %931 = vmatpush1.msra.mxu0 %v926
  %932 = vmatprep.subr.mxu0 0.0
  %933 = vmatpush1.msra.mxu0 0.0
  %934 = vmatprep.subr.mxu0 0.0
  %935 = vmatpush1.msra.mxu0 0.0
  %936 = vmatprep.subr.mxu0 0.0
  %937 = vmatpush1.msra.mxu0 0.0
  %938 = vmatprep.subr.mxu0 0.0
  %939 = vmatpush1.msra.mxu0 0.0
  %940 = vmatprep.subr.mxu0 0.0
  %941 = vmatpush1.msra.mxu0 0.0
  %942 = vmatprep.subr.mxu0 0.0
  %943 = vmatpush1.msra.mxu0 0.0
  %944 = vmatprep.subr.mxu0 0.0
  %945 = vmatpush1.msra.mxu0 0.0
  %946 = vmatprep.subr.mxu0 0.0
  %947 = vmatpush1.msra.mxu0 0.0
  %948 = vmatprep.subr.mxu0 0.0
  %949 = vmatpush1.msra.mxu0 0.0
  %950 = vmatprep.subr.mxu0 0.0
  %951 = vmatpush1.msra.mxu0 0.0
  %952 = vmatprep.subr.mxu0 0.0
  %953 = vmatpush1.msra.mxu0 0.0
  %954 = vmatprep.subr.mxu0 0.0
  %955 = vmatpush1.msra.mxu0 0.0
  %956 = vmatprep.subr.mxu0 0.0
  %957 = vmatpush1.msra.mxu0 0.0
  %958 = vmatprep.subr.mxu0 0.0
  %959 = vmatpush1.msra.mxu0 0.0
  %960 = vmatprep.subr.mxu0 0.0
  %961 = vmatpush1.msra.mxu0 0.0
  %962 = vmatprep.subr.mxu0 0.0
  %963 = vmatpush1.msra.mxu0 0.0
  %964 = vmatprep.subr.mxu0 0.0
  %965 = vmatpush1.msra.mxu0 0.0
  %966 = vmatprep.subr.mxu0 0.0
  %967 = vmatpush1.msra.mxu0 0.0
  %968 = vmatprep.subr.mxu0 0.0
  %969 = vmatpush1.msra.mxu0 0.0
  %970 = vmatprep.subr.mxu0 0.0
  %971 = vmatpush1.msra.mxu0 0.0
  %972 = vmatprep.subr.mxu0 0.0
  %973 = vmatpush1.msra.mxu0 0.0
  %974 = vmatprep.subr.mxu0 0.0
  %975 = vmatpush1.msra.mxu0 0.0
  %976 = vmatprep.subr.mxu0 0.0
  %977 = vmatpush1.msra.mxu0 0.0
  %978 = vmatprep.subr.mxu0 0.0
  %979 = vmatpush1.msra.mxu0 0.0
  %980 = vmatprep.subr.mxu0 0.0
  %981 = vmatpush1.msra.mxu0 0.0
  %982 = vmatprep.subr.mxu0 0.0
  %983 = vmatpush1.msra.mxu0 0.0
  %984 = vmatprep.subr.mxu0 0.0
  %985 = vmatpush1.msra.mxu0 0.0
  %986 = vmatprep.subr.mxu0 0.0
  %987 = vmatpush1.msra.mxu0 0.0
  %988 = vmatprep.subr.mxu0 0.0
  %989 = vmatpush1.msra.mxu0 0.0
  %990 = vmatprep.subr.mxu0 0.0
  %991 = vmatpush1.msra.mxu0 0.0
  %992 = vmatprep.mubr.f32.mxu0 0.0
  %993 = vmatmul.mubr.f32.gmra.mrb[0].mxu0 %v472
  %v994 = vpop.f32.mrb[0].mxu0
  %v995 = vadd.f32 0.0, %v994
  %v996 = vpop.f32.mrb[0].mxu0
  %997 = vmatprep.mubr.f32.mxu0 0.0
  %998 = vmatmul.mubr.f32.gmra.mrb[0].mxu0 %v474
  %v999 = vpop.f32.mrb[0].mxu0
  %v1000 = vadd.f32 0.0, %v999
  %v1001 = vpop.f32.mrb[0].mxu0
  %1002 = vmatprep.mubr.f32.mxu0 0.0
  %1003 = vmatmul.mubr.f32.gmra.mrb[0].mxu0 %v476
  %v1004 = vpop.f32.mrb[0].mxu0
  %v1005 = vadd.f32 0.0, %v1004
  %v1006 = vpop.f32.mrb[0].mxu0
  %1007 = vmatprep.mubr.f32.mxu0 0.0
  %1008 = vmatmul.mubr.f32.gmra.mrb[0].mxu0 %v478
  %v1009 = vpop.f32.mrb[0].mxu0
  %v1010 = vadd.f32 0.0, %v1009
  %v1011 = vpop.f32.mrb[0].mxu0
  %1012 = vmatprep.mubr.f32.mxu0 0.0
  %1013 = vmatmul.mubr.f32.gmra.mrb[0].mxu0 %v480
  %v1014 = vpop.f32.mrb[0].mxu0
  %v1015 = vadd.f32 0.0, %v1014
  %v1016 = vpop.f32.mrb[0].mxu0
  %1017 = vmatprep.mubr.f32.mxu0 0.0
  %1018 = vmatmul.mubr.f32.gmra.mrb[0].mxu0 %v482
  %v1019 = vpop.f32.mrb[0].mxu0
  %v1020 = vadd.f32 0.0, %v1019
  %v1021 = vpop.f32.mrb[0].mxu0
  %1022 = vmatprep.mubr.f32.mxu0 0.0
  %1023 = vmatmul.mubr.f32.gmra.mrb[0].mxu0 %v484
  %v1024 = vpop.f32.mrb[0].mxu0
  %v1025 = vadd.f32 0.0, %v1024
  %v1026 = vpop.f32.mrb[0].mxu0
  %1027 = vmatprep.mubr.f32.mxu0 0.0
  %1028 = vmatmul.mubr.f32.gmra.mrb[0].mxu0 %v921
  %v1029 = vpop.f32.mrb[0].mxu0
  %v1030 = vadd.f32 0.0, %v1029
  %v1031 = vpop.f32.mrb[0].mxu0
  %1032 = vmatprep.mubr.f32.mxu0 0.0
  %1033 = vmatmul.mubr.f32.gmra.mrb[0].mxu0 %v488
  %v1034 = vpop.f32.mrb[0].mxu0
  %v1035 = vadd.f32 0.0, %v1034
  %v1036 = vpop.f32.mrb[0].mxu0
  %1037 = vmatprep.mubr.f32.mxu0 0.0
  %1038 = vmatmul.mubr.f32.gmra.mrb[0].mxu0 %v490
  %v1039 = vpop.f32.mrb[0].mxu0
  %v1040 = vadd.f32 0.0, %v1039
  %v1041 = vpop.f32.mrb[0].mxu0
  %1042 = vmatprep.mubr.f32.mxu0 0.0
  %1043 = vmatmul.mubr.f32.gmra.mrb[0].mxu0 %v492
  %v1044 = vpop.f32.mrb[0].mxu0
  %v1045 = vadd.f32 0.0, %v1044
  %v1046 = vpop.f32.mrb[0].mxu0
  %1047 = vmatprep.mubr.f32.mxu0 0.0
  %1048 = vmatmul.mubr.f32.gmra.mrb[0].mxu0 %v494
  %v1049 = vpop.f32.mrb[0].mxu0
  %v1050 = vadd.f32 0.0, %v1049
  %v1051 = vpop.f32.mrb[0].mxu0
  %1052 = vmatprep.mubr.f32.mxu0 0.0
  %1053 = vmatmul.mubr.f32.gmra.mrb[0].mxu0 %v496
  %v1054 = vpop.f32.mrb[0].mxu0
  %v1055 = vadd.f32 0.0, %v1054
  %v1056 = vpop.f32.mrb[0].mxu0
  %1057 = vmatprep.mubr.f32.mxu0 0.0
  %1058 = vmatmul.mubr.f32.gmra.mrb[0].mxu0 %v498
  %v1059 = vpop.f32.mrb[0].mxu0
  %v1060 = vadd.f32 0.0, %v1059
  %v1061 = vpop.f32.mrb[0].mxu0
  %1062 = vmatprep.mubr.f32.mxu0 0.0
  %1063 = vmatmul.mubr.f32.gmra.mrb[0].mxu0 %v500
  %v1064 = vpop.f32.mrb[0].mxu0
  %v1065 = vadd.f32 0.0, %v1064
  %v1066 = vpop.f32.mrb[0].mxu0
  %1067 = vmatprep.mubr.f32.mxu0 0.0
  %1068 = vmatmul.mubr.f32.gmra.mrb[0].mxu0 %v923
  %v1069 = vpop.f32.mrb[0].mxu0
  %v1070 = vadd.f32 0.0, %v1069
  %v1071 = vpop.f32.mrb[0].mxu0
  %1072 = vdwg.mxu0
  %v1073 = vadd.f32 %v895, %v995
  %v1074 = vadd.f32 %v896, %v1000
  %v1075 = vadd.f32 %v897, %v1005
  %v1076 = vadd.f32 %v898, %v1010
  %v1077 = vadd.f32 %v899, %v1015
  %v1078 = vadd.f32 %v900, %v1020
  %v1079 = vadd.f32 %v901, %v1025
  %v1080 = vadd.f32 %v902, %v1030
  %v1081 = vadd.f32 %v903, %v1035
  %v1082 = vadd.f32 %v904, %v1040
  %v1083 = vadd.f32 %v905, %v1045
  %v1084 = vadd.f32 %v906, %v1050
  %v1085 = vadd.f32 %v907, %v1055
  %v1086 = vadd.f32 %v908, %v1060
  %v1087 = vadd.f32 %v909, %v1065
  %v1088 = vadd.f32 %v910, %v1070
  %v1089 = vsel %vm34, %v173, 0
  %v1091 = vsel %vm34, %v203, 0
  %v1094 = vsel %vm321, %v138, 0
  %1096 = vmatprep.subr.mxu0 0.0
  %1097 = vmatpush1.msra.mxu0 %v137
  %1098 = vmatprep.subr.mxu0 0.0
  %1099 = vmatpush1.msra.mxu0 %v1094
  %1100 = vmatprep.subr.mxu0 0.0
  %1101 = vmatpush1.msra.mxu0 0.0
  %1102 = vmatprep.subr.mxu0 0.0
  %1103 = vmatpush1.msra.mxu0 0.0
  %1104 = vmatprep.subr.mxu0 0.0
  %1105 = vmatpush1.msra.mxu0 0.0
  %1106 = vmatprep.subr.mxu0 0.0
  %1107 = vmatpush1.msra.mxu0 0.0
  %1108 = vmatprep.subr.mxu0 0.0
  %1109 = vmatpush1.msra.mxu0 0.0
  %1110 = vmatprep.subr.mxu0 0.0
  %1111 = vmatpush1.msra.mxu0 0.0
  %1112 = vmatprep.subr.mxu0 0.0
  %1113 = vmatpush1.msra.mxu0 0.0
  %1114 = vmatprep.subr.mxu0 0.0
  %1115 = vmatpush1.msra.mxu0 0.0
  %1116 = vmatprep.subr.mxu0 0.0
  %1117 = vmatpush1.msra.mxu0 0.0
  %1118 = vmatprep.subr.mxu0 0.0
  %1119 = vmatpush1.msra.mxu0 0.0
  %1120 = vmatprep.subr.mxu0 0.0
  %1121 = vmatpush1.msra.mxu0 0.0
  %1122 = vmatprep.subr.mxu0 0.0
  %1123 = vmatpush1.msra.mxu0 0.0
  %1124 = vmatprep.subr.mxu0 0.0
  %1125 = vmatpush1.msra.mxu0 0.0
  %1126 = vmatprep.subr.mxu0 0.0
  %1127 = vmatpush1.msra.mxu0 0.0
  %1128 = vmatprep.subr.mxu0 0.0
  %1129 = vmatpush1.msra.mxu0 0.0
  %1130 = vmatprep.subr.mxu0 0.0
  %1131 = vmatpush1.msra.mxu0 0.0
  %1132 = vmatprep.subr.mxu0 0.0
  %1133 = vmatpush1.msra.mxu0 0.0
  %1134 = vmatprep.subr.mxu0 0.0
  %1135 = vmatpush1.msra.mxu0 0.0
  %1136 = vmatprep.subr.mxu0 0.0
  %1137 = vmatpush1.msra.mxu0 0.0
  %1138 = vmatprep.subr.mxu0 0.0
  %1139 = vmatpush1.msra.mxu0 0.0
  %1140 = vmatprep.subr.mxu0 0.0
  %1141 = vmatpush1.msra.mxu0 0.0
  %1142 = vmatprep.subr.mxu0 0.0
  %1143 = vmatpush1.msra.mxu0 0.0
  %1144 = vmatprep.subr.mxu0 0.0
  %1145 = vmatpush1.msra.mxu0 0.0
  %1146 = vmatprep.subr.mxu0 0.0
  %1147 = vmatpush1.msra.mxu0 0.0
  %1148 = vmatprep.subr.mxu0 0.0
  %1149 = vmatpush1.msra.mxu0 0.0
  %1150 = vmatprep.subr.mxu0 0.0
  %1151 = vmatpush1.msra.mxu0 0.0
  %1152 = vmatprep.subr.mxu0 0.0
  %1153 = vmatpush1.msra.mxu0 0.0
  %1154 = vmatprep.subr.mxu0 0.0
  %1155 = vmatpush1.msra.mxu0 0.0
  %1156 = vmatprep.subr.mxu0 0.0
  %1157 = vmatpush1.msra.mxu0 0.0
  %1158 = vmatprep.subr.mxu0 0.0
  %1159 = vmatpush1.msra.mxu0 0.0
  %1160 = vmatprep.mubr.f32.mxu0 0.0
  %1161 = vmatmul.mubr.f32.gmra.mrb[0].mxu0 %v291
  %v1162 = vpop.f32.mrb[0].mxu0
  %v1163 = vadd.f32 0.0, %v1162
  %v1164 = vpop.f32.mrb[0].mxu0
  %1165 = vmatprep.mubr.f32.mxu0 0.0
  %1166 = vmatmul.mubr.f32.gmra.mrb[0].mxu0 %v293
  %v1167 = vpop.f32.mrb[0].mxu0
  %v1168 = vadd.f32 0.0, %v1167
  %v1169 = vpop.f32.mrb[0].mxu0
  %1170 = vmatprep.mubr.f32.mxu0 0.0
  %1171 = vmatmul.mubr.f32.gmra.mrb[0].mxu0 %v295
  %v1172 = vpop.f32.mrb[0].mxu0
  %v1173 = vadd.f32 0.0, %v1172
  %v1174 = vpop.f32.mrb[0].mxu0
  %1175 = vmatprep.mubr.f32.mxu0 0.0
  %1176 = vmatmul.mubr.f32.gmra.mrb[0].mxu0 %v297
  %v1177 = vpop.f32.mrb[0].mxu0
  %v1178 = vadd.f32 0.0, %v1177
  %v1179 = vpop.f32.mrb[0].mxu0
  %1180 = vmatprep.mubr.f32.mxu0 0.0
  %1181 = vmatmul.mubr.f32.gmra.mrb[0].mxu0 %v299
  %v1182 = vpop.f32.mrb[0].mxu0
  %v1183 = vadd.f32 0.0, %v1182
  %v1184 = vpop.f32.mrb[0].mxu0
  %1185 = vmatprep.mubr.f32.mxu0 0.0
  %1186 = vmatmul.mubr.f32.gmra.mrb[0].mxu0 %v301
  %v1187 = vpop.f32.mrb[0].mxu0
  %v1188 = vadd.f32 0.0, %v1187
  %v1189 = vpop.f32.mrb[0].mxu0
  %1190 = vmatprep.mubr.f32.mxu0 0.0
  %1191 = vmatmul.mubr.f32.gmra.mrb[0].mxu0 %v303
  %v1192 = vpop.f32.mrb[0].mxu0
  %v1193 = vadd.f32 0.0, %v1192
  %v1194 = vpop.f32.mrb[0].mxu0
  %1195 = vmatprep.mubr.f32.mxu0 0.0
  %1196 = vmatmul.mubr.f32.gmra.mrb[0].mxu0 %v1089
  %v1197 = vpop.f32.mrb[0].mxu0
  %v1198 = vadd.f32 0.0, %v1197
  %v1199 = vpop.f32.mrb[0].mxu0
  %1200 = vmatprep.mubr.f32.mxu0 0.0
  %1201 = vmatmul.mubr.f32.gmra.mrb[0].mxu0 %v307
  %v1202 = vpop.f32.mrb[0].mxu0
  %v1203 = vadd.f32 0.0, %v1202
  %v1204 = vpop.f32.mrb[0].mxu0
  %1205 = vmatprep.mubr.f32.mxu0 0.0
  %1206 = vmatmul.mubr.f32.gmra.mrb[0].mxu0 %v309
  %v1207 = vpop.f32.mrb[0].mxu0
  %v1208 = vadd.f32 0.0, %v1207
  %v1209 = vpop.f32.mrb[0].mxu0
  %1210 = vmatprep.mubr.f32.mxu0 0.0
  %1211 = vmatmul.mubr.f32.gmra.mrb[0].mxu0 %v311
  %v1212 = vpop.f32.mrb[0].mxu0
  %v1213 = vadd.f32 0.0, %v1212
  %v1214 = vpop.f32.mrb[0].mxu0
  %1215 = vmatprep.mubr.f32.mxu0 0.0
  %1216 = vmatmul.mubr.f32.gmra.mrb[0].mxu0 %v313
  %v1217 = vpop.f32.mrb[0].mxu0
  %v1218 = vadd.f32 0.0, %v1217
  %v1219 = vpop.f32.mrb[0].mxu0
  %1220 = vmatprep.mubr.f32.mxu0 0.0
  %1221 = vmatmul.mubr.f32.gmra.mrb[0].mxu0 %v315
  %v1222 = vpop.f32.mrb[0].mxu0
  %v1223 = vadd.f32 0.0, %v1222
  %v1224 = vpop.f32.mrb[0].mxu0
  %1225 = vmatprep.mubr.f32.mxu0 0.0
  %1226 = vmatmul.mubr.f32.gmra.mrb[0].mxu0 %v317
  %v1227 = vpop.f32.mrb[0].mxu0
  %v1228 = vadd.f32 0.0, %v1227
  %v1229 = vpop.f32.mrb[0].mxu0
  %1230 = vmatprep.mubr.f32.mxu0 0.0
  %1231 = vmatmul.mubr.f32.gmra.mrb[0].mxu0 %v319
  %v1232 = vpop.f32.mrb[0].mxu0
  %v1233 = vadd.f32 0.0, %v1232
  %v1234 = vpop.f32.mrb[0].mxu0
  %1235 = vmatprep.mubr.f32.mxu0 0.0
  %1236 = vmatmul.mubr.f32.gmra.mrb[0].mxu0 %v1091
  %v1237 = vpop.f32.mrb[0].mxu0
  %v1238 = vadd.f32 0.0, %v1237
  %v1239 = vpop.f32.mrb[0].mxu0
  %1240 = vdwg.mxu0
  %v1241 = vadd.f32 %v1073, %v1163
  %v1242 = vadd.f32 %v1074, %v1168
  %v1243 = vadd.f32 %v1075, %v1173
  %v1244 = vadd.f32 %v1076, %v1178
  %v1245 = vadd.f32 %v1077, %v1183
  %v1246 = vadd.f32 %v1078, %v1188
  %v1247 = vadd.f32 %v1079, %v1193
  %v1248 = vadd.f32 %v1080, %v1198
  %v1249 = vadd.f32 %v1081, %v1203
  %v1250 = vadd.f32 %v1082, %v1208
  %v1251 = vadd.f32 %v1083, %v1213
  %v1252 = vadd.f32 %v1084, %v1218
  %v1253 = vadd.f32 %v1085, %v1223
  %v1254 = vadd.f32 %v1086, %v1228
  %v1255 = vadd.f32 %v1087, %v1233
  %v1256 = vadd.f32 %v1088, %v1238
  %v1259 = vrot.slane %v173, 1
  %v1260 = vrot.slane %v174, 1
  %v1261 = vsel %vm666, %v1259, %v1260
  %v1262 = vrot.slane %v203, 1
  %v1263 = vrot.slane %v204, 1
  %v1264 = vsel %vm666, %v1262, %v1263
  %v1265 = vsel %vm34, %v1261, 0
  %v1267 = vsel %vm34, %v1264, 0
  %v1270 = vsel %vm321, %v140, 0
  %1272 = vmatprep.subr.mxu0 0.0
  %1273 = vmatpush1.msra.mxu0 %v139
  %1274 = vmatprep.subr.mxu0 0.0
  %1275 = vmatpush1.msra.mxu0 %v1270
  %1276 = vmatprep.subr.mxu0 0.0
  %1277 = vmatpush1.msra.mxu0 0.0
  %1278 = vmatprep.subr.mxu0 0.0
  %1279 = vmatpush1.msra.mxu0 0.0
  %1280 = vmatprep.subr.mxu0 0.0
  %1281 = vmatpush1.msra.mxu0 0.0
  %1282 = vmatprep.subr.mxu0 0.0
  %1283 = vmatpush1.msra.mxu0 0.0
  %1284 = vmatprep.subr.mxu0 0.0
  %1285 = vmatpush1.msra.mxu0 0.0
  %1286 = vmatprep.subr.mxu0 0.0
  %1287 = vmatpush1.msra.mxu0 0.0
  %1288 = vmatprep.subr.mxu0 0.0
  %1289 = vmatpush1.msra.mxu0 0.0
  %1290 = vmatprep.subr.mxu0 0.0
  %1291 = vmatpush1.msra.mxu0 0.0
  %1292 = vmatprep.subr.mxu0 0.0
  %1293 = vmatpush1.msra.mxu0 0.0
  %1294 = vmatprep.subr.mxu0 0.0
  %1295 = vmatpush1.msra.mxu0 0.0
  %1296 = vmatprep.subr.mxu0 0.0
  %1297 = vmatpush1.msra.mxu0 0.0
  %1298 = vmatprep.subr.mxu0 0.0
  %1299 = vmatpush1.msra.mxu0 0.0
  %1300 = vmatprep.subr.mxu0 0.0
  %1301 = vmatpush1.msra.mxu0 0.0
  %1302 = vmatprep.subr.mxu0 0.0
  %1303 = vmatpush1.msra.mxu0 0.0
  %1304 = vmatprep.subr.mxu0 0.0
  %1305 = vmatpush1.msra.mxu0 0.0
  %1306 = vmatprep.subr.mxu0 0.0
  %1307 = vmatpush1.msra.mxu0 0.0
  %1308 = vmatprep.subr.mxu0 0.0
  %1309 = vmatpush1.msra.mxu0 0.0
  %1310 = vmatprep.subr.mxu0 0.0
  %1311 = vmatpush1.msra.mxu0 0.0
  %1312 = vmatprep.subr.mxu0 0.0
  %1313 = vmatpush1.msra.mxu0 0.0
  %1314 = vmatprep.subr.mxu0 0.0
  %1315 = vmatpush1.msra.mxu0 0.0
  %1316 = vmatprep.subr.mxu0 0.0
  %1317 = vmatpush1.msra.mxu0 0.0
  %1318 = vmatprep.subr.mxu0 0.0
  %1319 = vmatpush1.msra.mxu0 0.0
  %1320 = vmatprep.subr.mxu0 0.0
  %1321 = vmatpush1.msra.mxu0 0.0
  %1322 = vmatprep.subr.mxu0 0.0
  %1323 = vmatpush1.msra.mxu0 0.0
  %1324 = vmatprep.subr.mxu0 0.0
  %1325 = vmatpush1.msra.mxu0 0.0
  %1326 = vmatprep.subr.mxu0 0.0
  %1327 = vmatpush1.msra.mxu0 0.0
  %1328 = vmatprep.subr.mxu0 0.0
  %1329 = vmatpush1.msra.mxu0 0.0
  %1330 = vmatprep.subr.mxu0 0.0
  %1331 = vmatpush1.msra.mxu0 0.0
  %1332 = vmatprep.subr.mxu0 0.0
  %1333 = vmatpush1.msra.mxu0 0.0
  %1334 = vmatprep.subr.mxu0 0.0
  %1335 = vmatpush1.msra.mxu0 0.0
  %1336 = vmatprep.mubr.f32.mxu0 0.0
  %1337 = vmatmul.mubr.f32.gmra.mrb[0].mxu0 %v717
  %v1338 = vpop.f32.mrb[0].mxu0
  %v1339 = vadd.f32 0.0, %v1338
  %v1340 = vpop.f32.mrb[0].mxu0
  %1341 = vmatprep.mubr.f32.mxu0 0.0
  %1342 = vmatmul.mubr.f32.gmra.mrb[0].mxu0 %v719
  %v1343 = vpop.f32.mrb[0].mxu0
  %v1344 = vadd.f32 0.0, %v1343
  %v1345 = vpop.f32.mrb[0].mxu0
  %1346 = vmatprep.mubr.f32.mxu0 0.0
  %1347 = vmatmul.mubr.f32.gmra.mrb[0].mxu0 %v721
  %v1348 = vpop.f32.mrb[0].mxu0
  %v1349 = vadd.f32 0.0, %v1348
  %v1350 = vpop.f32.mrb[0].mxu0
  %1351 = vmatprep.mubr.f32.mxu0 0.0
  %1352 = vmatmul.mubr.f32.gmra.mrb[0].mxu0 %v723
  %v1353 = vpop.f32.mrb[0].mxu0
  %v1354 = vadd.f32 0.0, %v1353
  %v1355 = vpop.f32.mrb[0].mxu0
  %1356 = vmatprep.mubr.f32.mxu0 0.0
  %1357 = vmatmul.mubr.f32.gmra.mrb[0].mxu0 %v725
  %v1358 = vpop.f32.mrb[0].mxu0
  %v1359 = vadd.f32 0.0, %v1358
  %v1360 = vpop.f32.mrb[0].mxu0
  %1361 = vmatprep.mubr.f32.mxu0 0.0
  %1362 = vmatmul.mubr.f32.gmra.mrb[0].mxu0 %v727
  %v1363 = vpop.f32.mrb[0].mxu0
  %v1364 = vadd.f32 0.0, %v1363
  %v1365 = vpop.f32.mrb[0].mxu0
  %1366 = vmatprep.mubr.f32.mxu0 0.0
  %1367 = vmatmul.mubr.f32.gmra.mrb[0].mxu0 %v729
  %v1368 = vpop.f32.mrb[0].mxu0
  %v1369 = vadd.f32 0.0, %v1368
  %v1370 = vpop.f32.mrb[0].mxu0
  %1371 = vmatprep.mubr.f32.mxu0 0.0
  %1372 = vmatmul.mubr.f32.gmra.mrb[0].mxu0 %v1265
  %v1373 = vpop.f32.mrb[0].mxu0
  %v1374 = vadd.f32 0.0, %v1373
  %v1375 = vpop.f32.mrb[0].mxu0
  %1376 = vmatprep.mubr.f32.mxu0 0.0
  %1377 = vmatmul.mubr.f32.gmra.mrb[0].mxu0 %v733
  %v1378 = vpop.f32.mrb[0].mxu0
  %v1379 = vadd.f32 0.0, %v1378
  %v1380 = vpop.f32.mrb[0].mxu0
  %1381 = vmatprep.mubr.f32.mxu0 0.0
  %1382 = vmatmul.mubr.f32.gmra.mrb[0].mxu0 %v735
  %v1383 = vpop.f32.mrb[0].mxu0
  %v1384 = vadd.f32 0.0, %v1383
  %v1385 = vpop.f32.mrb[0].mxu0
  %1386 = vmatprep.mubr.f32.mxu0 0.0
  %1387 = vmatmul.mubr.f32.gmra.mrb[0].mxu0 %v737
  %v1388 = vpop.f32.mrb[0].mxu0
  %v1389 = vadd.f32 0.0, %v1388
  %v1390 = vpop.f32.mrb[0].mxu0
  %1391 = vmatprep.mubr.f32.mxu0 0.0
  %1392 = vmatmul.mubr.f32.gmra.mrb[0].mxu0 %v739
  %v1393 = vpop.f32.mrb[0].mxu0
  %v1394 = vadd.f32 0.0, %v1393
  %v1395 = vpop.f32.mrb[0].mxu0
  %1396 = vmatprep.mubr.f32.mxu0 0.0
  %1397 = vmatmul.mubr.f32.gmra.mrb[0].mxu0 %v741
  %v1398 = vpop.f32.mrb[0].mxu0
  %v1399 = vadd.f32 0.0, %v1398
  %v1400 = vpop.f32.mrb[0].mxu0
  %1401 = vmatprep.mubr.f32.mxu0 0.0
  %1402 = vmatmul.mubr.f32.gmra.mrb[0].mxu0 %v743
  %v1403 = vpop.f32.mrb[0].mxu0
  %v1404 = vadd.f32 0.0, %v1403
  %v1405 = vpop.f32.mrb[0].mxu0
  %1406 = vmatprep.mubr.f32.mxu0 0.0
  %1407 = vmatmul.mubr.f32.gmra.mrb[0].mxu0 %v745
  %v1408 = vpop.f32.mrb[0].mxu0
  %v1409 = vadd.f32 0.0, %v1408
  %v1410 = vpop.f32.mrb[0].mxu0
  %1411 = vmatprep.mubr.f32.mxu0 0.0
  %1412 = vmatmul.mubr.f32.gmra.mrb[0].mxu0 %v1267
  %v1413 = vpop.f32.mrb[0].mxu0
  %v1414 = vadd.f32 0.0, %v1413
  %v1415 = vpop.f32.mrb[0].mxu0
  %1416 = vdwg.mxu0
  %v1417 = vadd.f32 %v1241, %v1339
  %v1418 = vadd.f32 %v1242, %v1344
  %v1419 = vadd.f32 %v1243, %v1349
  %v1420 = vadd.f32 %v1244, %v1354
  %v1421 = vadd.f32 %v1245, %v1359
  %v1422 = vadd.f32 %v1246, %v1364
  %v1423 = vadd.f32 %v1247, %v1369
  %v1424 = vadd.f32 %v1248, %v1374
  %v1425 = vadd.f32 %v1249, %v1379
  %v1426 = vadd.f32 %v1250, %v1384
  %v1427 = vadd.f32 %v1251, %v1389
  %v1428 = vadd.f32 %v1252, %v1394
  %v1429 = vadd.f32 %v1253, %v1399
  %v1430 = vadd.f32 %v1254, %v1404
  %v1431 = vadd.f32 %v1255, %v1409
  %v1432 = vadd.f32 %v1256, %v1414
  %v1437 = vrot.slane %v175, 7
  %v1438 = vrot.slane %v176, 7
  %v1439 = vsel %vm240, %v1437, %v1438
  %v1440 = vrot.slane %v205, 7
  %v1441 = vrot.slane %v206, 7
  %v1442 = vsel %vm240, %v1440, %v1441
  %v1443 = vsel %vm34, %v1439, 0
  %v1445 = vsel %vm34, %v1442, 0
  %v1448 = vsel %vm321, %v142, 0
  %1450 = vmatprep.subr.mxu0 0.0
  %1451 = vmatpush1.msra.mxu0 %v141
  %1452 = vmatprep.subr.mxu0 0.0
  %1453 = vmatpush1.msra.mxu0 %v1448
  %1454 = vmatprep.subr.mxu0 0.0
  %1455 = vmatpush1.msra.mxu0 0.0
  %1456 = vmatprep.subr.mxu0 0.0
  %1457 = vmatpush1.msra.mxu0 0.0
  %1458 = vmatprep.subr.mxu0 0.0
  %1459 = vmatpush1.msra.mxu0 0.0
  %1460 = vmatprep.subr.mxu0 0.0
  %1461 = vmatpush1.msra.mxu0 0.0
  %1462 = vmatprep.subr.mxu0 0.0
  %1463 = vmatpush1.msra.mxu0 0.0
  %1464 = vmatprep.subr.mxu0 0.0
  %1465 = vmatpush1.msra.mxu0 0.0
  %1466 = vmatprep.subr.mxu0 0.0
  %1467 = vmatpush1.msra.mxu0 0.0
  %1468 = vmatprep.subr.mxu0 0.0
  %1469 = vmatpush1.msra.mxu0 0.0
  %1470 = vmatprep.subr.mxu0 0.0
  %1471 = vmatpush1.msra.mxu0 0.0
  %1472 = vmatprep.subr.mxu0 0.0
  %1473 = vmatpush1.msra.mxu0 0.0
  %1474 = vmatprep.subr.mxu0 0.0
  %1475 = vmatpush1.msra.mxu0 0.0
  %1476 = vmatprep.subr.mxu0 0.0
  %1477 = vmatpush1.msra.mxu0 0.0
  %1478 = vmatprep.subr.mxu0 0.0
  %1479 = vmatpush1.msra.mxu0 0.0
  %1480 = vmatprep.subr.mxu0 0.0
  %1481 = vmatpush1.msra.mxu0 0.0
  %1482 = vmatprep.subr.mxu0 0.0
  %1483 = vmatpush1.msra.mxu0 0.0
  %1484 = vmatprep.subr.mxu0 0.0
  %1485 = vmatpush1.msra.mxu0 0.0
  %1486 = vmatprep.subr.mxu0 0.0
  %1487 = vmatpush1.msra.mxu0 0.0
  %1488 = vmatprep.subr.mxu0 0.0
  %1489 = vmatpush1.msra.mxu0 0.0
  %1490 = vmatprep.subr.mxu0 0.0
  %1491 = vmatpush1.msra.mxu0 0.0
  %1492 = vmatprep.subr.mxu0 0.0
  %1493 = vmatpush1.msra.mxu0 0.0
  %1494 = vmatprep.subr.mxu0 0.0
  %1495 = vmatpush1.msra.mxu0 0.0
  %1496 = vmatprep.subr.mxu0 0.0
  %1497 = vmatpush1.msra.mxu0 0.0
  %1498 = vmatprep.subr.mxu0 0.0
  %1499 = vmatpush1.msra.mxu0 0.0
  %1500 = vmatprep.subr.mxu0 0.0
  %1501 = vmatpush1.msra.mxu0 0.0
  %1502 = vmatprep.subr.mxu0 0.0
  %1503 = vmatpush1.msra.mxu0 0.0
  %1504 = vmatprep.subr.mxu0 0.0
  %1505 = vmatpush1.msra.mxu0 0.0
  %1506 = vmatprep.subr.mxu0 0.0
  %1507 = vmatpush1.msra.mxu0 0.0
  %1508 = vmatprep.subr.mxu0 0.0
  %1509 = vmatpush1.msra.mxu0 0.0
  %1510 = vmatprep.subr.mxu0 0.0
  %1511 = vmatpush1.msra.mxu0 0.0
  %1512 = vmatprep.subr.mxu0 0.0
  %1513 = vmatpush1.msra.mxu0 0.0
  %1514 = vmatprep.mubr.f32.mxu0 0.0
  %1515 = vmatmul.mubr.f32.gmra.mrb[0].mxu0 %v474
  %v1516 = vpop.f32.mrb[0].mxu0
  %v1517 = vadd.f32 0.0, %v1516
  %v1518 = vpop.f32.mrb[0].mxu0
  %1519 = vmatprep.mubr.f32.mxu0 0.0
  %1520 = vmatmul.mubr.f32.gmra.mrb[0].mxu0 %v476
  %v1521 = vpop.f32.mrb[0].mxu0
  %v1522 = vadd.f32 0.0, %v1521
  %v1523 = vpop.f32.mrb[0].mxu0
  %1524 = vmatprep.mubr.f32.mxu0 0.0
  %1525 = vmatmul.mubr.f32.gmra.mrb[0].mxu0 %v478
  %v1526 = vpop.f32.mrb[0].mxu0
  %v1527 = vadd.f32 0.0, %v1526
  %v1528 = vpop.f32.mrb[0].mxu0
  %1529 = vmatprep.mubr.f32.mxu0 0.0
  %1530 = vmatmul.mubr.f32.gmra.mrb[0].mxu0 %v480
  %v1531 = vpop.f32.mrb[0].mxu0
  %v1532 = vadd.f32 0.0, %v1531
  %v1533 = vpop.f32.mrb[0].mxu0
  %1534 = vmatprep.mubr.f32.mxu0 0.0
  %1535 = vmatmul.mubr.f32.gmra.mrb[0].mxu0 %v482
  %v1536 = vpop.f32.mrb[0].mxu0
  %v1537 = vadd.f32 0.0, %v1536
  %v1538 = vpop.f32.mrb[0].mxu0
  %1539 = vmatprep.mubr.f32.mxu0 0.0
  %1540 = vmatmul.mubr.f32.gmra.mrb[0].mxu0 %v484
  %v1541 = vpop.f32.mrb[0].mxu0
  %v1542 = vadd.f32 0.0, %v1541
  %v1543 = vpop.f32.mrb[0].mxu0
  %1544 = vmatprep.mubr.f32.mxu0 0.0
  %1545 = vmatmul.mubr.f32.gmra.mrb[0].mxu0 %v921
  %v1546 = vpop.f32.mrb[0].mxu0
  %v1547 = vadd.f32 0.0, %v1546
  %v1548 = vpop.f32.mrb[0].mxu0
  %1549 = vmatprep.mubr.f32.mxu0 0.0
  %1550 = vmatmul.mubr.f32.gmra.mrb[0].mxu0 %v1443
  %v1551 = vpop.f32.mrb[0].mxu0
  %v1552 = vadd.f32 0.0, %v1551
  %v1553 = vpop.f32.mrb[0].mxu0
  %1554 = vmatprep.mubr.f32.mxu0 0.0
  %1555 = vmatmul.mubr.f32.gmra.mrb[0].mxu0 %v490
  %v1556 = vpop.f32.mrb[0].mxu0
  %v1557 = vadd.f32 0.0, %v1556
  %v1558 = vpop.f32.mrb[0].mxu0
  %1559 = vmatprep.mubr.f32.mxu0 0.0
  %1560 = vmatmul.mubr.f32.gmra.mrb[0].mxu0 %v492
  %v1561 = vpop.f32.mrb[0].mxu0
  %v1562 = vadd.f32 0.0, %v1561
  %v1563 = vpop.f32.mrb[0].mxu0
  %1564 = vmatprep.mubr.f32.mxu0 0.0
  %1565 = vmatmul.mubr.f32.gmra.mrb[0].mxu0 %v494
  %v1566 = vpop.f32.mrb[0].mxu0
  %v1567 = vadd.f32 0.0, %v1566
  %v1568 = vpop.f32.mrb[0].mxu0
  %1569 = vmatprep.mubr.f32.mxu0 0.0
  %1570 = vmatmul.mubr.f32.gmra.mrb[0].mxu0 %v496
  %v1571 = vpop.f32.mrb[0].mxu0
  %v1572 = vadd.f32 0.0, %v1571
  %v1573 = vpop.f32.mrb[0].mxu0
  %1574 = vmatprep.mubr.f32.mxu0 0.0
  %1575 = vmatmul.mubr.f32.gmra.mrb[0].mxu0 %v498
  %v1576 = vpop.f32.mrb[0].mxu0
  %v1577 = vadd.f32 0.0, %v1576
  %v1578 = vpop.f32.mrb[0].mxu0
  %1579 = vmatprep.mubr.f32.mxu0 0.0
  %1580 = vmatmul.mubr.f32.gmra.mrb[0].mxu0 %v500
  %v1581 = vpop.f32.mrb[0].mxu0
  %v1582 = vadd.f32 0.0, %v1581
  %v1583 = vpop.f32.mrb[0].mxu0
  %1584 = vmatprep.mubr.f32.mxu0 0.0
  %1585 = vmatmul.mubr.f32.gmra.mrb[0].mxu0 %v923
  %v1586 = vpop.f32.mrb[0].mxu0
  %v1587 = vadd.f32 0.0, %v1586
  %v1588 = vpop.f32.mrb[0].mxu0
  %1589 = vmatprep.mubr.f32.mxu0 0.0
  %1590 = vmatmul.mubr.f32.gmra.mrb[0].mxu0 %v1445
  %v1591 = vpop.f32.mrb[0].mxu0
  %v1592 = vadd.f32 0.0, %v1591
  %v1593 = vpop.f32.mrb[0].mxu0
  %1594 = vdwg.mxu0
  %v1595 = vadd.f32 %v1417, %v1517
  %v1596 = vadd.f32 %v1418, %v1522
  %v1597 = vadd.f32 %v1419, %v1527
  %v1598 = vadd.f32 %v1420, %v1532
  %v1599 = vadd.f32 %v1421, %v1537
  %v1600 = vadd.f32 %v1422, %v1542
  %v1601 = vadd.f32 %v1423, %v1547
  %v1602 = vadd.f32 %v1424, %v1552
  %v1603 = vadd.f32 %v1425, %v1557
  %v1604 = vadd.f32 %v1426, %v1562
  %v1605 = vadd.f32 %v1427, %v1567
  %v1606 = vadd.f32 %v1428, %v1572
  %v1607 = vadd.f32 %v1429, %v1577
  %v1608 = vadd.f32 %v1430, %v1582
  %v1609 = vadd.f32 %v1431, %v1587
  %v1610 = vadd.f32 %v1432, %v1592
  %v1611 = vsel %vm34, %v176, 0
  %v1613 = vsel %vm34, %v206, 0
  %v1616 = vsel %vm321, %v144, 0
  %1618 = vmatprep.subr.mxu0 0.0
  %1619 = vmatpush1.msra.mxu0 %v143
  %1620 = vmatprep.subr.mxu0 0.0
  %1621 = vmatpush1.msra.mxu0 %v1616
  %1622 = vmatprep.subr.mxu0 0.0
  %1623 = vmatpush1.msra.mxu0 0.0
  %1624 = vmatprep.subr.mxu0 0.0
  %1625 = vmatpush1.msra.mxu0 0.0
  %1626 = vmatprep.subr.mxu0 0.0
  %1627 = vmatpush1.msra.mxu0 0.0
  %1628 = vmatprep.subr.mxu0 0.0
  %1629 = vmatpush1.msra.mxu0 0.0
  %1630 = vmatprep.subr.mxu0 0.0
  %1631 = vmatpush1.msra.mxu0 0.0
  %1632 = vmatprep.subr.mxu0 0.0
  %1633 = vmatpush1.msra.mxu0 0.0
  %1634 = vmatprep.subr.mxu0 0.0
  %1635 = vmatpush1.msra.mxu0 0.0
  %1636 = vmatprep.subr.mxu0 0.0
  %1637 = vmatpush1.msra.mxu0 0.0
  %1638 = vmatprep.subr.mxu0 0.0
  %1639 = vmatpush1.msra.mxu0 0.0
  %1640 = vmatprep.subr.mxu0 0.0
  %1641 = vmatpush1.msra.mxu0 0.0
  %1642 = vmatprep.subr.mxu0 0.0
  %1643 = vmatpush1.msra.mxu0 0.0
  %1644 = vmatprep.subr.mxu0 0.0
  %1645 = vmatpush1.msra.mxu0 0.0
  %1646 = vmatprep.subr.mxu0 0.0
  %1647 = vmatpush1.msra.mxu0 0.0
  %1648 = vmatprep.subr.mxu0 0.0
  %1649 = vmatpush1.msra.mxu0 0.0
  %1650 = vmatprep.subr.mxu0 0.0
  %1651 = vmatpush1.msra.mxu0 0.0
  %1652 = vmatprep.subr.mxu0 0.0
  %1653 = vmatpush1.msra.mxu0 0.0
  %1654 = vmatprep.subr.mxu0 0.0
  %1655 = vmatpush1.msra.mxu0 0.0
  %1656 = vmatprep.subr.mxu0 0.0
  %1657 = vmatpush1.msra.mxu0 0.0
  %1658 = vmatprep.subr.mxu0 0.0
  %1659 = vmatpush1.msra.mxu0 0.0
  %1660 = vmatprep.subr.mxu0 0.0
  %1661 = vmatpush1.msra.mxu0 0.0
  %1662 = vmatprep.subr.mxu0 0.0
  %1663 = vmatpush1.msra.mxu0 0.0
  %1664 = vmatprep.subr.mxu0 0.0
  %1665 = vmatpush1.msra.mxu0 0.0
  %1666 = vmatprep.subr.mxu0 0.0
  %1667 = vmatpush1.msra.mxu0 0.0
  %1668 = vmatprep.subr.mxu0 0.0
  %1669 = vmatpush1.msra.mxu0 0.0
  %1670 = vmatprep.subr.mxu0 0.0
  %1671 = vmatpush1.msra.mxu0 0.0
  %1672 = vmatprep.subr.mxu0 0.0
  %1673 = vmatpush1.msra.mxu0 0.0
  %1674 = vmatprep.subr.mxu0 0.0
  %1675 = vmatpush1.msra.mxu0 0.0
  %1676 = vmatprep.subr.mxu0 0.0
  %1677 = vmatpush1.msra.mxu0 0.0
  %1678 = vmatprep.subr.mxu0 0.0
  %1679 = vmatpush1.msra.mxu0 0.0
  %1680 = vmatprep.subr.mxu0 0.0
  %1681 = vmatpush1.msra.mxu0 0.0
  %1682 = vmatprep.mubr.f32.mxu0 0.0
  %1683 = vmatmul.mubr.f32.gmra.mrb[0].mxu0 %v293
  %v1684 = vpop.f32.mrb[0].mxu0
  %v1685 = vadd.f32 0.0, %v1684
  %v1686 = vpop.f32.mrb[0].mxu0
  %1687 = vmatprep.mubr.f32.mxu0 0.0
  %1688 = vmatmul.mubr.f32.gmra.mrb[0].mxu0 %v295
  %v1689 = vpop.f32.mrb[0].mxu0
  %v1690 = vadd.f32 0.0, %v1689
  %v1691 = vpop.f32.mrb[0].mxu0
  %1692 = vmatprep.mubr.f32.mxu0 0.0
  %1693 = vmatmul.mubr.f32.gmra.mrb[0].mxu0 %v297
  %v1694 = vpop.f32.mrb[0].mxu0
  %v1695 = vadd.f32 0.0, %v1694
  %v1696 = vpop.f32.mrb[0].mxu0
  %1697 = vmatprep.mubr.f32.mxu0 0.0
  %1698 = vmatmul.mubr.f32.gmra.mrb[0].mxu0 %v299
  %v1699 = vpop.f32.mrb[0].mxu0
  %v1700 = vadd.f32 0.0, %v1699
  %v1701 = vpop.f32.mrb[0].mxu0
  %1702 = vmatprep.mubr.f32.mxu0 0.0
  %1703 = vmatmul.mubr.f32.gmra.mrb[0].mxu0 %v301
  %v1704 = vpop.f32.mrb[0].mxu0
  %v1705 = vadd.f32 0.0, %v1704
  %v1706 = vpop.f32.mrb[0].mxu0
  %1707 = vmatprep.mubr.f32.mxu0 0.0
  %1708 = vmatmul.mubr.f32.gmra.mrb[0].mxu0 %v303
  %v1709 = vpop.f32.mrb[0].mxu0
  %v1710 = vadd.f32 0.0, %v1709
  %v1711 = vpop.f32.mrb[0].mxu0
  %1712 = vmatprep.mubr.f32.mxu0 0.0
  %1713 = vmatmul.mubr.f32.gmra.mrb[0].mxu0 %v1089
  %v1714 = vpop.f32.mrb[0].mxu0
  %v1715 = vadd.f32 0.0, %v1714
  %v1716 = vpop.f32.mrb[0].mxu0
  %1717 = vmatprep.mubr.f32.mxu0 0.0
  %1718 = vmatmul.mubr.f32.gmra.mrb[0].mxu0 %v1611
  %v1719 = vpop.f32.mrb[0].mxu0
  %v1720 = vadd.f32 0.0, %v1719
  %v1721 = vpop.f32.mrb[0].mxu0
  %1722 = vmatprep.mubr.f32.mxu0 0.0
  %1723 = vmatmul.mubr.f32.gmra.mrb[0].mxu0 %v309
  %v1724 = vpop.f32.mrb[0].mxu0
  %v1725 = vadd.f32 0.0, %v1724
  %v1726 = vpop.f32.mrb[0].mxu0
  %1727 = vmatprep.mubr.f32.mxu0 0.0
  %1728 = vmatmul.mubr.f32.gmra.mrb[0].mxu0 %v311
  %v1729 = vpop.f32.mrb[0].mxu0
  %v1730 = vadd.f32 0.0, %v1729
  %v1731 = vpop.f32.mrb[0].mxu0
  %1732 = vmatprep.mubr.f32.mxu0 0.0
  %1733 = vmatmul.mubr.f32.gmra.mrb[0].mxu0 %v313
  %v1734 = vpop.f32.mrb[0].mxu0
  %v1735 = vadd.f32 0.0, %v1734
  %v1736 = vpop.f32.mrb[0].mxu0
  %1737 = vmatprep.mubr.f32.mxu0 0.0
  %1738 = vmatmul.mubr.f32.gmra.mrb[0].mxu0 %v315
  %v1739 = vpop.f32.mrb[0].mxu0
  %v1740 = vadd.f32 0.0, %v1739
  %v1741 = vpop.f32.mrb[0].mxu0
  %1742 = vmatprep.mubr.f32.mxu0 0.0
  %1743 = vmatmul.mubr.f32.gmra.mrb[0].mxu0 %v317
  %v1744 = vpop.f32.mrb[0].mxu0
  %v1745 = vadd.f32 0.0, %v1744
  %v1746 = vpop.f32.mrb[0].mxu0
  %1747 = vmatprep.mubr.f32.mxu0 0.0
  %1748 = vmatmul.mubr.f32.gmra.mrb[0].mxu0 %v319
  %v1749 = vpop.f32.mrb[0].mxu0
  %v1750 = vadd.f32 0.0, %v1749
  %v1751 = vpop.f32.mrb[0].mxu0
  %1752 = vmatprep.mubr.f32.mxu0 0.0
  %1753 = vmatmul.mubr.f32.gmra.mrb[0].mxu0 %v1091
  %v1754 = vpop.f32.mrb[0].mxu0
  %v1755 = vadd.f32 0.0, %v1754
  %v1756 = vpop.f32.mrb[0].mxu0
  %1757 = vmatprep.mubr.f32.mxu0 0.0
  %1758 = vmatmul.mubr.f32.gmra.mrb[0].mxu0 %v1613
  %v1759 = vpop.f32.mrb[0].mxu0
  %v1760 = vadd.f32 0.0, %v1759
  %v1761 = vpop.f32.mrb[0].mxu0
  %1762 = vdwg.mxu0
  %v1763 = vadd.f32 %v1595, %v1685
  %v1764 = vadd.f32 %v1596, %v1690
  %v1765 = vadd.f32 %v1597, %v1695
  %v1766 = vadd.f32 %v1598, %v1700
  %v1767 = vadd.f32 %v1599, %v1705
  %v1768 = vadd.f32 %v1600, %v1710
  %v1769 = vadd.f32 %v1601, %v1715
  %v1770 = vadd.f32 %v1602, %v1720
  %v1771 = vadd.f32 %v1603, %v1725
  %v1772 = vadd.f32 %v1604, %v1730
  %v1773 = vadd.f32 %v1605, %v1735
  %v1774 = vadd.f32 %v1606, %v1740
  %v1775 = vadd.f32 %v1607, %v1745
  %v1776 = vadd.f32 %v1608, %v1750
  %v1777 = vadd.f32 %v1609, %v1755
  %v1778 = vadd.f32 %v1610, %v1760
  %v1781 = vrot.slane %v176, 1
  %v1782 = vrot.slane %v177, 1
  %v1783 = vsel %vm666, %v1781, %v1782
  %v1784 = vrot.slane %v206, 1
  %v1785 = vrot.slane %v207, 1
  %v1786 = vsel %vm666, %v1784, %v1785
  %v1787 = vsel %vm34, %v1783, 0
  %v1789 = vsel %vm34, %v1786, 0
  %v1792 = vsel %vm321, %v146, 0
  %1794 = vmatprep.subr.mxu0 0.0
  %1795 = vmatpush1.msra.mxu0 %v145
  %1796 = vmatprep.subr.mxu0 0.0
  %1797 = vmatpush1.msra.mxu0 %v1792
  %1798 = vmatprep.subr.mxu0 0.0
  %1799 = vmatpush1.msra.mxu0 0.0
  %1800 = vmatprep.subr.mxu0 0.0
  %1801 = vmatpush1.msra.mxu0 0.0
  %1802 = vmatprep.subr.mxu0 0.0
  %1803 = vmatpush1.msra.mxu0 0.0
  %1804 = vmatprep.subr.mxu0 0.0
  %1805 = vmatpush1.msra.mxu0 0.0
  %1806 = vmatprep.subr.mxu0 0.0
  %1807 = vmatpush1.msra.mxu0 0.0
  %1808 = vmatprep.subr.mxu0 0.0
  %1809 = vmatpush1.msra.mxu0 0.0
  %1810 = vmatprep.subr.mxu0 0.0
  %1811 = vmatpush1.msra.mxu0 0.0
  %1812 = vmatprep.subr.mxu0 0.0
  %1813 = vmatpush1.msra.mxu0 0.0
  %1814 = vmatprep.subr.mxu0 0.0
  %1815 = vmatpush1.msra.mxu0 0.0
  %1816 = vmatprep.subr.mxu0 0.0
  %1817 = vmatpush1.msra.mxu0 0.0
  %1818 = vmatprep.subr.mxu0 0.0
  %1819 = vmatpush1.msra.mxu0 0.0
  %1820 = vmatprep.subr.mxu0 0.0
  %1821 = vmatpush1.msra.mxu0 0.0
  %1822 = vmatprep.subr.mxu0 0.0
  %1823 = vmatpush1.msra.mxu0 0.0
  %1824 = vmatprep.subr.mxu0 0.0
  %1825 = vmatpush1.msra.mxu0 0.0
  %1826 = vmatprep.subr.mxu0 0.0
  %1827 = vmatpush1.msra.mxu0 0.0
  %1828 = vmatprep.subr.mxu0 0.0
  %1829 = vmatpush1.msra.mxu0 0.0
  %1830 = vmatprep.subr.mxu0 0.0
  %1831 = vmatpush1.msra.mxu0 0.0
  %1832 = vmatprep.subr.mxu0 0.0
  %1833 = vmatpush1.msra.mxu0 0.0
  %1834 = vmatprep.subr.mxu0 0.0
  %1835 = vmatpush1.msra.mxu0 0.0
  %1836 = vmatprep.subr.mxu0 0.0
  %1837 = vmatpush1.msra.mxu0 0.0
  %1838 = vmatprep.subr.mxu0 0.0
  %1839 = vmatpush1.msra.mxu0 0.0
  %1840 = vmatprep.subr.mxu0 0.0
  %1841 = vmatpush1.msra.mxu0 0.0
  %1842 = vmatprep.subr.mxu0 0.0
  %1843 = vmatpush1.msra.mxu0 0.0
  %1844 = vmatprep.subr.mxu0 0.0
  %1845 = vmatpush1.msra.mxu0 0.0
  %1846 = vmatprep.subr.mxu0 0.0
  %1847 = vmatpush1.msra.mxu0 0.0
  %1848 = vmatprep.subr.mxu0 0.0
  %1849 = vmatpush1.msra.mxu0 0.0
  %1850 = vmatprep.subr.mxu0 0.0
  %1851 = vmatpush1.msra.mxu0 0.0
  %1852 = vmatprep.subr.mxu0 0.0
  %1853 = vmatpush1.msra.mxu0 0.0
  %1854 = vmatprep.subr.mxu0 0.0
  %1855 = vmatpush1.msra.mxu0 0.0
  %1856 = vmatprep.subr.mxu0 0.0
  %1857 = vmatpush1.msra.mxu0 0.0
  %1858 = vmatprep.mubr.f32.mxu0 0.0
  %1859 = vmatmul.mubr.f32.gmra.mrb[0].mxu0 %v719
  %v1860 = vpop.f32.mrb[0].mxu0
  %v1861 = vadd.f32 0.0, %v1860
  %v1862 = vpop.f32.mrb[0].mxu0
  %1863 = vmatprep.mubr.f32.mxu0 0.0
  %1864 = vmatmul.mubr.f32.gmra.mrb[0].mxu0 %v721
  %v1865 = vpop.f32.mrb[0].mxu0
  %v1866 = vadd.f32 0.0, %v1865
  %v1867 = vpop.f32.mrb[0].mxu0
  %1868 = vmatprep.mubr.f32.mxu0 0.0
  %1869 = vmatmul.mubr.f32.gmra.mrb[0].mxu0 %v723
  %v1870 = vpop.f32.mrb[0].mxu0
  %v1871 = vadd.f32 0.0, %v1870
  %v1872 = vpop.f32.mrb[0].mxu0
  %1873 = vmatprep.mubr.f32.mxu0 0.0
  %1874 = vmatmul.mubr.f32.gmra.mrb[0].mxu0 %v725
  %v1875 = vpop.f32.mrb[0].mxu0
  %v1876 = vadd.f32 0.0, %v1875
  %v1877 = vpop.f32.mrb[0].mxu0
  %1878 = vmatprep.mubr.f32.mxu0 0.0
  %1879 = vmatmul.mubr.f32.gmra.mrb[0].mxu0 %v727
  %v1880 = vpop.f32.mrb[0].mxu0
  %v1881 = vadd.f32 0.0, %v1880
  %v1882 = vpop.f32.mrb[0].mxu0
  %1883 = vmatprep.mubr.f32.mxu0 0.0
  %1884 = vmatmul.mubr.f32.gmra.mrb[0].mxu0 %v729
  %v1885 = vpop.f32.mrb[0].mxu0
  %v1886 = vadd.f32 0.0, %v1885
  %v1887 = vpop.f32.mrb[0].mxu0
  %1888 = vmatprep.mubr.f32.mxu0 0.0
  %1889 = vmatmul.mubr.f32.gmra.mrb[0].mxu0 %v1265
  %v1890 = vpop.f32.mrb[0].mxu0
  %v1891 = vadd.f32 0.0, %v1890
  %v1892 = vpop.f32.mrb[0].mxu0
  %1893 = vmatprep.mubr.f32.mxu0 0.0
  %1894 = vmatmul.mubr.f32.gmra.mrb[0].mxu0 %v1787
  %v1895 = vpop.f32.mrb[0].mxu0
  %v1896 = vadd.f32 0.0, %v1895
  %v1897 = vpop.f32.mrb[0].mxu0
  %1898 = vmatprep.mubr.f32.mxu0 0.0
  %1899 = vmatmul.mubr.f32.gmra.mrb[0].mxu0 %v735
  %v1900 = vpop.f32.mrb[0].mxu0
  %v1901 = vadd.f32 0.0, %v1900
  %v1902 = vpop.f32.mrb[0].mxu0
  %1903 = vmatprep.mubr.f32.mxu0 0.0
  %1904 = vmatmul.mubr.f32.gmra.mrb[0].mxu0 %v737
  %v1905 = vpop.f32.mrb[0].mxu0
  %v1906 = vadd.f32 0.0, %v1905
  %v1907 = vpop.f32.mrb[0].mxu0
  %1908 = vmatprep.mubr.f32.mxu0 0.0
  %1909 = vmatmul.mubr.f32.gmra.mrb[0].mxu0 %v739
  %v1910 = vpop.f32.mrb[0].mxu0
  %v1911 = vadd.f32 0.0, %v1910
  %v1912 = vpop.f32.mrb[0].mxu0
  %1913 = vmatprep.mubr.f32.mxu0 0.0
  %1914 = vmatmul.mubr.f32.gmra.mrb[0].mxu0 %v741
  %v1915 = vpop.f32.mrb[0].mxu0
  %v1916 = vadd.f32 0.0, %v1915
  %v1917 = vpop.f32.mrb[0].mxu0
  %1918 = vmatprep.mubr.f32.mxu0 0.0
  %1919 = vmatmul.mubr.f32.gmra.mrb[0].mxu0 %v743
  %v1920 = vpop.f32.mrb[0].mxu0
  %v1921 = vadd.f32 0.0, %v1920
  %v1922 = vpop.f32.mrb[0].mxu0
  %1923 = vmatprep.mubr.f32.mxu0 0.0
  %1924 = vmatmul.mubr.f32.gmra.mrb[0].mxu0 %v745
  %v1925 = vpop.f32.mrb[0].mxu0
  %v1926 = vadd.f32 0.0, %v1925
  %v1927 = vpop.f32.mrb[0].mxu0
  %1928 = vmatprep.mubr.f32.mxu0 0.0
  %1929 = vmatmul.mubr.f32.gmra.mrb[0].mxu0 %v1267
  %v1930 = vpop.f32.mrb[0].mxu0
  %v1931 = vadd.f32 0.0, %v1930
  %v1932 = vpop.f32.mrb[0].mxu0
  %1933 = vmatprep.mubr.f32.mxu0 0.0
  %1934 = vmatmul.mubr.f32.gmra.mrb[0].mxu0 %v1789
  %v1935 = vpop.f32.mrb[0].mxu0
  %v1936 = vadd.f32 0.0, %v1935
  %v1937 = vpop.f32.mrb[0].mxu0
  %1938 = vdwg.mxu0
  %v1939 = vadd.f32 %v1763, %v1861
  %v1940 = vadd.f32 %v1764, %v1866
  %v1941 = vadd.f32 %v1765, %v1871
  %v1942 = vadd.f32 %v1766, %v1876
  %v1943 = vadd.f32 %v1767, %v1881
  %v1944 = vadd.f32 %v1768, %v1886
  %v1945 = vadd.f32 %v1769, %v1891
  %v1946 = vadd.f32 %v1770, %v1896
  %v1947 = vadd.f32 %v1771, %v1901
  %v1948 = vadd.f32 %v1772, %v1906
  %v1949 = vadd.f32 %v1773, %v1911
  %v1950 = vadd.f32 %v1774, %v1916
  %v1951 = vadd.f32 %v1775, %v1921
  %v1952 = vadd.f32 %v1776, %v1926
  %v1953 = vadd.f32 %v1777, %v1931
  %v1954 = vadd.f32 %v1778, %v1936
  %v1956 = vlaneseq
  %v1957 = vshrl.u32 %v1956, 7
  %v1958 = vsub.s32 0, %v1957
  %v1959 = vrot.slane %v147, %v1958
  %v1961 = vadd.f32 %v1939, %v1959
  %v1962 = vadd.f32 %v1940, %v1959
  %v1963 = vadd.f32 %v1941, %v1959
  %v1964 = vadd.f32 %v1942, %v1959
  %v1965 = vadd.f32 %v1943, %v1959
  %v1966 = vadd.f32 %v1944, %v1959
  %v1967 = vadd.f32 %v1945, %v1959
  %v1968 = vadd.f32 %v1946, %v1959
  %v1969 = vadd.f32 %v1947, %v1959
  %v1970 = vadd.f32 %v1948, %v1959
  %v1971 = vadd.f32 %v1949, %v1959
  %v1972 = vadd.f32 %v1950, %v1959
  %v1973 = vadd.f32 %v1951, %v1959
  %v1974 = vadd.f32 %v1952, %v1959
  %v1975 = vadd.f32 %v1953, %v1959
  %v1976 = vadd.f32 %v1954, %v1959
  %v1977 = vmax.f32 %v1961, 0.0
  %v1978 = vmax.f32 %v1962, 0.0
  %v1979 = vmax.f32 %v1963, 0.0
  %v1980 = vmax.f32 %v1964, 0.0
  %v1981 = vmax.f32 %v1965, 0.0
  %v1982 = vmax.f32 %v1966, 0.0
  %v1983 = vmax.f32 %v1967, 0.0
  %v1984 = vmax.f32 %v1968, 0.0
  %v1985 = vmax.f32 %v1969, 0.0
  %v1986 = vmax.f32 %v1970, 0.0
  %v1987 = vmax.f32 %v1971, 0.0
  %v1988 = vmax.f32 %v1972, 0.0
  %v1989 = vmax.f32 %v1973, 0.0
  %v1990 = vmax.f32 %v1974, 0.0
  %v1991 = vmax.f32 %v1975, 0.0
  %v1992 = vmax.f32 %v1976, 0.0
  %vm1993 = vcmask 130048
  %1994 = vst.msk [vmem:[#allocation3] sm:$0xff] %vm1993, 0.0
  %1995 = vst.msk [vmem:[#allocation3 + $0x8] sm:$0xff] %vm1993, 0.0
  %vm1996 = vcmask 122880
  %1997 = vst.msk [vmem:[#allocation3 + $0x10] sm:$0x1] %vm1996, 0.0
  %1998 = vst.msk [vmem:[#allocation3 + $0x18] sm:$0xff] %vm1993, 0.0
  %1999 = vst.msk [vmem:[#allocation3 + $0x20] sm:$0xff] %vm1993, 0.0
  %2000 = vst.msk [vmem:[#allocation3 + $0x28] sm:$0x1] %vm1996, 0.0
  %2001 = vst.msk [vmem:[#allocation3 + $0x30] sm:$0xff] %vm1993, 0.0
  %2002 = vst.msk [vmem:[#allocation3 + $0x38] sm:$0xff] %vm1993, 0.0
  %2003 = vst.msk [vmem:[#allocation3 + $0x40] sm:$0x1] %vm1996, 0.0
  %2004 = vst.msk [vmem:[#allocation3 + $0x48] sm:$0xff] %vm1993, 0.0
  %2005 = vst.msk [vmem:[#allocation3 + $0x50] sm:$0xff] %vm1993, 0.0
  %2006 = vst.msk [vmem:[#allocation3 + $0x58] sm:$0x1] %vm1996, 0.0
  %2007 = vst.msk [vmem:[#allocation3 + $0x60] sm:$0xff] %vm1993, 0.0
  %2008 = vst.msk [vmem:[#allocation3 + $0x68] sm:$0xff] %vm1993, 0.0
  %2009 = vst.msk [vmem:[#allocation3 + $0x70] sm:$0x1] %vm1996, 0.0
  %2010 = vst.msk [vmem:[#allocation3 + $0x78] sm:$0xff] %vm1993, 0.0
  %2011 = vst.msk [vmem:[#allocation3 + $0x80] sm:$0xff] %vm1993, 0.0
  %2012 = vst.msk [vmem:[#allocation3 + $0x88] sm:$0x1] %vm1996, 0.0
  %2013 = vst.msk [vmem:[#allocation3 + $0x90] sm:$0xff] %vm1993, 0.0
  %2014 = vst.msk [vmem:[#allocation3 + $0x98] sm:$0xff] %vm1993, 0.0
  %2015 = vst.msk [vmem:[#allocation3 + $0xa0] sm:$0x1] %vm1996, 0.0
  %2016 = vst.msk [vmem:[#allocation3 + $0xa8] sm:$0xff] %vm1993, 0.0
  %2017 = vst.msk [vmem:[#allocation3 + $0xb0] sm:$0xff] %vm1993, 0.0
  %2018 = vst.msk [vmem:[#allocation3 + $0xb8] sm:$0x1] %vm1996, 0.0
  %2019 = vst.msk [vmem:[#allocation3 + $0xc0] sm:$0xff] %vm1993, 0.0
  %2020 = vst.msk [vmem:[#allocation3 + $0xc8] sm:$0xff] %vm1993, 0.0
  %2021 = vst.msk [vmem:[#allocation3 + $0xd0] sm:$0x1] %vm1996, 0.0
  %2022 = vst.msk [vmem:[#allocation3 + $0xd8] sm:$0xff] %vm1993, 0.0
  %2023 = vst.msk [vmem:[#allocation3 + $0xe0] sm:$0xff] %vm1993, 0.0
  %2024 = vst.msk [vmem:[#allocation3 + $0xe8] sm:$0x1] %vm1996, 0.0
  %2025 = vst.msk [vmem:[#allocation3 + $0xf0] sm:$0xff] %vm1993, 0.0
  %2026 = vst.msk [vmem:[#allocation3 + $0xf8] sm:$0xff] %vm1993, 0.0
  %2027 = vst.msk [vmem:[#allocation3 + $0x100] sm:$0x1] %vm1996, 0.0
  %2028 = vst.msk [vmem:[#allocation3 + $0x108] sm:$0xff] %vm1993, 0.0
  %2029 = vst.msk [vmem:[#allocation3 + $0x110] sm:$0xff] %vm1993, 0.0
  %2030 = vst.msk [vmem:[#allocation3 + $0x118] sm:$0x1] %vm1996, 0.0
  %2031 = vst.msk [vmem:[#allocation3 + $0x120] sm:$0xff] %vm1993, 0.0
  %2032 = vst.msk [vmem:[#allocation3 + $0x128] sm:$0xff] %vm1993, 0.0
  %2033 = vst.msk [vmem:[#allocation3 + $0x130] sm:$0x1] %vm1996, 0.0
  %2034 = vst.msk [vmem:[#allocation3 + $0x138] sm:$0xff] %vm1993, 0.0
  %2035 = vst.msk [vmem:[#allocation3 + $0x140] sm:$0xff] %vm1993, 0.0
  %2036 = vst.msk [vmem:[#allocation3 + $0x148] sm:$0x1] %vm1996, 0.0
  %2037 = vst.msk [vmem:[#allocation3 + $0x150] sm:$0xff] %vm1993, 0.0
  %2038 = vst.msk [vmem:[#allocation3 + $0x158] sm:$0xff] %vm1993, 0.0
  %2039 = vst.msk [vmem:[#allocation3 + $0x160] sm:$0x1] %vm1996, 0.0
  %2040 = vst.msk [vmem:[#allocation3 + $0x168] sm:$0xff] %vm1993, 0.0
  %2041 = vst.msk [vmem:[#allocation3 + $0x170] sm:$0xff] %vm1993, 0.0
  %2042 = vst.msk [vmem:[#allocation3 + $0x178] sm:$0x1] %vm1996, 0.0
  %2043 = vst.msk [vmem:[#allocation3 + $0x180] sm:$0xff] %vm1993, 0.0
  %2044 = vst.msk [vmem:[#allocation3 + $0x188] sm:$0xff] %vm1993, 0.0
  %2045 = vst.msk [vmem:[#allocation3 + $0x190] sm:$0x1] %vm1996, 0.0
  %2046 = vst.msk [vmem:[#allocation3 + $0x198] sm:$0xff] %vm1993, 0.0
  %2047 = vst.msk [vmem:[#allocation3 + $0x1a0] sm:$0xff] %vm1993, 0.0
  %2048 = vst.msk [vmem:[#allocation3 + $0x1a8] sm:$0x1] %vm1996, 0.0
  %2049 = vst.msk [vmem:[#allocation3 + $0x1b0] sm:$0xff] %vm1993, 0.0
  %2050 = vst.msk [vmem:[#allocation3 + $0x1b8] sm:$0xff] %vm1993, 0.0
  %2051 = vst.msk [vmem:[#allocation3 + $0x1c0] sm:$0x1] %vm1996, 0.0
  %2052 = vst.msk [vmem:[#allocation3 + $0x1c8] sm:$0xff] %vm1993, 0.0
  %2053 = vst.msk [vmem:[#allocation3 + $0x1d0] sm:$0xff] %vm1993, 0.0
  %2054 = vst.msk [vmem:[#allocation3 + $0x1d8] sm:$0x1] %vm1996, 0.0
  %s2055 = scalar_lea.vmem [#allocation3], 24
  %2056 = vst.msk [vmem:[%s2055 + $0x8] sm:$0xff] %vm1993, %v1977
  %2057 = vst.msk [vmem:[%s2055 + $0x20] sm:$0xff] %vm1993, %v1978
  %2058 = vst.msk [vmem:[%s2055 + $0x38] sm:$0xff] %vm1993, %v1979
  %2059 = vst.msk [vmem:[%s2055 + $0x50] sm:$0xff] %vm1993, %v1980
  %2060 = vst.msk [vmem:[%s2055 + $0x68] sm:$0xff] %vm1993, %v1981
  %2061 = vst.msk [vmem:[%s2055 + $0x80] sm:$0xff] %vm1993, %v1982
  %2062 = vst.msk [vmem:[%s2055 + $0x98] sm:$0xff] %vm1993, %v1983
  %2063 = vst.msk [vmem:[%s2055 + $0xb0] sm:$0xff] %vm1993, %v1984
  %2064 = vst.msk [vmem:[%s2055 + $0xf8] sm:$0xff] %vm1993, %v1985
  %2065 = vst.msk [vmem:[%s2055 + $0x110] sm:$0xff] %vm1993, %v1986
  %2066 = vst.msk [vmem:[%s2055 + $0x128] sm:$0xff] %vm1993, %v1987
  %2067 = vst.msk [vmem:[%s2055 + $0x140] sm:$0xff] %vm1993, %v1988
  %2068 = vst.msk [vmem:[%s2055 + $0x158] sm:$0xff] %vm1993, %v1989
  %2069 = vst.msk [vmem:[%s2055 + $0x170] sm:$0xff] %vm1993, %v1990
  %2070 = vst.msk [vmem:[%s2055 + $0x188] sm:$0xff] %vm1993, %v1991
  %2071 = vst.msk [vmem:[%s2055 + $0x1a0] sm:$0xff] %vm1993, %v1992
  %v2072 = vld [vmem:[%s3] sm:$0xff]
  %v2073 = vld [vmem:[%s3 + $0x8] sm:$0xff]
  %v2074 = vld [vmem:[%s3 + $0x10] sm:$0xff]
  %v2075 = vld [vmem:[%s3 + $0x18] sm:$0xff]
  %v2076 = vld [vmem:[%s3 + $0x20] sm:$0xff]
  %v2077 = vld [vmem:[%s3 + $0x28] sm:$0xff]
  %v2078 = vld [vmem:[%s3 + $0x30] sm:$0xff]
  %v2079 = vld [vmem:[%s3 + $0x38] sm:$0xff]
  %v2080 = vld [vmem:[%s3 + $0x40] sm:$0xff]
  %v2081 = vld [vmem:[%s3 + $0x48] sm:$0xff]
  %v2082 = vld [vmem:[%s3 + $0x50] sm:$0xff]
  %v2083 = vld [vmem:[%s3 + $0x58] sm:$0xff]
  %v2084 = vld [vmem:[%s3 + $0x60] sm:$0xff]
  %v2085 = vld [vmem:[%s3 + $0x68] sm:$0xff]
  %v2086 = vld [vmem:[%s3 + $0x70] sm:$0xff]
  %v2087 = vld [vmem:[%s3 + $0x78] sm:$0xff]
  %v2088 = vld [vmem:[%s3 + $0x80] sm:$0xff]
  %v2089 = vld [vmem:[%s3 + $0x88] sm:$0xff]
  %v2090 = vld [vmem:[%s4] sm:$0x1]
  %v2091 = vld [vmem:[#allocation3] sm:$0xff]
  %v2092 = vld [vmem:[#allocation3 + $0x8] sm:$0xff]
  %v2093 = vld [vmem:[#allocation3 + $0x10] sm:$0x1]
  %v2094 = vld [vmem:[#allocation3 + $0x18] sm:$0xff]
  %v2095 = vld [vmem:[#allocation3 + $0x20] sm:$0xff]
  %v2096 = vld [vmem:[#allocation3 + $0x28] sm:$0x1]
  %v2097 = vld [vmem:[#allocation3 + $0x30] sm:$0xff]
  %v2098 = vld [vmem:[#allocation3 + $0x38] sm:$0xff]
  %v2099 = vld [vmem:[#allocation3 + $0x40] sm:$0x1]
  %v2100 = vld [vmem:[#allocation3 + $0x48] sm:$0xff]
  %v2101 = vld [vmem:[#allocation3 + $0x50] sm:$0xff]
  %v2102 = vld [vmem:[#allocation3 + $0x58] sm:$0x1]
  %v2103 = vld [vmem:[#allocation3 + $0x60] sm:$0xff]
  %v2104 = vld [vmem:[#allocation3 + $0x68] sm:$0xff]
  %v2105 = vld [vmem:[#allocation3 + $0x70] sm:$0x1]
  %v2106 = vld [vmem:[#allocation3 + $0x78] sm:$0xff]
  %v2107 = vld [vmem:[#allocation3 + $0x80] sm:$0xff]
  %v2108 = vld [vmem:[#allocation3 + $0x88] sm:$0x1]
  %v2109 = vld [vmem:[#allocation3 + $0x90] sm:$0xff]
  %v2110 = vld [vmem:[#allocation3 + $0x98] sm:$0xff]
  %v2111 = vld [vmem:[#allocation3 + $0xa0] sm:$0x1]
  %v2112 = vld [vmem:[#allocation3 + $0xa8] sm:$0xff]
  %v2113 = vld [vmem:[#allocation3 + $0xb0] sm:$0xff]
  %v2114 = vld [vmem:[#allocation3 + $0xb8] sm:$0x1]
  %v2115 = vld [vmem:[#allocation3 + $0xc0] sm:$0xff]
  %v2116 = vld [vmem:[#allocation3 + $0xc8] sm:$0xff]
  %v2117 = vld [vmem:[#allocation3 + $0xd0] sm:$0x1]
  %v2118 = vld [vmem:[#allocation3 + $0xd8] sm:$0xff]
  %v2119 = vld [vmem:[#allocation3 + $0xe0] sm:$0xff]
  %v2120 = vld [vmem:[#allocation3 + $0xe8] sm:$0x1]
  %v2121 = vld [vmem:[#allocation3 + $0xf0] sm:$0xff]
  %v2122 = vld [vmem:[#allocation3 + $0xf8] sm:$0xff]
  %v2123 = vld [vmem:[#allocation3 + $0x100] sm:$0x1]
  %v2124 = vld [vmem:[#allocation3 + $0x108] sm:$0xff]
  %v2125 = vld [vmem:[#allocation3 + $0x110] sm:$0xff]
  %v2126 = vld [vmem:[#allocation3 + $0x118] sm:$0x1]
  %v2127 = vld [vmem:[#allocation3 + $0x120] sm:$0xff]
  %v2128 = vld [vmem:[#allocation3 + $0x128] sm:$0xff]
  %v2129 = vld [vmem:[#allocation3 + $0x130] sm:$0x1]
  %v2130 = vld [vmem:[#allocation3 + $0x138] sm:$0xff]
  %v2131 = vld [vmem:[#allocation3 + $0x140] sm:$0xff]
  %v2132 = vld [vmem:[#allocation3 + $0x148] sm:$0x1]
  %v2133 = vld [vmem:[#allocation3 + $0x150] sm:$0xff]
  %v2134 = vld [vmem:[#allocation3 + $0x158] sm:$0xff]
  %v2135 = vld [vmem:[#allocation3 + $0x160] sm:$0x1]
  %v2136 = vld [vmem:[#allocation3 + $0x168] sm:$0xff]
  %v2137 = vld [vmem:[#allocation3 + $0x170] sm:$0xff]
  %v2138 = vld [vmem:[#allocation3 + $0x178] sm:$0x1]
  %v2139 = vld [vmem:[#allocation3 + $0x180] sm:$0xff]
  %v2140 = vld [vmem:[#allocation3 + $0x188] sm:$0xff]
  %v2141 = vld [vmem:[#allocation3 + $0x190] sm:$0x1]
  %v2142 = vld [vmem:[#allocation3 + $0x198] sm:$0xff]
  %v2143 = vld [vmem:[#allocation3 + $0x1a0] sm:$0xff]
  %v2144 = vld [vmem:[#allocation3 + $0x1a8] sm:$0x1]
  %v2145 = vld [vmem:[#allocation3 + $0x1b0] sm:$0xff]
  %v2146 = vld [vmem:[#allocation3 + $0x1b8] sm:$0xff]
  %v2147 = vld [vmem:[#allocation3 + $0x1c0] sm:$0x1]
  %v2148 = vld [vmem:[#allocation3 + $0x1c8] sm:$0xff]
  %v2149 = vld [vmem:[#allocation3 + $0x1d0] sm:$0xff]
  %v2150 = vld [vmem:[#allocation3 + $0x1d8] sm:$0x1]
  %v2183 = vrot.slane %v2091, 7
  %v2184 = vrot.slane %v2092, 7
  %v2185 = vsel %vm240, %v2183, %v2184
  %v2186 = vrot.slane %v2094, 7
  %v2187 = vrot.slane %v2095, 7
  %v2188 = vsel %vm240, %v2186, %v2187
  %v2189 = vrot.slane %v2097, 7
  %v2190 = vrot.slane %v2098, 7
  %v2191 = vsel %vm240, %v2189, %v2190
  %v2192 = vrot.slane %v2100, 7
  %v2193 = vrot.slane %v2101, 7
  %v2194 = vsel %vm240, %v2192, %v2193
  %v2195 = vrot.slane %v2103, 7
  %v2196 = vrot.slane %v2104, 7
  %v2197 = vsel %vm240, %v2195, %v2196
  %v2198 = vrot.slane %v2106, 7
  %v2199 = vrot.slane %v2107, 7
  %v2200 = vsel %vm240, %v2198, %v2199
  %v2201 = vrot.slane %v2109, 7
  %v2202 = vrot.slane %v2110, 7
  %v2203 = vsel %vm240, %v2201, %v2202
  %v2204 = vrot.slane %v2112, 7
  %v2205 = vrot.slane %v2113, 7
  %v2206 = vsel %vm240, %v2204, %v2205
  %v2207 = vrot.slane %v2121, 7
  %v2208 = vrot.slane %v2122, 7
  %v2209 = vsel %vm240, %v2207, %v2208
  %v2210 = vrot.slane %v2124, 7
  %v2211 = vrot.slane %v2125, 7
  %v2212 = vsel %vm240, %v2210, %v2211
  %v2213 = vrot.slane %v2127, 7
  %v2214 = vrot.slane %v2128, 7
  %v2215 = vsel %vm240, %v2213, %v2214
  %v2216 = vrot.slane %v2130, 7
  %v2217 = vrot.slane %v2131, 7
  %v2218 = vsel %vm240, %v2216, %v2217
  %v2219 = vrot.slane %v2133, 7
  %v2220 = vrot.slane %v2134, 7
  %v2221 = vsel %vm240, %v2219, %v2220
  %v2222 = vrot.slane %v2136, 7
  %v2223 = vrot.slane %v2137, 7
  %v2224 = vsel %vm240, %v2222, %v2223
  %v2225 = vrot.slane %v2139, 7
  %v2226 = vrot.slane %v2140, 7
  %v2227 = vsel %vm240, %v2225, %v2226
  %v2228 = vrot.slane %v2142, 7
  %v2229 = vrot.slane %v2143, 7
  %v2230 = vsel %vm240, %v2228, %v2229
  %v2231 = vsel %vm1993, %v2092, 0
  %v2233 = vsel %vm1993, %v2095, 0
  %v2235 = vsel %vm1993, %v2098, 0
  %v2237 = vsel %vm1993, %v2101, 0
  %v2239 = vsel %vm1993, %v2104, 0
  %v2241 = vsel %vm1993, %v2107, 0
  %v2243 = vsel %vm1993, %v2110, 0
  %v2245 = vsel %vm1993, %v2113, 0
  %v2247 = vsel %vm1993, %v2122, 0
  %v2249 = vsel %vm1993, %v2125, 0
  %v2251 = vsel %vm1993, %v2128, 0
  %v2253 = vsel %vm1993, %v2131, 0
  %v2255 = vsel %vm1993, %v2134, 0
  %v2257 = vsel %vm1993, %v2137, 0
  %v2259 = vsel %vm1993, %v2140, 0
  %v2261 = vsel %vm1993, %v2143, 0
  %2263 = vmatprep.subr.mxu0 0.0
  %2264 = vmatpush1.msra.mxu0 %v2074
  %2265 = vmatprep.subr.mxu0 0.0
  %2266 = vmatpush1.msra.mxu0 %v2075
  %2267 = vmatprep.subr.mxu0 0.0
  %2268 = vmatpush1.msra.mxu0 0.0
  %2269 = vmatprep.subr.mxu0 0.0
  %2270 = vmatpush1.msra.mxu0 0.0
  %2271 = vmatprep.subr.mxu0 0.0
  %2272 = vmatpush1.msra.mxu0 0.0
  %2273 = vmatprep.subr.mxu0 0.0
  %2274 = vmatpush1.msra.mxu0 0.0
  %2275 = vmatprep.subr.mxu0 0.0
  %2276 = vmatpush1.msra.mxu0 0.0
  %2277 = vmatprep.subr.mxu0 0.0
  %2278 = vmatpush1.msra.mxu0 0.0
  %2279 = vmatprep.subr.mxu0 0.0
  %2280 = vmatpush1.msra.mxu0 0.0
  %2281 = vmatprep.subr.mxu0 0.0
  %2282 = vmatpush1.msra.mxu0 0.0
  %2283 = vmatprep.subr.mxu0 0.0
  %2284 = vmatpush1.msra.mxu0 0.0
  %2285 = vmatprep.subr.mxu0 0.0
  %2286 = vmatpush1.msra.mxu0 0.0
  %2287 = vmatprep.subr.mxu0 0.0
  %2288 = vmatpush1.msra.mxu0 0.0
  %2289 = vmatprep.subr.mxu0 0.0
  %2290 = vmatpush1.msra.mxu0 0.0
  %2291 = vmatprep.subr.mxu0 0.0
  %2292 = vmatpush1.msra.mxu0 0.0
  %2293 = vmatprep.subr.mxu0 0.0
  %2294 = vmatpush1.msra.mxu0 0.0
  %2295 = vmatprep.subr.mxu0 0.0
  %2296 = vmatpush1.msra.mxu0 0.0
  %2297 = vmatprep.subr.mxu0 0.0
  %2298 = vmatpush1.msra.mxu0 0.0
  %2299 = vmatprep.subr.mxu0 0.0
  %2300 = vmatpush1.msra.mxu0 0.0
  %2301 = vmatprep.subr.mxu0 0.0
  %2302 = vmatpush1.msra.mxu0 0.0
  %2303 = vmatprep.subr.mxu0 0.0
  %2304 = vmatpush1.msra.mxu0 0.0
  %2305 = vmatprep.subr.mxu0 0.0
  %2306 = vmatpush1.msra.mxu0 0.0
  %2307 = vmatprep.subr.mxu0 0.0
  %2308 = vmatpush1.msra.mxu0 0.0
  %2309 = vmatprep.subr.mxu0 0.0
  %2310 = vmatpush1.msra.mxu0 0.0
  %2311 = vmatprep.subr.mxu0 0.0
  %2312 = vmatpush1.msra.mxu0 0.0
  %2313 = vmatprep.subr.mxu0 0.0
  %2314 = vmatpush1.msra.mxu0 0.0
  %2315 = vmatprep.subr.mxu0 0.0
  %2316 = vmatpush1.msra.mxu0 0.0
  %2317 = vmatprep.subr.mxu0 0.0
  %2318 = vmatpush1.msra.mxu0 0.0
  %2319 = vmatprep.subr.mxu0 0.0
  %2320 = vmatpush1.msra.mxu0 0.0
  %2321 = vmatprep.subr.mxu0 0.0
  %2322 = vmatpush1.msra.mxu0 0.0
  %2323 = vmatprep.subr.mxu0 0.0
  %2324 = vmatpush1.msra.mxu0 0.0
  %2325 = vmatprep.subr.mxu0 0.0
  %2326 = vmatpush1.msra.mxu0 0.0
  %2327 = vmatprep.mubr.f32.mxu0 0.0
  %2328 = vmatmul.mubr.f32.gmra.mrb[0].mxu0 %v2231
  %v2329 = vpop.f32.mrb[0].mxu0
  %v2330 = vadd.f32 0.0, %v2329
  %v2331 = vpop.f32.mrb[0].mxu0
  %2332 = vmatprep.mubr.f32.mxu0 0.0
  %2333 = vmatmul.mubr.f32.gmra.mrb[0].mxu0 %v2233
  %v2334 = vpop.f32.mrb[0].mxu0
  %v2335 = vadd.f32 0.0, %v2334
  %v2336 = vpop.f32.mrb[0].mxu0
  %2337 = vmatprep.mubr.f32.mxu0 0.0
  %2338 = vmatmul.mubr.f32.gmra.mrb[0].mxu0 %v2235
  %v2339 = vpop.f32.mrb[0].mxu0
  %v2340 = vadd.f32 0.0, %v2339
  %v2341 = vpop.f32.mrb[0].mxu0
  %2342 = vmatprep.mubr.f32.mxu0 0.0
  %2343 = vmatmul.mubr.f32.gmra.mrb[0].mxu0 %v2237
  %v2344 = vpop.f32.mrb[0].mxu0
  %v2345 = vadd.f32 0.0, %v2344
  %v2346 = vpop.f32.mrb[0].mxu0
  %2347 = vmatprep.mubr.f32.mxu0 0.0
  %2348 = vmatmul.mubr.f32.gmra.mrb[0].mxu0 %v2239
  %v2349 = vpop.f32.mrb[0].mxu0
  %v2350 = vadd.f32 0.0, %v2349
  %v2351 = vpop.f32.mrb[0].mxu0
  %2352 = vmatprep.mubr.f32.mxu0 0.0
  %2353 = vmatmul.mubr.f32.gmra.mrb[0].mxu0 %v2241
  %v2354 = vpop.f32.mrb[0].mxu0
  %v2355 = vadd.f32 0.0, %v2354
  %v2356 = vpop.f32.mrb[0].mxu0
  %2357 = vmatprep.mubr.f32.mxu0 0.0
  %2358 = vmatmul.mubr.f32.gmra.mrb[0].mxu0 %v2243
  %v2359 = vpop.f32.mrb[0].mxu0
  %v2360 = vadd.f32 0.0, %v2359
  %v2361 = vpop.f32.mrb[0].mxu0
  %2362 = vmatprep.mubr.f32.mxu0 0.0
  %2363 = vmatmul.mubr.f32.gmra.mrb[0].mxu0 %v2245
  %v2364 = vpop.f32.mrb[0].mxu0
  %v2365 = vadd.f32 0.0, %v2364
  %v2366 = vpop.f32.mrb[0].mxu0
  %2367 = vmatprep.mubr.f32.mxu0 0.0
  %2368 = vmatmul.mubr.f32.gmra.mrb[0].mxu0 %v2247
  %v2369 = vpop.f32.mrb[0].mxu0
  %v2370 = vadd.f32 0.0, %v2369
  %v2371 = vpop.f32.mrb[0].mxu0
  %2372 = vmatprep.mubr.f32.mxu0 0.0
  %2373 = vmatmul.mubr.f32.gmra.mrb[0].mxu0 %v2249
  %v2374 = vpop.f32.mrb[0].mxu0
  %v2375 = vadd.f32 0.0, %v2374
  %v2376 = vpop.f32.mrb[0].mxu0
  %2377 = vmatprep.mubr.f32.mxu0 0.0
  %2378 = vmatmul.mubr.f32.gmra.mrb[0].mxu0 %v2251
  %v2379 = vpop.f32.mrb[0].mxu0
  %v2380 = vadd.f32 0.0, %v2379
  %v2381 = vpop.f32.mrb[0].mxu0
  %2382 = vmatprep.mubr.f32.mxu0 0.0
  %2383 = vmatmul.mubr.f32.gmra.mrb[0].mxu0 %v2253
  %v2384 = vpop.f32.mrb[0].mxu0
  %v2385 = vadd.f32 0.0, %v2384
  %v2386 = vpop.f32.mrb[0].mxu0
  %2387 = vmatprep.mubr.f32.mxu0 0.0
  %2388 = vmatmul.mubr.f32.gmra.mrb[0].mxu0 %v2255
  %v2389 = vpop.f32.mrb[0].mxu0
  %v2390 = vadd.f32 0.0, %v2389
  %v2391 = vpop.f32.mrb[0].mxu0
  %2392 = vmatprep.mubr.f32.mxu0 0.0
  %2393 = vmatmul.mubr.f32.gmra.mrb[0].mxu0 %v2257
  %v2394 = vpop.f32.mrb[0].mxu0
  %v2395 = vadd.f32 0.0, %v2394
  %v2396 = vpop.f32.mrb[0].mxu0
  %2397 = vmatprep.mubr.f32.mxu0 0.0
  %2398 = vmatmul.mubr.f32.gmra.mrb[0].mxu0 %v2259
  %v2399 = vpop.f32.mrb[0].mxu0
  %v2400 = vadd.f32 0.0, %v2399
  %v2401 = vpop.f32.mrb[0].mxu0
  %2402 = vmatprep.mubr.f32.mxu0 0.0
  %2403 = vmatmul.mubr.f32.gmra.mrb[0].mxu0 %v2261
  %v2404 = vpop.f32.mrb[0].mxu0
  %v2405 = vadd.f32 0.0, %v2404
  %v2406 = vpop.f32.mrb[0].mxu0
  %2407 = vdwg.mxu0
  %v2408 = vsel %vm1993, %v2185, 0
  %v2410 = vsel %vm1993, %v2188, 0
  %v2412 = vsel %vm1993, %v2191, 0
  %v2414 = vsel %vm1993, %v2194, 0
  %v2416 = vsel %vm1993, %v2197, 0
  %v2418 = vsel %vm1993, %v2200, 0
  %v2420 = vsel %vm1993, %v2203, 0
  %v2422 = vsel %vm1993, %v2206, 0
  %v2424 = vsel %vm1993, %v2209, 0
  %v2426 = vsel %vm1993, %v2212, 0
  %v2428 = vsel %vm1993, %v2215, 0
  %v2430 = vsel %vm1993, %v2218, 0
  %v2432 = vsel %vm1993, %v2221, 0
  %v2434 = vsel %vm1993, %v2224, 0
  %v2436 = vsel %vm1993, %v2227, 0
  %v2438 = vsel %vm1993, %v2230, 0
  %2440 = vmatprep.subr.mxu0 0.0
  %2441 = vmatpush1.msra.mxu0 %v2072
  %2442 = vmatprep.subr.mxu0 0.0
  %2443 = vmatpush1.msra.mxu0 %v2073
  %2444 = vmatprep.subr.mxu0 0.0
  %2445 = vmatpush1.msra.mxu0 0.0
  %2446 = vmatprep.subr.mxu0 0.0
  %2447 = vmatpush1.msra.mxu0 0.0
  %2448 = vmatprep.subr.mxu0 0.0
  %2449 = vmatpush1.msra.mxu0 0.0
  %2450 = vmatprep.subr.mxu0 0.0
  %2451 = vmatpush1.msra.mxu0 0.0
  %2452 = vmatprep.subr.mxu0 0.0
  %2453 = vmatpush1.msra.mxu0 0.0
  %2454 = vmatprep.subr.mxu0 0.0
  %2455 = vmatpush1.msra.mxu0 0.0
  %2456 = vmatprep.subr.mxu0 0.0
  %2457 = vmatpush1.msra.mxu0 0.0
  %2458 = vmatprep.subr.mxu0 0.0
  %2459 = vmatpush1.msra.mxu0 0.0
  %2460 = vmatprep.subr.mxu0 0.0
  %2461 = vmatpush1.msra.mxu0 0.0
  %2462 = vmatprep.subr.mxu0 0.0
  %2463 = vmatpush1.msra.mxu0 0.0
  %2464 = vmatprep.subr.mxu0 0.0
  %2465 = vmatpush1.msra.mxu0 0.0
  %2466 = vmatprep.subr.mxu0 0.0
  %2467 = vmatpush1.msra.mxu0 0.0
  %2468 = vmatprep.subr.mxu0 0.0
  %2469 = vmatpush1.msra.mxu0 0.0
  %2470 = vmatprep.subr.mxu0 0.0
  %2471 = vmatpush1.msra.mxu0 0.0
  %2472 = vmatprep.subr.mxu0 0.0
  %2473 = vmatpush1.msra.mxu0 0.0
  %2474 = vmatprep.subr.mxu0 0.0
  %2475 = vmatpush1.msra.mxu0 0.0
  %2476 = vmatprep.subr.mxu0 0.0
  %2477 = vmatpush1.msra.mxu0 0.0
  %2478 = vmatprep.subr.mxu0 0.0
  %2479 = vmatpush1.msra.mxu0 0.0
  %2480 = vmatprep.subr.mxu0 0.0
  %2481 = vmatpush1.msra.mxu0 0.0
  %2482 = vmatprep.subr.mxu0 0.0
  %2483 = vmatpush1.msra.mxu0 0.0
  %2484 = vmatprep.subr.mxu0 0.0
  %2485 = vmatpush1.msra.mxu0 0.0
  %2486 = vmatprep.subr.mxu0 0.0
  %2487 = vmatpush1.msra.mxu0 0.0
  %2488 = vmatprep.subr.mxu0 0.0
  %2489 = vmatpush1.msra.mxu0 0.0
  %2490 = vmatprep.subr.mxu0 0.0
  %2491 = vmatpush1.msra.mxu0 0.0
  %2492 = vmatprep.subr.mxu0 0.0
  %2493 = vmatpush1.msra.mxu0 0.0
  %2494 = vmatprep.subr.mxu0 0.0
  %2495 = vmatpush1.msra.mxu0 0.0
  %2496 = vmatprep.subr.mxu0 0.0
  %2497 = vmatpush1.msra.mxu0 0.0
  %2498 = vmatprep.subr.mxu0 0.0
  %2499 = vmatpush1.msra.mxu0 0.0
  %2500 = vmatprep.subr.mxu0 0.0
  %2501 = vmatpush1.msra.mxu0 0.0
  %2502 = vmatprep.subr.mxu0 0.0
  %2503 = vmatpush1.msra.mxu0 0.0
  %2504 = vmatprep.mubr.f32.mxu0 0.0
  %2505 = vmatmul.mubr.f32.gmra.mrb[0].mxu0 %v2408
  %v2506 = vpop.f32.mrb[0].mxu0
  %v2507 = vadd.f32 %v2330, %v2506
  %v2508 = vpop.f32.mrb[0].mxu0
  %2509 = vmatprep.mubr.f32.mxu0 0.0
  %2510 = vmatmul.mubr.f32.gmra.mrb[0].mxu0 %v2410
  %v2511 = vpop.f32.mrb[0].mxu0
  %v2512 = vadd.f32 %v2335, %v2511
  %v2513 = vpop.f32.mrb[0].mxu0
  %2514 = vmatprep.mubr.f32.mxu0 0.0
  %2515 = vmatmul.mubr.f32.gmra.mrb[0].mxu0 %v2412
  %v2516 = vpop.f32.mrb[0].mxu0
  %v2517 = vadd.f32 %v2340, %v2516
  %v2518 = vpop.f32.mrb[0].mxu0
  %2519 = vmatprep.mubr.f32.mxu0 0.0
  %2520 = vmatmul.mubr.f32.gmra.mrb[0].mxu0 %v2414
  %v2521 = vpop.f32.mrb[0].mxu0
  %v2522 = vadd.f32 %v2345, %v2521
  %v2523 = vpop.f32.mrb[0].mxu0
  %2524 = vmatprep.mubr.f32.mxu0 0.0
  %2525 = vmatmul.mubr.f32.gmra.mrb[0].mxu0 %v2416
  %v2526 = vpop.f32.mrb[0].mxu0
  %v2527 = vadd.f32 %v2350, %v2526
  %v2528 = vpop.f32.mrb[0].mxu0
  %2529 = vmatprep.mubr.f32.mxu0 0.0
  %2530 = vmatmul.mubr.f32.gmra.mrb[0].mxu0 %v2418
  %v2531 = vpop.f32.mrb[0].mxu0
  %v2532 = vadd.f32 %v2355, %v2531
  %v2533 = vpop.f32.mrb[0].mxu0
  %2534 = vmatprep.mubr.f32.mxu0 0.0
  %2535 = vmatmul.mubr.f32.gmra.mrb[0].mxu0 %v2420
  %v2536 = vpop.f32.mrb[0].mxu0
  %v2537 = vadd.f32 %v2360, %v2536
  %v2538 = vpop.f32.mrb[0].mxu0
  %2539 = vmatprep.mubr.f32.mxu0 0.0
  %2540 = vmatmul.mubr.f32.gmra.mrb[0].mxu0 %v2422
  %v2541 = vpop.f32.mrb[0].mxu0
  %v2542 = vadd.f32 %v2365, %v2541
  %v2543 = vpop.f32.mrb[0].mxu0
  %2544 = vmatprep.mubr.f32.mxu0 0.0
  %2545 = vmatmul.mubr.f32.gmra.mrb[0].mxu0 %v2424
  %v2546 = vpop.f32.mrb[0].mxu0
  %v2547 = vadd.f32 %v2370, %v2546
  %v2548 = vpop.f32.mrb[0].mxu0
  %2549 = vmatprep.mubr.f32.mxu0 0.0
  %2550 = vmatmul.mubr.f32.gmra.mrb[0].mxu0 %v2426
  %v2551 = vpop.f32.mrb[0].mxu0
  %v2552 = vadd.f32 %v2375, %v2551
  %v2553 = vpop.f32.mrb[0].mxu0
  %2554 = vmatprep.mubr.f32.mxu0 0.0
  %2555 = vmatmul.mubr.f32.gmra.mrb[0].mxu0 %v2428
  %v2556 = vpop.f32.mrb[0].mxu0
  %v2557 = vadd.f32 %v2380, %v2556
  %v2558 = vpop.f32.mrb[0].mxu0
  %2559 = vmatprep.mubr.f32.mxu0 0.0
  %2560 = vmatmul.mubr.f32.gmra.mrb[0].mxu0 %v2430
  %v2561 = vpop.f32.mrb[0].mxu0
  %v2562 = vadd.f32 %v2385, %v2561
  %v2563 = vpop.f32.mrb[0].mxu0
  %2564 = vmatprep.mubr.f32.mxu0 0.0
  %2565 = vmatmul.mubr.f32.gmra.mrb[0].mxu0 %v2432
  %v2566 = vpop.f32.mrb[0].mxu0
  %v2567 = vadd.f32 %v2390, %v2566
  %v2568 = vpop.f32.mrb[0].mxu0
  %2569 = vmatprep.mubr.f32.mxu0 0.0
  %2570 = vmatmul.mubr.f32.gmra.mrb[0].mxu0 %v2434
  %v2571 = vpop.f32.mrb[0].mxu0
  %v2572 = vadd.f32 %v2395, %v2571
  %v2573 = vpop.f32.mrb[0].mxu0
  %2574 = vmatprep.mubr.f32.mxu0 0.0
  %2575 = vmatmul.mubr.f32.gmra.mrb[0].mxu0 %v2436
  %v2576 = vpop.f32.mrb[0].mxu0
  %v2577 = vadd.f32 %v2400, %v2576
  %v2578 = vpop.f32.mrb[0].mxu0
  %2579 = vmatprep.mubr.f32.mxu0 0.0
  %2580 = vmatmul.mubr.f32.gmra.mrb[0].mxu0 %v2438
  %v2581 = vpop.f32.mrb[0].mxu0
  %v2582 = vadd.f32 %v2405, %v2581
  %v2583 = vpop.f32.mrb[0].mxu0
  %2584 = vdwg.mxu0
  %v2601 = vrot.slane %v2092, 1
  %v2602 = vrot.slane %v2093, 1
  %v2603 = vsel %vm666, %v2601, %v2602
  %v2604 = vrot.slane %v2095, 1
  %v2605 = vrot.slane %v2096, 1
  %v2606 = vsel %vm666, %v2604, %v2605
  %v2607 = vrot.slane %v2098, 1
  %v2608 = vrot.slane %v2099, 1
  %v2609 = vsel %vm666, %v2607, %v2608
  %v2610 = vrot.slane %v2101, 1
  %v2611 = vrot.slane %v2102, 1
  %v2612 = vsel %vm666, %v2610, %v2611
  %v2613 = vrot.slane %v2104, 1
  %v2614 = vrot.slane %v2105, 1
  %v2615 = vsel %vm666, %v2613, %v2614
  %v2616 = vrot.slane %v2107, 1
  %v2617 = vrot.slane %v2108, 1
  %v2618 = vsel %vm666, %v2616, %v2617
  %v2619 = vrot.slane %v2110, 1
  %v2620 = vrot.slane %v2111, 1
  %v2621 = vsel %vm666, %v2619, %v2620
  %v2622 = vrot.slane %v2113, 1
  %v2623 = vrot.slane %v2114, 1
  %v2624 = vsel %vm666, %v2622, %v2623
  %v2625 = vrot.slane %v2122, 1
  %v2626 = vrot.slane %v2123, 1
  %v2627 = vsel %vm666, %v2625, %v2626
  %v2628 = vrot.slane %v2125, 1
  %v2629 = vrot.slane %v2126, 1
  %v2630 = vsel %vm666, %v2628, %v2629
  %v2631 = vrot.slane %v2128, 1
  %v2632 = vrot.slane %v2129, 1
  %v2633 = vsel %vm666, %v2631, %v2632
  %v2634 = vrot.slane %v2131, 1
  %v2635 = vrot.slane %v2132, 1
  %v2636 = vsel %vm666, %v2634, %v2635
  %v2637 = vrot.slane %v2134, 1
  %v2638 = vrot.slane %v2135, 1
  %v2639 = vsel %vm666, %v2637, %v2638
  %v2640 = vrot.slane %v2137, 1
  %v2641 = vrot.slane %v2138, 1
  %v2642 = vsel %vm666, %v2640, %v2641
  %v2643 = vrot.slane %v2140, 1
  %v2644 = vrot.slane %v2141, 1
  %v2645 = vsel %vm666, %v2643, %v2644
  %v2646 = vrot.slane %v2143, 1
  %v2647 = vrot.slane %v2144, 1
  %v2648 = vsel %vm666, %v2646, %v2647
  %v2649 = vsel %vm1993, %v2603, 0
  %v2651 = vsel %vm1993, %v2606, 0
  %v2653 = vsel %vm1993, %v2609, 0
  %v2655 = vsel %vm1993, %v2612, 0
  %v2657 = vsel %vm1993, %v2615, 0
  %v2659 = vsel %vm1993, %v2618, 0
  %v2661 = vsel %vm1993, %v2621, 0
  %v2663 = vsel %vm1993, %v2624, 0
  %v2665 = vsel %vm1993, %v2627, 0
  %v2667 = vsel %vm1993, %v2630, 0
  %v2669 = vsel %vm1993, %v2633, 0
  %v2671 = vsel %vm1993, %v2636, 0
  %v2673 = vsel %vm1993, %v2639, 0
  %v2675 = vsel %vm1993, %v2642, 0
  %v2677 = vsel %vm1993, %v2645, 0
  %v2679 = vsel %vm1993, %v2648, 0
  %2681 = vmatprep.subr.mxu0 0.0
  %2682 = vmatpush1.msra.mxu0 %v2076
  %2683 = vmatprep.subr.mxu0 0.0
  %2684 = vmatpush1.msra.mxu0 %v2077
  %2685 = vmatprep.subr.mxu0 0.0
  %2686 = vmatpush1.msra.mxu0 0.0
  %2687 = vmatprep.subr.mxu0 0.0
  %2688 = vmatpush1.msra.mxu0 0.0
  %2689 = vmatprep.subr.mxu0 0.0
  %2690 = vmatpush1.msra.mxu0 0.0
  %2691 = vmatprep.subr.mxu0 0.0
  %2692 = vmatpush1.msra.mxu0 0.0
  %2693 = vmatprep.subr.mxu0 0.0
  %2694 = vmatpush1.msra.mxu0 0.0
  %2695 = vmatprep.subr.mxu0 0.0
  %2696 = vmatpush1.msra.mxu0 0.0
  %2697 = vmatprep.subr.mxu0 0.0
  %2698 = vmatpush1.msra.mxu0 0.0
  %2699 = vmatprep.subr.mxu0 0.0
  %2700 = vmatpush1.msra.mxu0 0.0
  %2701 = vmatprep.subr.mxu0 0.0
  %2702 = vmatpush1.msra.mxu0 0.0
  %2703 = vmatprep.subr.mxu0 0.0
  %2704 = vmatpush1.msra.mxu0 0.0
  %2705 = vmatprep.subr.mxu0 0.0
  %2706 = vmatpush1.msra.mxu0 0.0
  %2707 = vmatprep.subr.mxu0 0.0
  %2708 = vmatpush1.msra.mxu0 0.0
  %2709 = vmatprep.subr.mxu0 0.0
  %2710 = vmatpush1.msra.mxu0 0.0
  %2711 = vmatprep.subr.mxu0 0.0
  %2712 = vmatpush1.msra.mxu0 0.0
  %2713 = vmatprep.subr.mxu0 0.0
  %2714 = vmatpush1.msra.mxu0 0.0
  %2715 = vmatprep.subr.mxu0 0.0
  %2716 = vmatpush1.msra.mxu0 0.0
  %2717 = vmatprep.subr.mxu0 0.0
  %2718 = vmatpush1.msra.mxu0 0.0
  %2719 = vmatprep.subr.mxu0 0.0
  %2720 = vmatpush1.msra.mxu0 0.0
  %2721 = vmatprep.subr.mxu0 0.0
  %2722 = vmatpush1.msra.mxu0 0.0
  %2723 = vmatprep.subr.mxu0 0.0
  %2724 = vmatpush1.msra.mxu0 0.0
  %2725 = vmatprep.subr.mxu0 0.0
  %2726 = vmatpush1.msra.mxu0 0.0
  %2727 = vmatprep.subr.mxu0 0.0
  %2728 = vmatpush1.msra.mxu0 0.0
  %2729 = vmatprep.subr.mxu0 0.0
  %2730 = vmatpush1.msra.mxu0 0.0
  %2731 = vmatprep.subr.mxu0 0.0
  %2732 = vmatpush1.msra.mxu0 0.0
  %2733 = vmatprep.subr.mxu0 0.0
  %2734 = vmatpush1.msra.mxu0 0.0
  %2735 = vmatprep.subr.mxu0 0.0
  %2736 = vmatpush1.msra.mxu0 0.0
  %2737 = vmatprep.subr.mxu0 0.0
  %2738 = vmatpush1.msra.mxu0 0.0
  %2739 = vmatprep.subr.mxu0 0.0
  %2740 = vmatpush1.msra.mxu0 0.0
  %2741 = vmatprep.subr.mxu0 0.0
  %2742 = vmatpush1.msra.mxu0 0.0
  %2743 = vmatprep.subr.mxu0 0.0
  %2744 = vmatpush1.msra.mxu0 0.0
  %2745 = vmatprep.mubr.f32.mxu0 0.0
  %2746 = vmatmul.mubr.f32.gmra.mrb[0].mxu0 %v2649
  %v2747 = vpop.f32.mrb[0].mxu0
  %v2748 = vadd.f32 0.0, %v2747
  %v2749 = vpop.f32.mrb[0].mxu0
  %2750 = vmatprep.mubr.f32.mxu0 0.0
  %2751 = vmatmul.mubr.f32.gmra.mrb[0].mxu0 %v2651
  %v2752 = vpop.f32.mrb[0].mxu0
  %v2753 = vadd.f32 0.0, %v2752
  %v2754 = vpop.f32.mrb[0].mxu0
  %2755 = vmatprep.mubr.f32.mxu0 0.0
  %2756 = vmatmul.mubr.f32.gmra.mrb[0].mxu0 %v2653
  %v2757 = vpop.f32.mrb[0].mxu0
  %v2758 = vadd.f32 0.0, %v2757
  %v2759 = vpop.f32.mrb[0].mxu0
  %2760 = vmatprep.mubr.f32.mxu0 0.0
  %2761 = vmatmul.mubr.f32.gmra.mrb[0].mxu0 %v2655
  %v2762 = vpop.f32.mrb[0].mxu0
  %v2763 = vadd.f32 0.0, %v2762
  %v2764 = vpop.f32.mrb[0].mxu0
  %2765 = vmatprep.mubr.f32.mxu0 0.0
  %2766 = vmatmul.mubr.f32.gmra.mrb[0].mxu0 %v2657
  %v2767 = vpop.f32.mrb[0].mxu0
  %v2768 = vadd.f32 0.0, %v2767
  %v2769 = vpop.f32.mrb[0].mxu0
  %2770 = vmatprep.mubr.f32.mxu0 0.0
  %2771 = vmatmul.mubr.f32.gmra.mrb[0].mxu0 %v2659
  %v2772 = vpop.f32.mrb[0].mxu0
  %v2773 = vadd.f32 0.0, %v2772
  %v2774 = vpop.f32.mrb[0].mxu0
  %2775 = vmatprep.mubr.f32.mxu0 0.0
  %2776 = vmatmul.mubr.f32.gmra.mrb[0].mxu0 %v2661
  %v2777 = vpop.f32.mrb[0].mxu0
  %v2778 = vadd.f32 0.0, %v2777
  %v2779 = vpop.f32.mrb[0].mxu0
  %2780 = vmatprep.mubr.f32.mxu0 0.0
  %2781 = vmatmul.mubr.f32.gmra.mrb[0].mxu0 %v2663
  %v2782 = vpop.f32.mrb[0].mxu0
  %v2783 = vadd.f32 0.0, %v2782
  %v2784 = vpop.f32.mrb[0].mxu0
  %2785 = vmatprep.mubr.f32.mxu0 0.0
  %2786 = vmatmul.mubr.f32.gmra.mrb[0].mxu0 %v2665
  %v2787 = vpop.f32.mrb[0].mxu0
  %v2788 = vadd.f32 0.0, %v2787
  %v2789 = vpop.f32.mrb[0].mxu0
  %2790 = vmatprep.mubr.f32.mxu0 0.0
  %2791 = vmatmul.mubr.f32.gmra.mrb[0].mxu0 %v2667
  %v2792 = vpop.f32.mrb[0].mxu0
  %v2793 = vadd.f32 0.0, %v2792
  %v2794 = vpop.f32.mrb[0].mxu0
  %2795 = vmatprep.mubr.f32.mxu0 0.0
  %2796 = vmatmul.mubr.f32.gmra.mrb[0].mxu0 %v2669
  %v2797 = vpop.f32.mrb[0].mxu0
  %v2798 = vadd.f32 0.0, %v2797
  %v2799 = vpop.f32.mrb[0].mxu0
  %2800 = vmatprep.mubr.f32.mxu0 0.0
  %2801 = vmatmul.mubr.f32.gmra.mrb[0].mxu0 %v2671
  %v2802 = vpop.f32.mrb[0].mxu0
  %v2803 = vadd.f32 0.0, %v2802
  %v2804 = vpop.f32.mrb[0].mxu0
  %2805 = vmatprep.mubr.f32.mxu0 0.0
  %2806 = vmatmul.mubr.f32.gmra.mrb[0].mxu0 %v2673
  %v2807 = vpop.f32.mrb[0].mxu0
  %v2808 = vadd.f32 0.0, %v2807
  %v2809 = vpop.f32.mrb[0].mxu0
  %2810 = vmatprep.mubr.f32.mxu0 0.0
  %2811 = vmatmul.mubr.f32.gmra.mrb[0].mxu0 %v2675
  %v2812 = vpop.f32.mrb[0].mxu0
  %v2813 = vadd.f32 0.0, %v2812
  %v2814 = vpop.f32.mrb[0].mxu0
  %2815 = vmatprep.mubr.f32.mxu0 0.0
  %2816 = vmatmul.mubr.f32.gmra.mrb[0].mxu0 %v2677
  %v2817 = vpop.f32.mrb[0].mxu0
  %v2818 = vadd.f32 0.0, %v2817
  %v2819 = vpop.f32.mrb[0].mxu0
  %2820 = vmatprep.mubr.f32.mxu0 0.0
  %2821 = vmatmul.mubr.f32.gmra.mrb[0].mxu0 %v2679
  %v2822 = vpop.f32.mrb[0].mxu0
  %v2823 = vadd.f32 0.0, %v2822
  %v2824 = vpop.f32.mrb[0].mxu0
  %2825 = vdwg.mxu0
  %v2826 = vadd.f32 %v2507, %v2748
  %v2827 = vadd.f32 %v2512, %v2753
  %v2828 = vadd.f32 %v2517, %v2758
  %v2829 = vadd.f32 %v2522, %v2763
  %v2830 = vadd.f32 %v2527, %v2768
  %v2831 = vadd.f32 %v2532, %v2773
  %v2832 = vadd.f32 %v2537, %v2778
  %v2833 = vadd.f32 %v2542, %v2783
  %v2834 = vadd.f32 %v2547, %v2788
  %v2835 = vadd.f32 %v2552, %v2793
  %v2836 = vadd.f32 %v2557, %v2798
  %v2837 = vadd.f32 %v2562, %v2803
  %v2838 = vadd.f32 %v2567, %v2808
  %v2839 = vadd.f32 %v2572, %v2813
  %v2840 = vadd.f32 %v2577, %v2818
  %v2841 = vadd.f32 %v2582, %v2823
  %v2846 = vrot.slane %v2115, 7
  %v2847 = vrot.slane %v2116, 7
  %v2848 = vsel %vm240, %v2846, %v2847
  %v2849 = vrot.slane %v2145, 7
  %v2850 = vrot.slane %v2146, 7
  %v2851 = vsel %vm240, %v2849, %v2850
  %v2852 = vsel %vm1993, %v2848, 0
  %v2854 = vsel %vm1993, %v2851, 0
  %2856 = vmatprep.subr.mxu0 0.0
  %2857 = vmatpush1.msra.mxu0 %v2078
  %2858 = vmatprep.subr.mxu0 0.0
  %2859 = vmatpush1.msra.mxu0 %v2079
  %2860 = vmatprep.subr.mxu0 0.0
  %2861 = vmatpush1.msra.mxu0 0.0
  %2862 = vmatprep.subr.mxu0 0.0
  %2863 = vmatpush1.msra.mxu0 0.0
  %2864 = vmatprep.subr.mxu0 0.0
  %2865 = vmatpush1.msra.mxu0 0.0
  %2866 = vmatprep.subr.mxu0 0.0
  %2867 = vmatpush1.msra.mxu0 0.0
  %2868 = vmatprep.subr.mxu0 0.0
  %2869 = vmatpush1.msra.mxu0 0.0
  %2870 = vmatprep.subr.mxu0 0.0
  %2871 = vmatpush1.msra.mxu0 0.0
  %2872 = vmatprep.subr.mxu0 0.0
  %2873 = vmatpush1.msra.mxu0 0.0
  %2874 = vmatprep.subr.mxu0 0.0
  %2875 = vmatpush1.msra.mxu0 0.0
  %2876 = vmatprep.subr.mxu0 0.0
  %2877 = vmatpush1.msra.mxu0 0.0
  %2878 = vmatprep.subr.mxu0 0.0
  %2879 = vmatpush1.msra.mxu0 0.0
  %2880 = vmatprep.subr.mxu0 0.0
  %2881 = vmatpush1.msra.mxu0 0.0
  %2882 = vmatprep.subr.mxu0 0.0
  %2883 = vmatpush1.msra.mxu0 0.0
  %2884 = vmatprep.subr.mxu0 0.0
  %2885 = vmatpush1.msra.mxu0 0.0
  %2886 = vmatprep.subr.mxu0 0.0
  %2887 = vmatpush1.msra.mxu0 0.0
  %2888 = vmatprep.subr.mxu0 0.0
  %2889 = vmatpush1.msra.mxu0 0.0
  %2890 = vmatprep.subr.mxu0 0.0
  %2891 = vmatpush1.msra.mxu0 0.0
  %2892 = vmatprep.subr.mxu0 0.0
  %2893 = vmatpush1.msra.mxu0 0.0
  %2894 = vmatprep.subr.mxu0 0.0
  %2895 = vmatpush1.msra.mxu0 0.0
  %2896 = vmatprep.subr.mxu0 0.0
  %2897 = vmatpush1.msra.mxu0 0.0
  %2898 = vmatprep.subr.mxu0 0.0
  %2899 = vmatpush1.msra.mxu0 0.0
  %2900 = vmatprep.subr.mxu0 0.0
  %2901 = vmatpush1.msra.mxu0 0.0
  %2902 = vmatprep.subr.mxu0 0.0
  %2903 = vmatpush1.msra.mxu0 0.0
  %2904 = vmatprep.subr.mxu0 0.0
  %2905 = vmatpush1.msra.mxu0 0.0
  %2906 = vmatprep.subr.mxu0 0.0
  %2907 = vmatpush1.msra.mxu0 0.0
  %2908 = vmatprep.subr.mxu0 0.0
  %2909 = vmatpush1.msra.mxu0 0.0
  %2910 = vmatprep.subr.mxu0 0.0
  %2911 = vmatpush1.msra.mxu0 0.0
  %2912 = vmatprep.subr.mxu0 0.0
  %2913 = vmatpush1.msra.mxu0 0.0
  %2914 = vmatprep.subr.mxu0 0.0
  %2915 = vmatpush1.msra.mxu0 0.0
  %2916 = vmatprep.subr.mxu0 0.0
  %2917 = vmatpush1.msra.mxu0 0.0
  %2918 = vmatprep.subr.mxu0 0.0
  %2919 = vmatpush1.msra.mxu0 0.0
  %2920 = vmatprep.mubr.f32.mxu0 0.0
  %2921 = vmatmul.mubr.f32.gmra.mrb[0].mxu0 %v2410
  %v2922 = vpop.f32.mrb[0].mxu0
  %v2923 = vadd.f32 0.0, %v2922
  %v2924 = vpop.f32.mrb[0].mxu0
  %2925 = vmatprep.mubr.f32.mxu0 0.0
  %2926 = vmatmul.mubr.f32.gmra.mrb[0].mxu0 %v2412
  %v2927 = vpop.f32.mrb[0].mxu0
  %v2928 = vadd.f32 0.0, %v2927
  %v2929 = vpop.f32.mrb[0].mxu0
  %2930 = vmatprep.mubr.f32.mxu0 0.0
  %2931 = vmatmul.mubr.f32.gmra.mrb[0].mxu0 %v2414
  %v2932 = vpop.f32.mrb[0].mxu0
  %v2933 = vadd.f32 0.0, %v2932
  %v2934 = vpop.f32.mrb[0].mxu0
  %2935 = vmatprep.mubr.f32.mxu0 0.0
  %2936 = vmatmul.mubr.f32.gmra.mrb[0].mxu0 %v2416
  %v2937 = vpop.f32.mrb[0].mxu0
  %v2938 = vadd.f32 0.0, %v2937
  %v2939 = vpop.f32.mrb[0].mxu0
  %2940 = vmatprep.mubr.f32.mxu0 0.0
  %2941 = vmatmul.mubr.f32.gmra.mrb[0].mxu0 %v2418
  %v2942 = vpop.f32.mrb[0].mxu0
  %v2943 = vadd.f32 0.0, %v2942
  %v2944 = vpop.f32.mrb[0].mxu0
  %2945 = vmatprep.mubr.f32.mxu0 0.0
  %2946 = vmatmul.mubr.f32.gmra.mrb[0].mxu0 %v2420
  %v2947 = vpop.f32.mrb[0].mxu0
  %v2948 = vadd.f32 0.0, %v2947
  %v2949 = vpop.f32.mrb[0].mxu0
  %2950 = vmatprep.mubr.f32.mxu0 0.0
  %2951 = vmatmul.mubr.f32.gmra.mrb[0].mxu0 %v2422
  %v2952 = vpop.f32.mrb[0].mxu0
  %v2953 = vadd.f32 0.0, %v2952
  %v2954 = vpop.f32.mrb[0].mxu0
  %2955 = vmatprep.mubr.f32.mxu0 0.0
  %2956 = vmatmul.mubr.f32.gmra.mrb[0].mxu0 %v2852
  %v2957 = vpop.f32.mrb[0].mxu0
  %v2958 = vadd.f32 0.0, %v2957
  %v2959 = vpop.f32.mrb[0].mxu0
  %2960 = vmatprep.mubr.f32.mxu0 0.0
  %2961 = vmatmul.mubr.f32.gmra.mrb[0].mxu0 %v2426
  %v2962 = vpop.f32.mrb[0].mxu0
  %v2963 = vadd.f32 0.0, %v2962
  %v2964 = vpop.f32.mrb[0].mxu0
  %2965 = vmatprep.mubr.f32.mxu0 0.0
  %2966 = vmatmul.mubr.f32.gmra.mrb[0].mxu0 %v2428
  %v2967 = vpop.f32.mrb[0].mxu0
  %v2968 = vadd.f32 0.0, %v2967
  %v2969 = vpop.f32.mrb[0].mxu0
  %2970 = vmatprep.mubr.f32.mxu0 0.0
  %2971 = vmatmul.mubr.f32.gmra.mrb[0].mxu0 %v2430
  %v2972 = vpop.f32.mrb[0].mxu0
  %v2973 = vadd.f32 0.0, %v2972
  %v2974 = vpop.f32.mrb[0].mxu0
  %2975 = vmatprep.mubr.f32.mxu0 0.0
  %2976 = vmatmul.mubr.f32.gmra.mrb[0].mxu0 %v2432
  %v2977 = vpop.f32.mrb[0].mxu0
  %v2978 = vadd.f32 0.0, %v2977
  %v2979 = vpop.f32.mrb[0].mxu0
  %2980 = vmatprep.mubr.f32.mxu0 0.0
  %2981 = vmatmul.mubr.f32.gmra.mrb[0].mxu0 %v2434
  %v2982 = vpop.f32.mrb[0].mxu0
  %v2983 = vadd.f32 0.0, %v2982
  %v2984 = vpop.f32.mrb[0].mxu0
  %2985 = vmatprep.mubr.f32.mxu0 0.0
  %2986 = vmatmul.mubr.f32.gmra.mrb[0].mxu0 %v2436
  %v2987 = vpop.f32.mrb[0].mxu0
  %v2988 = vadd.f32 0.0, %v2987
  %v2989 = vpop.f32.mrb[0].mxu0
  %2990 = vmatprep.mubr.f32.mxu0 0.0
  %2991 = vmatmul.mubr.f32.gmra.mrb[0].mxu0 %v2438
  %v2992 = vpop.f32.mrb[0].mxu0
  %v2993 = vadd.f32 0.0, %v2992
  %v2994 = vpop.f32.mrb[0].mxu0
  %2995 = vmatprep.mubr.f32.mxu0 0.0
  %2996 = vmatmul.mubr.f32.gmra.mrb[0].mxu0 %v2854
  %v2997 = vpop.f32.mrb[0].mxu0
  %v2998 = vadd.f32 0.0, %v2997
  %v2999 = vpop.f32.mrb[0].mxu0
  %3000 = vdwg.mxu0
  %v3001 = vadd.f32 %v2826, %v2923
  %v3002 = vadd.f32 %v2827, %v2928
  %v3003 = vadd.f32 %v2828, %v2933
  %v3004 = vadd.f32 %v2829, %v2938
  %v3005 = vadd.f32 %v2830, %v2943
  %v3006 = vadd.f32 %v2831, %v2948
  %v3007 = vadd.f32 %v2832, %v2953
  %v3008 = vadd.f32 %v2833, %v2958
  %v3009 = vadd.f32 %v2834, %v2963
  %v3010 = vadd.f32 %v2835, %v2968
  %v3011 = vadd.f32 %v2836, %v2973
  %v3012 = vadd.f32 %v2837, %v2978
  %v3013 = vadd.f32 %v2838, %v2983
  %v3014 = vadd.f32 %v2839, %v2988
  %v3015 = vadd.f32 %v2840, %v2993
  %v3016 = vadd.f32 %v2841, %v2998
  %v3017 = vsel %vm1993, %v2116, 0
  %v3019 = vsel %vm1993, %v2146, 0
  %3021 = vmatprep.subr.mxu0 0.0
  %3022 = vmatpush1.msra.mxu0 %v2080
  %3023 = vmatprep.subr.mxu0 0.0
  %3024 = vmatpush1.msra.mxu0 %v2081
  %3025 = vmatprep.subr.mxu0 0.0
  %3026 = vmatpush1.msra.mxu0 0.0
  %3027 = vmatprep.subr.mxu0 0.0
  %3028 = vmatpush1.msra.mxu0 0.0
  %3029 = vmatprep.subr.mxu0 0.0
  %3030 = vmatpush1.msra.mxu0 0.0
  %3031 = vmatprep.subr.mxu0 0.0
  %3032 = vmatpush1.msra.mxu0 0.0
  %3033 = vmatprep.subr.mxu0 0.0
  %3034 = vmatpush1.msra.mxu0 0.0
  %3035 = vmatprep.subr.mxu0 0.0
  %3036 = vmatpush1.msra.mxu0 0.0
  %3037 = vmatprep.subr.mxu0 0.0
  %3038 = vmatpush1.msra.mxu0 0.0
  %3039 = vmatprep.subr.mxu0 0.0
  %3040 = vmatpush1.msra.mxu0 0.0
  %3041 = vmatprep.subr.mxu0 0.0
  %3042 = vmatpush1.msra.mxu0 0.0
  %3043 = vmatprep.subr.mxu0 0.0
  %3044 = vmatpush1.msra.mxu0 0.0
  %3045 = vmatprep.subr.mxu0 0.0
  %3046 = vmatpush1.msra.mxu0 0.0
  %3047 = vmatprep.subr.mxu0 0.0
  %3048 = vmatpush1.msra.mxu0 0.0
  %3049 = vmatprep.subr.mxu0 0.0
  %3050 = vmatpush1.msra.mxu0 0.0
  %3051 = vmatprep.subr.mxu0 0.0
  %3052 = vmatpush1.msra.mxu0 0.0
  %3053 = vmatprep.subr.mxu0 0.0
  %3054 = vmatpush1.msra.mxu0 0.0
  %3055 = vmatprep.subr.mxu0 0.0
  %3056 = vmatpush1.msra.mxu0 0.0
  %3057 = vmatprep.subr.mxu0 0.0
  %3058 = vmatpush1.msra.mxu0 0.0
  %3059 = vmatprep.subr.mxu0 0.0
  %3060 = vmatpush1.msra.mxu0 0.0
  %3061 = vmatprep.subr.mxu0 0.0
  %3062 = vmatpush1.msra.mxu0 0.0
  %3063 = vmatprep.subr.mxu0 0.0
  %3064 = vmatpush1.msra.mxu0 0.0
  %3065 = vmatprep.subr.mxu0 0.0
  %3066 = vmatpush1.msra.mxu0 0.0
  %3067 = vmatprep.subr.mxu0 0.0
  %3068 = vmatpush1.msra.mxu0 0.0
  %3069 = vmatprep.subr.mxu0 0.0
  %3070 = vmatpush1.msra.mxu0 0.0
  %3071 = vmatprep.subr.mxu0 0.0
  %3072 = vmatpush1.msra.mxu0 0.0
  %3073 = vmatprep.subr.mxu0 0.0
  %3074 = vmatpush1.msra.mxu0 0.0
  %3075 = vmatprep.subr.mxu0 0.0
  %3076 = vmatpush1.msra.mxu0 0.0
  %3077 = vmatprep.subr.mxu0 0.0
  %3078 = vmatpush1.msra.mxu0 0.0
  %3079 = vmatprep.subr.mxu0 0.0
  %3080 = vmatpush1.msra.mxu0 0.0
  %3081 = vmatprep.subr.mxu0 0.0
  %3082 = vmatpush1.msra.mxu0 0.0
  %3083 = vmatprep.subr.mxu0 0.0
  %3084 = vmatpush1.msra.mxu0 0.0
  %3085 = vmatprep.mubr.f32.mxu0 0.0
  %3086 = vmatmul.mubr.f32.gmra.mrb[0].mxu0 %v2233
  %v3087 = vpop.f32.mrb[0].mxu0
  %v3088 = vadd.f32 0.0, %v3087
  %v3089 = vpop.f32.mrb[0].mxu0
  %3090 = vmatprep.mubr.f32.mxu0 0.0
  %3091 = vmatmul.mubr.f32.gmra.mrb[0].mxu0 %v2235
  %v3092 = vpop.f32.mrb[0].mxu0
  %v3093 = vadd.f32 0.0, %v3092
  %v3094 = vpop.f32.mrb[0].mxu0
  %3095 = vmatprep.mubr.f32.mxu0 0.0
  %3096 = vmatmul.mubr.f32.gmra.mrb[0].mxu0 %v2237
  %v3097 = vpop.f32.mrb[0].mxu0
  %v3098 = vadd.f32 0.0, %v3097
  %v3099 = vpop.f32.mrb[0].mxu0
  %3100 = vmatprep.mubr.f32.mxu0 0.0
  %3101 = vmatmul.mubr.f32.gmra.mrb[0].mxu0 %v2239
  %v3102 = vpop.f32.mrb[0].mxu0
  %v3103 = vadd.f32 0.0, %v3102
  %v3104 = vpop.f32.mrb[0].mxu0
  %3105 = vmatprep.mubr.f32.mxu0 0.0
  %3106 = vmatmul.mubr.f32.gmra.mrb[0].mxu0 %v2241
  %v3107 = vpop.f32.mrb[0].mxu0
  %v3108 = vadd.f32 0.0, %v3107
  %v3109 = vpop.f32.mrb[0].mxu0
  %3110 = vmatprep.mubr.f32.mxu0 0.0
  %3111 = vmatmul.mubr.f32.gmra.mrb[0].mxu0 %v2243
  %v3112 = vpop.f32.mrb[0].mxu0
  %v3113 = vadd.f32 0.0, %v3112
  %v3114 = vpop.f32.mrb[0].mxu0
  %3115 = vmatprep.mubr.f32.mxu0 0.0
  %3116 = vmatmul.mubr.f32.gmra.mrb[0].mxu0 %v2245
  %v3117 = vpop.f32.mrb[0].mxu0
  %v3118 = vadd.f32 0.0, %v3117
  %v3119 = vpop.f32.mrb[0].mxu0
  %3120 = vmatprep.mubr.f32.mxu0 0.0
  %3121 = vmatmul.mubr.f32.gmra.mrb[0].mxu0 %v3017
  %v3122 = vpop.f32.mrb[0].mxu0
  %v3123 = vadd.f32 0.0, %v3122
  %v3124 = vpop.f32.mrb[0].mxu0
  %3125 = vmatprep.mubr.f32.mxu0 0.0
  %3126 = vmatmul.mubr.f32.gmra.mrb[0].mxu0 %v2249
  %v3127 = vpop.f32.mrb[0].mxu0
  %v3128 = vadd.f32 0.0, %v3127
  %v3129 = vpop.f32.mrb[0].mxu0
  %3130 = vmatprep.mubr.f32.mxu0 0.0
  %3131 = vmatmul.mubr.f32.gmra.mrb[0].mxu0 %v2251
  %v3132 = vpop.f32.mrb[0].mxu0
  %v3133 = vadd.f32 0.0, %v3132
  %v3134 = vpop.f32.mrb[0].mxu0
  %3135 = vmatprep.mubr.f32.mxu0 0.0
  %3136 = vmatmul.mubr.f32.gmra.mrb[0].mxu0 %v2253
  %v3137 = vpop.f32.mrb[0].mxu0
  %v3138 = vadd.f32 0.0, %v3137
  %v3139 = vpop.f32.mrb[0].mxu0
  %3140 = vmatprep.mubr.f32.mxu0 0.0
  %3141 = vmatmul.mubr.f32.gmra.mrb[0].mxu0 %v2255
  %v3142 = vpop.f32.mrb[0].mxu0
  %v3143 = vadd.f32 0.0, %v3142
  %v3144 = vpop.f32.mrb[0].mxu0
  %3145 = vmatprep.mubr.f32.mxu0 0.0
  %3146 = vmatmul.mubr.f32.gmra.mrb[0].mxu0 %v2257
  %v3147 = vpop.f32.mrb[0].mxu0
  %v3148 = vadd.f32 0.0, %v3147
  %v3149 = vpop.f32.mrb[0].mxu0
  %3150 = vmatprep.mubr.f32.mxu0 0.0
  %3151 = vmatmul.mubr.f32.gmra.mrb[0].mxu0 %v2259
  %v3152 = vpop.f32.mrb[0].mxu0
  %v3153 = vadd.f32 0.0, %v3152
  %v3154 = vpop.f32.mrb[0].mxu0
  %3155 = vmatprep.mubr.f32.mxu0 0.0
  %3156 = vmatmul.mubr.f32.gmra.mrb[0].mxu0 %v2261
  %v3157 = vpop.f32.mrb[0].mxu0
  %v3158 = vadd.f32 0.0, %v3157
  %v3159 = vpop.f32.mrb[0].mxu0
  %3160 = vmatprep.mubr.f32.mxu0 0.0
  %3161 = vmatmul.mubr.f32.gmra.mrb[0].mxu0 %v3019
  %v3162 = vpop.f32.mrb[0].mxu0
  %v3163 = vadd.f32 0.0, %v3162
  %v3164 = vpop.f32.mrb[0].mxu0
  %3165 = vdwg.mxu0
  %v3166 = vadd.f32 %v3001, %v3088
  %v3167 = vadd.f32 %v3002, %v3093
  %v3168 = vadd.f32 %v3003, %v3098
  %v3169 = vadd.f32 %v3004, %v3103
  %v3170 = vadd.f32 %v3005, %v3108
  %v3171 = vadd.f32 %v3006, %v3113
  %v3172 = vadd.f32 %v3007, %v3118
  %v3173 = vadd.f32 %v3008, %v3123
  %v3174 = vadd.f32 %v3009, %v3128
  %v3175 = vadd.f32 %v3010, %v3133
  %v3176 = vadd.f32 %v3011, %v3138
  %v3177 = vadd.f32 %v3012, %v3143
  %v3178 = vadd.f32 %v3013, %v3148
  %v3179 = vadd.f32 %v3014, %v3153
  %v3180 = vadd.f32 %v3015, %v3158
  %v3181 = vadd.f32 %v3016, %v3163
  %v3184 = vrot.slane %v2116, 1
  %v3185 = vrot.slane %v2117, 1
  %v3186 = vsel %vm666, %v3184, %v3185
  %v3187 = vrot.slane %v2146, 1
  %v3188 = vrot.slane %v2147, 1
  %v3189 = vsel %vm666, %v3187, %v3188
  %v3190 = vsel %vm1993, %v3186, 0
  %v3192 = vsel %vm1993, %v3189, 0
  %3194 = vmatprep.subr.mxu0 0.0
  %3195 = vmatpush1.msra.mxu0 %v2082
  %3196 = vmatprep.subr.mxu0 0.0
  %3197 = vmatpush1.msra.mxu0 %v2083
  %3198 = vmatprep.subr.mxu0 0.0
  %3199 = vmatpush1.msra.mxu0 0.0
  %3200 = vmatprep.subr.mxu0 0.0
  %3201 = vmatpush1.msra.mxu0 0.0
  %3202 = vmatprep.subr.mxu0 0.0
  %3203 = vmatpush1.msra.mxu0 0.0
  %3204 = vmatprep.subr.mxu0 0.0
  %3205 = vmatpush1.msra.mxu0 0.0
  %3206 = vmatprep.subr.mxu0 0.0
  %3207 = vmatpush1.msra.mxu0 0.0
  %3208 = vmatprep.subr.mxu0 0.0
  %3209 = vmatpush1.msra.mxu0 0.0
  %3210 = vmatprep.subr.mxu0 0.0
  %3211 = vmatpush1.msra.mxu0 0.0
  %3212 = vmatprep.subr.mxu0 0.0
  %3213 = vmatpush1.msra.mxu0 0.0
  %3214 = vmatprep.subr.mxu0 0.0
  %3215 = vmatpush1.msra.mxu0 0.0
  %3216 = vmatprep.subr.mxu0 0.0
  %3217 = vmatpush1.msra.mxu0 0.0
  %3218 = vmatprep.subr.mxu0 0.0
  %3219 = vmatpush1.msra.mxu0 0.0
  %3220 = vmatprep.subr.mxu0 0.0
  %3221 = vmatpush1.msra.mxu0 0.0
  %3222 = vmatprep.subr.mxu0 0.0
  %3223 = vmatpush1.msra.mxu0 0.0
  %3224 = vmatprep.subr.mxu0 0.0
  %3225 = vmatpush1.msra.mxu0 0.0
  %3226 = vmatprep.subr.mxu0 0.0
  %3227 = vmatpush1.msra.mxu0 0.0
  %3228 = vmatprep.subr.mxu0 0.0
  %3229 = vmatpush1.msra.mxu0 0.0
  %3230 = vmatprep.subr.mxu0 0.0
  %3231 = vmatpush1.msra.mxu0 0.0
  %3232 = vmatprep.subr.mxu0 0.0
  %3233 = vmatpush1.msra.mxu0 0.0
  %3234 = vmatprep.subr.mxu0 0.0
  %3235 = vmatpush1.msra.mxu0 0.0
  %3236 = vmatprep.subr.mxu0 0.0
  %3237 = vmatpush1.msra.mxu0 0.0
  %3238 = vmatprep.subr.mxu0 0.0
  %3239 = vmatpush1.msra.mxu0 0.0
  %3240 = vmatprep.subr.mxu0 0.0
  %3241 = vmatpush1.msra.mxu0 0.0
  %3242 = vmatprep.subr.mxu0 0.0
  %3243 = vmatpush1.msra.mxu0 0.0
  %3244 = vmatprep.subr.mxu0 0.0
  %3245 = vmatpush1.msra.mxu0 0.0
  %3246 = vmatprep.subr.mxu0 0.0
  %3247 = vmatpush1.msra.mxu0 0.0
  %3248 = vmatprep.subr.mxu0 0.0
  %3249 = vmatpush1.msra.mxu0 0.0
  %3250 = vmatprep.subr.mxu0 0.0
  %3251 = vmatpush1.msra.mxu0 0.0
  %3252 = vmatprep.subr.mxu0 0.0
  %3253 = vmatpush1.msra.mxu0 0.0
  %3254 = vmatprep.subr.mxu0 0.0
  %3255 = vmatpush1.msra.mxu0 0.0
  %3256 = vmatprep.subr.mxu0 0.0
  %3257 = vmatpush1.msra.mxu0 0.0
  %3258 = vmatprep.mubr.f32.mxu0 0.0
  %3259 = vmatmul.mubr.f32.gmra.mrb[0].mxu0 %v2651
  %v3260 = vpop.f32.mrb[0].mxu0
  %v3261 = vadd.f32 0.0, %v3260
  %v3262 = vpop.f32.mrb[0].mxu0
  %3263 = vmatprep.mubr.f32.mxu0 0.0
  %3264 = vmatmul.mubr.f32.gmra.mrb[0].mxu0 %v2653
  %v3265 = vpop.f32.mrb[0].mxu0
  %v3266 = vadd.f32 0.0, %v3265
  %v3267 = vpop.f32.mrb[0].mxu0
  %3268 = vmatprep.mubr.f32.mxu0 0.0
  %3269 = vmatmul.mubr.f32.gmra.mrb[0].mxu0 %v2655
  %v3270 = vpop.f32.mrb[0].mxu0
  %v3271 = vadd.f32 0.0, %v3270
  %v3272 = vpop.f32.mrb[0].mxu0
  %3273 = vmatprep.mubr.f32.mxu0 0.0
  %3274 = vmatmul.mubr.f32.gmra.mrb[0].mxu0 %v2657
  %v3275 = vpop.f32.mrb[0].mxu0
  %v3276 = vadd.f32 0.0, %v3275
  %v3277 = vpop.f32.mrb[0].mxu0
  %3278 = vmatprep.mubr.f32.mxu0 0.0
  %3279 = vmatmul.mubr.f32.gmra.mrb[0].mxu0 %v2659
  %v3280 = vpop.f32.mrb[0].mxu0
  %v3281 = vadd.f32 0.0, %v3280
  %v3282 = vpop.f32.mrb[0].mxu0
  %3283 = vmatprep.mubr.f32.mxu0 0.0
  %3284 = vmatmul.mubr.f32.gmra.mrb[0].mxu0 %v2661
  %v3285 = vpop.f32.mrb[0].mxu0
  %v3286 = vadd.f32 0.0, %v3285
  %v3287 = vpop.f32.mrb[0].mxu0
  %3288 = vmatprep.mubr.f32.mxu0 0.0
  %3289 = vmatmul.mubr.f32.gmra.mrb[0].mxu0 %v2663
  %v3290 = vpop.f32.mrb[0].mxu0
  %v3291 = vadd.f32 0.0, %v3290
  %v3292 = vpop.f32.mrb[0].mxu0
  %3293 = vmatprep.mubr.f32.mxu0 0.0
  %3294 = vmatmul.mubr.f32.gmra.mrb[0].mxu0 %v3190
  %v3295 = vpop.f32.mrb[0].mxu0
  %v3296 = vadd.f32 0.0, %v3295
  %v3297 = vpop.f32.mrb[0].mxu0
  %3298 = vmatprep.mubr.f32.mxu0 0.0
  %3299 = vmatmul.mubr.f32.gmra.mrb[0].mxu0 %v2667
  %v3300 = vpop.f32.mrb[0].mxu0
  %v3301 = vadd.f32 0.0, %v3300
  %v3302 = vpop.f32.mrb[0].mxu0
  %3303 = vmatprep.mubr.f32.mxu0 0.0
  %3304 = vmatmul.mubr.f32.gmra.mrb[0].mxu0 %v2669
  %v3305 = vpop.f32.mrb[0].mxu0
  %v3306 = vadd.f32 0.0, %v3305
  %v3307 = vpop.f32.mrb[0].mxu0
  %3308 = vmatprep.mubr.f32.mxu0 0.0
  %3309 = vmatmul.mubr.f32.gmra.mrb[0].mxu0 %v2671
  %v3310 = vpop.f32.mrb[0].mxu0
  %v3311 = vadd.f32 0.0, %v3310
  %v3312 = vpop.f32.mrb[0].mxu0
  %3313 = vmatprep.mubr.f32.mxu0 0.0
  %3314 = vmatmul.mubr.f32.gmra.mrb[0].mxu0 %v2673
  %v3315 = vpop.f32.mrb[0].mxu0
  %v3316 = vadd.f32 0.0, %v3315
  %v3317 = vpop.f32.mrb[0].mxu0
  %3318 = vmatprep.mubr.f32.mxu0 0.0
  %3319 = vmatmul.mubr.f32.gmra.mrb[0].mxu0 %v2675
  %v3320 = vpop.f32.mrb[0].mxu0
  %v3321 = vadd.f32 0.0, %v3320
  %v3322 = vpop.f32.mrb[0].mxu0
  %3323 = vmatprep.mubr.f32.mxu0 0.0
  %3324 = vmatmul.mubr.f32.gmra.mrb[0].mxu0 %v2677
  %v3325 = vpop.f32.mrb[0].mxu0
  %v3326 = vadd.f32 0.0, %v3325
  %v3327 = vpop.f32.mrb[0].mxu0
  %3328 = vmatprep.mubr.f32.mxu0 0.0
  %3329 = vmatmul.mubr.f32.gmra.mrb[0].mxu0 %v2679
  %v3330 = vpop.f32.mrb[0].mxu0
  %v3331 = vadd.f32 0.0, %v3330
  %v3332 = vpop.f32.mrb[0].mxu0
  %3333 = vmatprep.mubr.f32.mxu0 0.0
  %3334 = vmatmul.mubr.f32.gmra.mrb[0].mxu0 %v3192
  %v3335 = vpop.f32.mrb[0].mxu0
  %v3336 = vadd.f32 0.0, %v3335
  %v3337 = vpop.f32.mrb[0].mxu0
  %3338 = vdwg.mxu0
  %v3339 = vadd.f32 %v3166, %v3261
  %v3340 = vadd.f32 %v3167, %v3266
  %v3341 = vadd.f32 %v3168, %v3271
  %v3342 = vadd.f32 %v3169, %v3276
  %v3343 = vadd.f32 %v3170, %v3281
  %v3344 = vadd.f32 %v3171, %v3286
  %v3345 = vadd.f32 %v3172, %v3291
  %v3346 = vadd.f32 %v3173, %v3296
  %v3347 = vadd.f32 %v3174, %v3301
  %v3348 = vadd.f32 %v3175, %v3306
  %v3349 = vadd.f32 %v3176, %v3311
  %v3350 = vadd.f32 %v3177, %v3316
  %v3351 = vadd.f32 %v3178, %v3321
  %v3352 = vadd.f32 %v3179, %v3326
  %v3353 = vadd.f32 %v3180, %v3331
  %v3354 = vadd.f32 %v3181, %v3336
  %v3359 = vrot.slane %v2118, 7
  %v3360 = vrot.slane %v2119, 7
  %v3361 = vsel %vm240, %v3359, %v3360
  %v3362 = vrot.slane %v2148, 7
  %v3363 = vrot.slane %v2149, 7
  %v3364 = vsel %vm240, %v3362, %v3363
  %v3365 = vsel %vm1993, %v3361, 0
  %v3367 = vsel %vm1993, %v3364, 0
  %3369 = vmatprep.subr.mxu0 0.0
  %3370 = vmatpush1.msra.mxu0 %v2084
  %3371 = vmatprep.subr.mxu0 0.0
  %3372 = vmatpush1.msra.mxu0 %v2085
  %3373 = vmatprep.subr.mxu0 0.0
  %3374 = vmatpush1.msra.mxu0 0.0
  %3375 = vmatprep.subr.mxu0 0.0
  %3376 = vmatpush1.msra.mxu0 0.0
  %3377 = vmatprep.subr.mxu0 0.0
  %3378 = vmatpush1.msra.mxu0 0.0
  %3379 = vmatprep.subr.mxu0 0.0
  %3380 = vmatpush1.msra.mxu0 0.0
  %3381 = vmatprep.subr.mxu0 0.0
  %3382 = vmatpush1.msra.mxu0 0.0
  %3383 = vmatprep.subr.mxu0 0.0
  %3384 = vmatpush1.msra.mxu0 0.0
  %3385 = vmatprep.subr.mxu0 0.0
  %3386 = vmatpush1.msra.mxu0 0.0
  %3387 = vmatprep.subr.mxu0 0.0
  %3388 = vmatpush1.msra.mxu0 0.0
  %3389 = vmatprep.subr.mxu0 0.0
  %3390 = vmatpush1.msra.mxu0 0.0
  %3391 = vmatprep.subr.mxu0 0.0
  %3392 = vmatpush1.msra.mxu0 0.0
  %3393 = vmatprep.subr.mxu0 0.0
  %3394 = vmatpush1.msra.mxu0 0.0
  %3395 = vmatprep.subr.mxu0 0.0
  %3396 = vmatpush1.msra.mxu0 0.0
  %3397 = vmatprep.subr.mxu0 0.0
  %3398 = vmatpush1.msra.mxu0 0.0
  %3399 = vmatprep.subr.mxu0 0.0
  %3400 = vmatpush1.msra.mxu0 0.0
  %3401 = vmatprep.subr.mxu0 0.0
  %3402 = vmatpush1.msra.mxu0 0.0
  %3403 = vmatprep.subr.mxu0 0.0
  %3404 = vmatpush1.msra.mxu0 0.0
  %3405 = vmatprep.subr.mxu0 0.0
  %3406 = vmatpush1.msra.mxu0 0.0
  %3407 = vmatprep.subr.mxu0 0.0
  %3408 = vmatpush1.msra.mxu0 0.0
  %3409 = vmatprep.subr.mxu0 0.0
  %3410 = vmatpush1.msra.mxu0 0.0
  %3411 = vmatprep.subr.mxu0 0.0
  %3412 = vmatpush1.msra.mxu0 0.0
  %3413 = vmatprep.subr.mxu0 0.0
  %3414 = vmatpush1.msra.mxu0 0.0
  %3415 = vmatprep.subr.mxu0 0.0
  %3416 = vmatpush1.msra.mxu0 0.0
  %3417 = vmatprep.subr.mxu0 0.0
  %3418 = vmatpush1.msra.mxu0 0.0
  %3419 = vmatprep.subr.mxu0 0.0
  %3420 = vmatpush1.msra.mxu0 0.0
  %3421 = vmatprep.subr.mxu0 0.0
  %3422 = vmatpush1.msra.mxu0 0.0
  %3423 = vmatprep.subr.mxu0 0.0
  %3424 = vmatpush1.msra.mxu0 0.0
  %3425 = vmatprep.subr.mxu0 0.0
  %3426 = vmatpush1.msra.mxu0 0.0
  %3427 = vmatprep.subr.mxu0 0.0
  %3428 = vmatpush1.msra.mxu0 0.0
  %3429 = vmatprep.subr.mxu0 0.0
  %3430 = vmatpush1.msra.mxu0 0.0
  %3431 = vmatprep.subr.mxu0 0.0
  %3432 = vmatpush1.msra.mxu0 0.0
  %3433 = vmatprep.mubr.f32.mxu0 0.0
  %3434 = vmatmul.mubr.f32.gmra.mrb[0].mxu0 %v2412
  %v3435 = vpop.f32.mrb[0].mxu0
  %v3436 = vadd.f32 0.0, %v3435
  %v3437 = vpop.f32.mrb[0].mxu0
  %3438 = vmatprep.mubr.f32.mxu0 0.0
  %3439 = vmatmul.mubr.f32.gmra.mrb[0].mxu0 %v2414
  %v3440 = vpop.f32.mrb[0].mxu0
  %v3441 = vadd.f32 0.0, %v3440
  %v3442 = vpop.f32.mrb[0].mxu0
  %3443 = vmatprep.mubr.f32.mxu0 0.0
  %3444 = vmatmul.mubr.f32.gmra.mrb[0].mxu0 %v2416
  %v3445 = vpop.f32.mrb[0].mxu0
  %v3446 = vadd.f32 0.0, %v3445
  %v3447 = vpop.f32.mrb[0].mxu0
  %3448 = vmatprep.mubr.f32.mxu0 0.0
  %3449 = vmatmul.mubr.f32.gmra.mrb[0].mxu0 %v2418
  %v3450 = vpop.f32.mrb[0].mxu0
  %v3451 = vadd.f32 0.0, %v3450
  %v3452 = vpop.f32.mrb[0].mxu0
  %3453 = vmatprep.mubr.f32.mxu0 0.0
  %3454 = vmatmul.mubr.f32.gmra.mrb[0].mxu0 %v2420
  %v3455 = vpop.f32.mrb[0].mxu0
  %v3456 = vadd.f32 0.0, %v3455
  %v3457 = vpop.f32.mrb[0].mxu0
  %3458 = vmatprep.mubr.f32.mxu0 0.0
  %3459 = vmatmul.mubr.f32.gmra.mrb[0].mxu0 %v2422
  %v3460 = vpop.f32.mrb[0].mxu0
  %v3461 = vadd.f32 0.0, %v3460
  %v3462 = vpop.f32.mrb[0].mxu0
  %3463 = vmatprep.mubr.f32.mxu0 0.0
  %3464 = vmatmul.mubr.f32.gmra.mrb[0].mxu0 %v2852
  %v3465 = vpop.f32.mrb[0].mxu0
  %v3466 = vadd.f32 0.0, %v3465
  %v3467 = vpop.f32.mrb[0].mxu0
  %3468 = vmatprep.mubr.f32.mxu0 0.0
  %3469 = vmatmul.mubr.f32.gmra.mrb[0].mxu0 %v3365
  %v3470 = vpop.f32.mrb[0].mxu0
  %v3471 = vadd.f32 0.0, %v3470
  %v3472 = vpop.f32.mrb[0].mxu0
  %3473 = vmatprep.mubr.f32.mxu0 0.0
  %3474 = vmatmul.mubr.f32.gmra.mrb[0].mxu0 %v2428
  %v3475 = vpop.f32.mrb[0].mxu0
  %v3476 = vadd.f32 0.0, %v3475
  %v3477 = vpop.f32.mrb[0].mxu0
  %3478 = vmatprep.mubr.f32.mxu0 0.0
  %3479 = vmatmul.mubr.f32.gmra.mrb[0].mxu0 %v2430
  %v3480 = vpop.f32.mrb[0].mxu0
  %v3481 = vadd.f32 0.0, %v3480
  %v3482 = vpop.f32.mrb[0].mxu0
  %3483 = vmatprep.mubr.f32.mxu0 0.0
  %3484 = vmatmul.mubr.f32.gmra.mrb[0].mxu0 %v2432
  %v3485 = vpop.f32.mrb[0].mxu0
  %v3486 = vadd.f32 0.0, %v3485
  %v3487 = vpop.f32.mrb[0].mxu0
  %3488 = vmatprep.mubr.f32.mxu0 0.0
  %3489 = vmatmul.mubr.f32.gmra.mrb[0].mxu0 %v2434
  %v3490 = vpop.f32.mrb[0].mxu0
  %v3491 = vadd.f32 0.0, %v3490
  %v3492 = vpop.f32.mrb[0].mxu0
  %3493 = vmatprep.mubr.f32.mxu0 0.0
  %3494 = vmatmul.mubr.f32.gmra.mrb[0].mxu0 %v2436
  %v3495 = vpop.f32.mrb[0].mxu0
  %v3496 = vadd.f32 0.0, %v3495
  %v3497 = vpop.f32.mrb[0].mxu0
  %3498 = vmatprep.mubr.f32.mxu0 0.0
  %3499 = vmatmul.mubr.f32.gmra.mrb[0].mxu0 %v2438
  %v3500 = vpop.f32.mrb[0].mxu0
  %v3501 = vadd.f32 0.0, %v3500
  %v3502 = vpop.f32.mrb[0].mxu0
  %3503 = vmatprep.mubr.f32.mxu0 0.0
  %3504 = vmatmul.mubr.f32.gmra.mrb[0].mxu0 %v2854
  %v3505 = vpop.f32.mrb[0].mxu0
  %v3506 = vadd.f32 0.0, %v3505
  %v3507 = vpop.f32.mrb[0].mxu0
  %3508 = vmatprep.mubr.f32.mxu0 0.0
  %3509 = vmatmul.mubr.f32.gmra.mrb[0].mxu0 %v3367
  %v3510 = vpop.f32.mrb[0].mxu0
  %v3511 = vadd.f32 0.0, %v3510
  %v3512 = vpop.f32.mrb[0].mxu0
  %3513 = vdwg.mxu0
  %v3514 = vadd.f32 %v3339, %v3436
  %v3515 = vadd.f32 %v3340, %v3441
  %v3516 = vadd.f32 %v3341, %v3446
  %v3517 = vadd.f32 %v3342, %v3451
  %v3518 = vadd.f32 %v3343, %v3456
  %v3519 = vadd.f32 %v3344, %v3461
  %v3520 = vadd.f32 %v3345, %v3466
  %v3521 = vadd.f32 %v3346, %v3471
  %v3522 = vadd.f32 %v3347, %v3476
  %v3523 = vadd.f32 %v3348, %v3481
  %v3524 = vadd.f32 %v3349, %v3486
  %v3525 = vadd.f32 %v3350, %v3491
  %v3526 = vadd.f32 %v3351, %v3496
  %v3527 = vadd.f32 %v3352, %v3501
  %v3528 = vadd.f32 %v3353, %v3506
  %v3529 = vadd.f32 %v3354, %v3511
  %v3530 = vsel %vm1993, %v2119, 0
  %v3532 = vsel %vm1993, %v2149, 0
  %3534 = vmatprep.subr.mxu0 0.0
  %3535 = vmatpush1.msra.mxu0 %v2086
  %3536 = vmatprep.subr.mxu0 0.0
  %3537 = vmatpush1.msra.mxu0 %v2087
  %3538 = vmatprep.subr.mxu0 0.0
  %3539 = vmatpush1.msra.mxu0 0.0
  %3540 = vmatprep.subr.mxu0 0.0
  %3541 = vmatpush1.msra.mxu0 0.0
  %3542 = vmatprep.subr.mxu0 0.0
  %3543 = vmatpush1.msra.mxu0 0.0
  %3544 = vmatprep.subr.mxu0 0.0
  %3545 = vmatpush1.msra.mxu0 0.0
  %3546 = vmatprep.subr.mxu0 0.0
  %3547 = vmatpush1.msra.mxu0 0.0
  %3548 = vmatprep.subr.mxu0 0.0
  %3549 = vmatpush1.msra.mxu0 0.0
  %3550 = vmatprep.subr.mxu0 0.0
  %3551 = vmatpush1.msra.mxu0 0.0
  %3552 = vmatprep.subr.mxu0 0.0
  %3553 = vmatpush1.msra.mxu0 0.0
  %3554 = vmatprep.subr.mxu0 0.0
  %3555 = vmatpush1.msra.mxu0 0.0
  %3556 = vmatprep.subr.mxu0 0.0
  %3557 = vmatpush1.msra.mxu0 0.0
  %3558 = vmatprep.subr.mxu0 0.0
  %3559 = vmatpush1.msra.mxu0 0.0
  %3560 = vmatprep.subr.mxu0 0.0
  %3561 = vmatpush1.msra.mxu0 0.0
  %3562 = vmatprep.subr.mxu0 0.0
  %3563 = vmatpush1.msra.mxu0 0.0
  %3564 = vmatprep.subr.mxu0 0.0
  %3565 = vmatpush1.msra.mxu0 0.0
  %3566 = vmatprep.subr.mxu0 0.0
  %3567 = vmatpush1.msra.mxu0 0.0
  %3568 = vmatprep.subr.mxu0 0.0
  %3569 = vmatpush1.msra.mxu0 0.0
  %3570 = vmatprep.subr.mxu0 0.0
  %3571 = vmatpush1.msra.mxu0 0.0
  %3572 = vmatprep.subr.mxu0 0.0
  %3573 = vmatpush1.msra.mxu0 0.0
  %3574 = vmatprep.subr.mxu0 0.0
  %3575 = vmatpush1.msra.mxu0 0.0
  %3576 = vmatprep.subr.mxu0 0.0
  %3577 = vmatpush1.msra.mxu0 0.0
  %3578 = vmatprep.subr.mxu0 0.0
  %3579 = vmatpush1.msra.mxu0 0.0
  %3580 = vmatprep.subr.mxu0 0.0
  %3581 = vmatpush1.msra.mxu0 0.0
  %3582 = vmatprep.subr.mxu0 0.0
  %3583 = vmatpush1.msra.mxu0 0.0
  %3584 = vmatprep.subr.mxu0 0.0
  %3585 = vmatpush1.msra.mxu0 0.0
  %3586 = vmatprep.subr.mxu0 0.0
  %3587 = vmatpush1.msra.mxu0 0.0
  %3588 = vmatprep.subr.mxu0 0.0
  %3589 = vmatpush1.msra.mxu0 0.0
  %3590 = vmatprep.subr.mxu0 0.0
  %3591 = vmatpush1.msra.mxu0 0.0
  %3592 = vmatprep.subr.mxu0 0.0
  %3593 = vmatpush1.msra.mxu0 0.0
  %3594 = vmatprep.subr.mxu0 0.0
  %3595 = vmatpush1.msra.mxu0 0.0
  %3596 = vmatprep.subr.mxu0 0.0
  %3597 = vmatpush1.msra.mxu0 0.0
  %3598 = vmatprep.mubr.f32.mxu0 0.0
  %3599 = vmatmul.mubr.f32.gmra.mrb[0].mxu0 %v2235
  %v3600 = vpop.f32.mrb[0].mxu0
  %v3601 = vadd.f32 0.0, %v3600
  %v3602 = vpop.f32.mrb[0].mxu0
  %3603 = vmatprep.mubr.f32.mxu0 0.0
  %3604 = vmatmul.mubr.f32.gmra.mrb[0].mxu0 %v2237
  %v3605 = vpop.f32.mrb[0].mxu0
  %v3606 = vadd.f32 0.0, %v3605
  %v3607 = vpop.f32.mrb[0].mxu0
  %3608 = vmatprep.mubr.f32.mxu0 0.0
  %3609 = vmatmul.mubr.f32.gmra.mrb[0].mxu0 %v2239
  %v3610 = vpop.f32.mrb[0].mxu0
  %v3611 = vadd.f32 0.0, %v3610
  %v3612 = vpop.f32.mrb[0].mxu0
  %3613 = vmatprep.mubr.f32.mxu0 0.0
  %3614 = vmatmul.mubr.f32.gmra.mrb[0].mxu0 %v2241
  %v3615 = vpop.f32.mrb[0].mxu0
  %v3616 = vadd.f32 0.0, %v3615
  %v3617 = vpop.f32.mrb[0].mxu0
  %3618 = vmatprep.mubr.f32.mxu0 0.0
  %3619 = vmatmul.mubr.f32.gmra.mrb[0].mxu0 %v2243
  %v3620 = vpop.f32.mrb[0].mxu0
  %v3621 = vadd.f32 0.0, %v3620
  %v3622 = vpop.f32.mrb[0].mxu0
  %3623 = vmatprep.mubr.f32.mxu0 0.0
  %3624 = vmatmul.mubr.f32.gmra.mrb[0].mxu0 %v2245
  %v3625 = vpop.f32.mrb[0].mxu0
  %v3626 = vadd.f32 0.0, %v3625
  %v3627 = vpop.f32.mrb[0].mxu0
  %3628 = vmatprep.mubr.f32.mxu0 0.0
  %3629 = vmatmul.mubr.f32.gmra.mrb[0].mxu0 %v3017
  %v3630 = vpop.f32.mrb[0].mxu0
  %v3631 = vadd.f32 0.0, %v3630
  %v3632 = vpop.f32.mrb[0].mxu0
  %3633 = vmatprep.mubr.f32.mxu0 0.0
  %3634 = vmatmul.mubr.f32.gmra.mrb[0].mxu0 %v3530
  %v3635 = vpop.f32.mrb[0].mxu0
  %v3636 = vadd.f32 0.0, %v3635
  %v3637 = vpop.f32.mrb[0].mxu0
  %3638 = vmatprep.mubr.f32.mxu0 0.0
  %3639 = vmatmul.mubr.f32.gmra.mrb[0].mxu0 %v2251
  %v3640 = vpop.f32.mrb[0].mxu0
  %v3641 = vadd.f32 0.0, %v3640
  %v3642 = vpop.f32.mrb[0].mxu0
  %3643 = vmatprep.mubr.f32.mxu0 0.0
  %3644 = vmatmul.mubr.f32.gmra.mrb[0].mxu0 %v2253
  %v3645 = vpop.f32.mrb[0].mxu0
  %v3646 = vadd.f32 0.0, %v3645
  %v3647 = vpop.f32.mrb[0].mxu0
  %3648 = vmatprep.mubr.f32.mxu0 0.0
  %3649 = vmatmul.mubr.f32.gmra.mrb[0].mxu0 %v2255
  %v3650 = vpop.f32.mrb[0].mxu0
  %v3651 = vadd.f32 0.0, %v3650
  %v3652 = vpop.f32.mrb[0].mxu0
  %3653 = vmatprep.mubr.f32.mxu0 0.0
  %3654 = vmatmul.mubr.f32.gmra.mrb[0].mxu0 %v2257
  %v3655 = vpop.f32.mrb[0].mxu0
  %v3656 = vadd.f32 0.0, %v3655
  %v3657 = vpop.f32.mrb[0].mxu0
  %3658 = vmatprep.mubr.f32.mxu0 0.0
  %3659 = vmatmul.mubr.f32.gmra.mrb[0].mxu0 %v2259
  %v3660 = vpop.f32.mrb[0].mxu0
  %v3661 = vadd.f32 0.0, %v3660
  %v3662 = vpop.f32.mrb[0].mxu0
  %3663 = vmatprep.mubr.f32.mxu0 0.0
  %3664 = vmatmul.mubr.f32.gmra.mrb[0].mxu0 %v2261
  %v3665 = vpop.f32.mrb[0].mxu0
  %v3666 = vadd.f32 0.0, %v3665
  %v3667 = vpop.f32.mrb[0].mxu0
  %3668 = vmatprep.mubr.f32.mxu0 0.0
  %3669 = vmatmul.mubr.f32.gmra.mrb[0].mxu0 %v3019
  %v3670 = vpop.f32.mrb[0].mxu0
  %v3671 = vadd.f32 0.0, %v3670
  %v3672 = vpop.f32.mrb[0].mxu0
  %3673 = vmatprep.mubr.f32.mxu0 0.0
  %3674 = vmatmul.mubr.f32.gmra.mrb[0].mxu0 %v3532
  %v3675 = vpop.f32.mrb[0].mxu0
  %v3676 = vadd.f32 0.0, %v3675
  %v3677 = vpop.f32.mrb[0].mxu0
  %3678 = vdwg.mxu0
  %v3679 = vadd.f32 %v3514, %v3601
  %v3680 = vadd.f32 %v3515, %v3606
  %v3681 = vadd.f32 %v3516, %v3611
  %v3682 = vadd.f32 %v3517, %v3616
  %v3683 = vadd.f32 %v3518, %v3621
  %v3684 = vadd.f32 %v3519, %v3626
  %v3685 = vadd.f32 %v3520, %v3631
  %v3686 = vadd.f32 %v3521, %v3636
  %v3687 = vadd.f32 %v3522, %v3641
  %v3688 = vadd.f32 %v3523, %v3646
  %v3689 = vadd.f32 %v3524, %v3651
  %v3690 = vadd.f32 %v3525, %v3656
  %v3691 = vadd.f32 %v3526, %v3661
  %v3692 = vadd.f32 %v3527, %v3666
  %v3693 = vadd.f32 %v3528, %v3671
  %v3694 = vadd.f32 %v3529, %v3676
  %v3697 = vrot.slane %v2119, 1
  %v3698 = vrot.slane %v2120, 1
  %v3699 = vsel %vm666, %v3697, %v3698
  %v3700 = vrot.slane %v2149, 1
  %v3701 = vrot.slane %v2150, 1
  %v3702 = vsel %vm666, %v3700, %v3701
  %v3703 = vsel %vm1993, %v3699, 0
  %v3705 = vsel %vm1993, %v3702, 0
  %3707 = vmatprep.subr.mxu0 0.0
  %3708 = vmatpush1.msra.mxu0 %v2088
  %3709 = vmatprep.subr.mxu0 0.0
  %3710 = vmatpush1.msra.mxu0 %v2089
  %3711 = vmatprep.subr.mxu0 0.0
  %3712 = vmatpush1.msra.mxu0 0.0
  %3713 = vmatprep.subr.mxu0 0.0
  %3714 = vmatpush1.msra.mxu0 0.0
  %3715 = vmatprep.subr.mxu0 0.0
  %3716 = vmatpush1.msra.mxu0 0.0
  %3717 = vmatprep.subr.mxu0 0.0
  %3718 = vmatpush1.msra.mxu0 0.0
  %3719 = vmatprep.subr.mxu0 0.0
  %3720 = vmatpush1.msra.mxu0 0.0
  %3721 = vmatprep.subr.mxu0 0.0
  %3722 = vmatpush1.msra.mxu0 0.0
  %3723 = vmatprep.subr.mxu0 0.0
  %3724 = vmatpush1.msra.mxu0 0.0
  %3725 = vmatprep.subr.mxu0 0.0
  %3726 = vmatpush1.msra.mxu0 0.0
  %3727 = vmatprep.subr.mxu0 0.0
  %3728 = vmatpush1.msra.mxu0 0.0
  %3729 = vmatprep.subr.mxu0 0.0
  %3730 = vmatpush1.msra.mxu0 0.0
  %3731 = vmatprep.subr.mxu0 0.0
  %3732 = vmatpush1.msra.mxu0 0.0
  %3733 = vmatprep.subr.mxu0 0.0
  %3734 = vmatpush1.msra.mxu0 0.0
  %3735 = vmatprep.subr.mxu0 0.0
  %3736 = vmatpush1.msra.mxu0 0.0
  %3737 = vmatprep.subr.mxu0 0.0
  %3738 = vmatpush1.msra.mxu0 0.0
  %3739 = vmatprep.subr.mxu0 0.0
  %3740 = vmatpush1.msra.mxu0 0.0
  %3741 = vmatprep.subr.mxu0 0.0
  %3742 = vmatpush1.msra.mxu0 0.0
  %3743 = vmatprep.subr.mxu0 0.0
  %3744 = vmatpush1.msra.mxu0 0.0
  %3745 = vmatprep.subr.mxu0 0.0
  %3746 = vmatpush1.msra.mxu0 0.0
  %3747 = vmatprep.subr.mxu0 0.0
  %3748 = vmatpush1.msra.mxu0 0.0
  %3749 = vmatprep.subr.mxu0 0.0
  %3750 = vmatpush1.msra.mxu0 0.0
  %3751 = vmatprep.subr.mxu0 0.0
  %3752 = vmatpush1.msra.mxu0 0.0
  %3753 = vmatprep.subr.mxu0 0.0
  %3754 = vmatpush1.msra.mxu0 0.0
  %3755 = vmatprep.subr.mxu0 0.0
  %3756 = vmatpush1.msra.mxu0 0.0
  %3757 = vmatprep.subr.mxu0 0.0
  %3758 = vmatpush1.msra.mxu0 0.0
  %3759 = vmatprep.subr.mxu0 0.0
  %3760 = vmatpush1.msra.mxu0 0.0
  %3761 = vmatprep.subr.mxu0 0.0
  %3762 = vmatpush1.msra.mxu0 0.0
  %3763 = vmatprep.subr.mxu0 0.0
  %3764 = vmatpush1.msra.mxu0 0.0
  %3765 = vmatprep.subr.mxu0 0.0
  %3766 = vmatpush1.msra.mxu0 0.0
  %3767 = vmatprep.subr.mxu0 0.0
  %3768 = vmatpush1.msra.mxu0 0.0
  %3769 = vmatprep.subr.mxu0 0.0
  %3770 = vmatpush1.msra.mxu0 0.0
  %3771 = vmatprep.mubr.f32.mxu0 0.0
  %3772 = vmatmul.mubr.f32.gmra.mrb[0].mxu0 %v2653
  %v3773 = vpop.f32.mrb[0].mxu0
  %v3774 = vadd.f32 0.0, %v3773
  %v3775 = vpop.f32.mrb[0].mxu0
  %3776 = vmatprep.mubr.f32.mxu0 0.0
  %3777 = vmatmul.mubr.f32.gmra.mrb[0].mxu0 %v2655
  %v3778 = vpop.f32.mrb[0].mxu0
  %v3779 = vadd.f32 0.0, %v3778
  %v3780 = vpop.f32.mrb[0].mxu0
  %3781 = vmatprep.mubr.f32.mxu0 0.0
  %3782 = vmatmul.mubr.f32.gmra.mrb[0].mxu0 %v2657
  %v3783 = vpop.f32.mrb[0].mxu0
  %v3784 = vadd.f32 0.0, %v3783
  %v3785 = vpop.f32.mrb[0].mxu0
  %3786 = vmatprep.mubr.f32.mxu0 0.0
  %3787 = vmatmul.mubr.f32.gmra.mrb[0].mxu0 %v2659
  %v3788 = vpop.f32.mrb[0].mxu0
  %v3789 = vadd.f32 0.0, %v3788
  %v3790 = vpop.f32.mrb[0].mxu0
  %3791 = vmatprep.mubr.f32.mxu0 0.0
  %3792 = vmatmul.mubr.f32.gmra.mrb[0].mxu0 %v2661
  %v3793 = vpop.f32.mrb[0].mxu0
  %v3794 = vadd.f32 0.0, %v3793
  %v3795 = vpop.f32.mrb[0].mxu0
  %3796 = vmatprep.mubr.f32.mxu0 0.0
  %3797 = vmatmul.mubr.f32.gmra.mrb[0].mxu0 %v2663
  %v3798 = vpop.f32.mrb[0].mxu0
  %v3799 = vadd.f32 0.0, %v3798
  %v3800 = vpop.f32.mrb[0].mxu0
  %3801 = vmatprep.mubr.f32.mxu0 0.0
  %3802 = vmatmul.mubr.f32.gmra.mrb[0].mxu0 %v3190
  %v3803 = vpop.f32.mrb[0].mxu0
  %v3804 = vadd.f32 0.0, %v3803
  %v3805 = vpop.f32.mrb[0].mxu0
  %3806 = vmatprep.mubr.f32.mxu0 0.0
  %3807 = vmatmul.mubr.f32.gmra.mrb[0].mxu0 %v3703
  %v3808 = vpop.f32.mrb[0].mxu0
  %v3809 = vadd.f32 0.0, %v3808
  %v3810 = vpop.f32.mrb[0].mxu0
  %3811 = vmatprep.mubr.f32.mxu0 0.0
  %3812 = vmatmul.mubr.f32.gmra.mrb[0].mxu0 %v2669
  %v3813 = vpop.f32.mrb[0].mxu0
  %v3814 = vadd.f32 0.0, %v3813
  %v3815 = vpop.f32.mrb[0].mxu0
  %3816 = vmatprep.mubr.f32.mxu0 0.0
  %3817 = vmatmul.mubr.f32.gmra.mrb[0].mxu0 %v2671
  %v3818 = vpop.f32.mrb[0].mxu0
  %v3819 = vadd.f32 0.0, %v3818
  %v3820 = vpop.f32.mrb[0].mxu0
  %3821 = vmatprep.mubr.f32.mxu0 0.0
  %3822 = vmatmul.mubr.f32.gmra.mrb[0].mxu0 %v2673
  %v3823 = vpop.f32.mrb[0].mxu0
  %v3824 = vadd.f32 0.0, %v3823
  %v3825 = vpop.f32.mrb[0].mxu0
  %3826 = vmatprep.mubr.f32.mxu0 0.0
  %3827 = vmatmul.mubr.f32.gmra.mrb[0].mxu0 %v2675
  %v3828 = vpop.f32.mrb[0].mxu0
  %v3829 = vadd.f32 0.0, %v3828
  %v3830 = vpop.f32.mrb[0].mxu0
  %3831 = vmatprep.mubr.f32.mxu0 0.0
  %3832 = vmatmul.mubr.f32.gmra.mrb[0].mxu0 %v2677
  %v3833 = vpop.f32.mrb[0].mxu0
  %v3834 = vadd.f32 0.0, %v3833
  %v3835 = vpop.f32.mrb[0].mxu0
  %3836 = vmatprep.mubr.f32.mxu0 0.0
  %3837 = vmatmul.mubr.f32.gmra.mrb[0].mxu0 %v2679
  %v3838 = vpop.f32.mrb[0].mxu0
  %v3839 = vadd.f32 0.0, %v3838
  %v3840 = vpop.f32.mrb[0].mxu0
  %3841 = vmatprep.mubr.f32.mxu0 0.0
  %3842 = vmatmul.mubr.f32.gmra.mrb[0].mxu0 %v3192
  %v3843 = vpop.f32.mrb[0].mxu0
  %v3844 = vadd.f32 0.0, %v3843
  %v3845 = vpop.f32.mrb[0].mxu0
  %3846 = vmatprep.mubr.f32.mxu0 0.0
  %3847 = vmatmul.mubr.f32.gmra.mrb[0].mxu0 %v3705
  %v3848 = vpop.f32.mrb[0].mxu0
  %v3849 = vadd.f32 0.0, %v3848
  %v3850 = vpop.f32.mrb[0].mxu0
  %3851 = vdwg.mxu0
  %v3852 = vadd.f32 %v3679, %v3774
  %v3853 = vadd.f32 %v3680, %v3779
  %v3854 = vadd.f32 %v3681, %v3784
  %v3855 = vadd.f32 %v3682, %v3789
  %v3856 = vadd.f32 %v3683, %v3794
  %v3857 = vadd.f32 %v3684, %v3799
  %v3858 = vadd.f32 %v3685, %v3804
  %v3859 = vadd.f32 %v3686, %v3809
  %v3860 = vadd.f32 %v3687, %v3814
  %v3861 = vadd.f32 %v3688, %v3819
  %v3862 = vadd.f32 %v3689, %v3824
  %v3863 = vadd.f32 %v3690, %v3829
  %v3864 = vadd.f32 %v3691, %v3834
  %v3865 = vadd.f32 %v3692, %v3839
  %v3866 = vadd.f32 %v3693, %v3844
  %v3867 = vadd.f32 %v3694, %v3849
  %v3869 = vlaneseq
  %v3870 = vshrl.u32 %v3869, 7
  %v3871 = vsub.s32 0, %v3870
  %v3872 = vrot.slane %v2090, %v3871
  %v3874 = vadd.f32 %v3852, %v3872
  %v3875 = vadd.f32 %v3853, %v3872
  %v3876 = vadd.f32 %v3854, %v3872
  %v3877 = vadd.f32 %v3855, %v3872
  %v3878 = vadd.f32 %v3856, %v3872
  %v3879 = vadd.f32 %v3857, %v3872
  %v3880 = vadd.f32 %v3858, %v3872
  %v3881 = vadd.f32 %v3859, %v3872
  %v3882 = vadd.f32 %v3860, %v3872
  %v3883 = vadd.f32 %v3861, %v3872
  %v3884 = vadd.f32 %v3862, %v3872
  %v3885 = vadd.f32 %v3863, %v3872
  %v3886 = vadd.f32 %v3864, %v3872
  %v3887 = vadd.f32 %v3865, %v3872
  %v3888 = vadd.f32 %v3866, %v3872
  %v3889 = vadd.f32 %v3867, %v3872
  %v3890 = vmax.f32 %v3874, 0.0
  %v3891 = vmax.f32 %v3875, 0.0
  %v3892 = vmax.f32 %v3876, 0.0
  %v3893 = vmax.f32 %v3877, 0.0
  %v3894 = vmax.f32 %v3878, 0.0
  %v3895 = vmax.f32 %v3879, 0.0
  %v3896 = vmax.f32 %v3880, 0.0
  %v3897 = vmax.f32 %v3881, 0.0
  %v3898 = vmax.f32 %v3882, 0.0
  %v3899 = vmax.f32 %v3883, 0.0
  %v3900 = vmax.f32 %v3884, 0.0
  %v3901 = vmax.f32 %v3885, 0.0
  %v3902 = vmax.f32 %v3886, 0.0
  %v3903 = vmax.f32 %v3887, 0.0
  %v3904 = vmax.f32 %v3888, 0.0
  %v3905 = vmax.f32 %v3889, 0.0
  %v3906 = vmax.f32 %v3890, %v3891
  %v3907 = vmax.f32 %v3898, %v3899
  %v3910 = vrot.slane %v3906, 1
  %v3911 = vrot.slane %v3907, 1
  %v3914 = vmax.f32 %v3906, %v3910
  %v3915 = vmax.f32 %v3907, %v3911
  %v3919 = vunpack.c.l.s4 1983009808
  %v3920 = vunpack.c.0.s8 %v3919
  %v3921 = vlaneseq
  %v3922 = vshrl.u32 %v3921, 7
  %v3923 = vsub.s32 %v3920, %v3922
  %v3924 = vrot.slane %v3914, %v3923
  %v3926 = vunpack.c.l.s4 1983009808
  %v3927 = vunpack.c.0.s8 %v3926
  %v3928 = vlaneseq
  %v3929 = vshrl.u32 %v3928, 7
  %v3930 = vsub.s32 %v3927, %v3929
  %v3931 = vrot.slane %v3915, %v3930
  %vm3932 = vcmask 1044484
  %v3933 = vsel %vm3932, %v3924, %v3924
  %vm3934 = vcmask 1046534
  %v3935 = vsel %vm3934, %v3924, %v3933
  %v3936 = vrot.slane %v3931, 7
  %vm3937 = vcmask 1041409
  %v3938 = vsel %vm3937, %v3936, %v3935
  %vm3939 = vcmask 1043459
  %v3940 = vsel %vm3939, %v3936, %v3938
  %vm3941 = vcmask 1045509
  %v3942 = vsel %vm3941, %v3936, %v3940
  %vm3943 = vcmask 1047559
  %v3944 = vsel %vm3943, %v3936, %v3942
  %vm3946 = vcmask 123904
  %3947 = vst.msk [vmem:[#allocation4] sm:$0x3] %vm3946, %v3944
  %v3948 = vcombine.high %v3924, %v3924
  %v3949 = vcombine.high %v3931, %v3931
  %v3950 = vsel %vm3932, %v3948, %v3948
  %v3951 = vsel %vm3934, %v3948, %v3950
  %v3952 = vrot.slane %v3949, 7
  %v3953 = vsel %vm3937, %v3952, %v3951
  %v3954 = vsel %vm3939, %v3952, %v3953
  %v3955 = vsel %vm3941, %v3952, %v3954
  %v3956 = vsel %vm3943, %v3952, %v3955
  %3957 = vrot.lane.b32.xlu0 %v3956, 16
  %v3958 = vpop.permute.xlu0 %3957
  %vm3960 = vcmask 255104
  %3961 = vst.msk [vmem:[#allocation4] sm:$0x3] %vm3960, %v3958
  %v3962 = vcombine.high %v3914, %v3914
  %v3964 = vunpack.c.l.s4 1983009808
  %v3965 = vunpack.c.0.s8 %v3964
  %v3966 = vlaneseq
  %v3967 = vshrl.u32 %v3966, 7
  %v3968 = vsub.s32 %v3965, %v3967
  %v3969 = vrot.slane %v3962, %v3968
  %v3970 = vcombine.high %v3915, %v3915
  %v3972 = vunpack.c.l.s4 1983009808
  %v3973 = vunpack.c.0.s8 %v3972
  %v3974 = vlaneseq
  %v3975 = vshrl.u32 %v3974, 7
  %v3976 = vsub.s32 %v3973, %v3975
  %v3977 = vrot.slane %v3970, %v3976
  %v3978 = vsel %vm3932, %v3969, %v3969
  %v3979 = vsel %vm3934, %v3969, %v3978
  %v3980 = vrot.slane %v3977, 7
  %v3981 = vsel %vm3937, %v3980, %v3979
  %v3982 = vsel %vm3939, %v3980, %v3981
  %v3983 = vsel %vm3941, %v3980, %v3982
  %v3984 = vsel %vm3943, %v3980, %v3983
  %3985 = vrot.lane.b32.xlu0 %v3984, 32
  %v3986 = vpop.permute.xlu0 %3985
  %vm3988 = vcmask 386304
  %3989 = vst.msk [vmem:[#allocation4] sm:$0x3] %vm3988, %v3986
  %v3990 = vcombine.high %v3969, %v3969
  %v3991 = vcombine.high %v3977, %v3977
  %v3992 = vsel %vm3932, %v3990, %v3990
  %v3993 = vsel %vm3934, %v3990, %v3992
  %v3994 = vrot.slane %v3991, 7
  %v3995 = vsel %vm3937, %v3994, %v3993
  %v3996 = vsel %vm3939, %v3994, %v3995
  %v3997 = vsel %vm3941, %v3994, %v3996
  %v3998 = vsel %vm3943, %v3994, %v3997
  %3999 = vrot.lane.b32.xlu0 %v3998, 48
  %v4000 = vpop.permute.xlu0 %3999
  %vm4002 = vcmask 517504
  %4003 = vst.msk [vmem:[#allocation4] sm:$0x3] %vm4002, %v4000
  %v4004 = vmax.f32 %v3892, %v3893
  %v4005 = vmax.f32 %v3900, %v3901
  %v4008 = vrot.slane %v4004, 1
  %v4009 = vrot.slane %v4005, 1
  %v4012 = vmax.f32 %v4004, %v4008
  %v4013 = vmax.f32 %v4005, %v4009
  %v4017 = vunpack.c.l.s4 1983009808
  %v4018 = vunpack.c.0.s8 %v4017
  %v4019 = vlaneseq
  %v4020 = vshrl.u32 %v4019, 7
  %v4021 = vsub.s32 %v4018, %v4020
  %v4022 = vrot.slane %v4012, %v4021
  %v4024 = vunpack.c.l.s4 1983009808
  %v4025 = vunpack.c.0.s8 %v4024
  %v4026 = vlaneseq
  %v4027 = vshrl.u32 %v4026, 7
  %v4028 = vsub.s32 %v4025, %v4027
  %v4029 = vrot.slane %v4013, %v4028
  %v4030 = vsel %vm3932, %v4022, %v4022
  %v4031 = vsel %vm3934, %v4022, %v4030
  %v4032 = vrot.slane %v4029, 7
  %v4033 = vsel %vm3937, %v4032, %v4031
  %v4034 = vsel %vm3939, %v4032, %v4033
  %v4035 = vsel %vm3941, %v4032, %v4034
  %v4036 = vsel %vm3943, %v4032, %v4035
  %4037 = vrot.lane.b32.xlu0 %v4036, 64
  %v4038 = vpop.permute.xlu0 %4037
  %vm4040 = vcmask 648704
  %4041 = vst.msk [vmem:[#allocation4] sm:$0x3] %vm4040, %v4038
  %v4042 = vcombine.high %v4022, %v4022
  %v4043 = vcombine.high %v4029, %v4029
  %v4044 = vsel %vm3932, %v4042, %v4042
  %v4045 = vsel %vm3934, %v4042, %v4044
  %v4046 = vrot.slane %v4043, 7
  %v4047 = vsel %vm3937, %v4046, %v4045
  %v4048 = vsel %vm3939, %v4046, %v4047
  %v4049 = vsel %vm3941, %v4046, %v4048
  %v4050 = vsel %vm3943, %v4046, %v4049
  %4051 = vrot.lane.b32.xlu0 %v4050, 80
  %v4052 = vpop.permute.xlu0 %4051
  %vm4054 = vcmask 779904
  %4055 = vst.msk [vmem:[#allocation4] sm:$0x3] %vm4054, %v4052
  %v4056 = vcombine.high %v4012, %v4012
  %v4058 = vunpack.c.l.s4 1983009808
  %v4059 = vunpack.c.0.s8 %v4058
  %v4060 = vlaneseq
  %v4061 = vshrl.u32 %v4060, 7
  %v4062 = vsub.s32 %v4059, %v4061
  %v4063 = vrot.slane %v4056, %v4062
  %v4064 = vcombine.high %v4013, %v4013
  %v4066 = vunpack.c.l.s4 1983009808
  %v4067 = vunpack.c.0.s8 %v4066
  %v4068 = vlaneseq
  %v4069 = vshrl.u32 %v4068, 7
  %v4070 = vsub.s32 %v4067, %v4069
  %v4071 = vrot.slane %v4064, %v4070
  %v4072 = vsel %vm3932, %v4063, %v4063
  %v4073 = vsel %vm3934, %v4063, %v4072
  %v4074 = vrot.slane %v4071, 7
  %v4075 = vsel %vm3937, %v4074, %v4073
  %v4076 = vsel %vm3939, %v4074, %v4075
  %v4077 = vsel %vm3941, %v4074, %v4076
  %v4078 = vsel %vm3943, %v4074, %v4077
  %4079 = vrot.lane.b32.xlu0 %v4078, 96
  %v4080 = vpop.permute.xlu0 %4079
  %vm4082 = vcmask 911104
  %4083 = vst.msk [vmem:[#allocation4] sm:$0x3] %vm4082, %v4080
  %v4084 = vcombine.high %v4063, %v4063
  %v4085 = vcombine.high %v4071, %v4071
  %v4086 = vsel %vm3932, %v4084, %v4084
  %v4087 = vsel %vm3934, %v4084, %v4086
  %v4088 = vrot.slane %v4085, 7
  %v4089 = vsel %vm3937, %v4088, %v4087
  %v4090 = vsel %vm3939, %v4088, %v4089
  %v4091 = vsel %vm3941, %v4088, %v4090
  %v4092 = vsel %vm3943, %v4088, %v4091
  %4093 = vrot.lane.b32.xlu0 %v4092, 112
  %v4094 = vpop.permute.xlu0 %4093
  %vm4096 = vcmask 1042304
  %4097 = vst.msk [vmem:[#allocation4] sm:$0x3] %vm4096, %v4094
  %v4098 = vmax.f32 %v3894, %v3895
  %v4099 = vmax.f32 %v3902, %v3903
  %v4102 = vrot.slane %v4098, 1
  %v4103 = vrot.slane %v4099, 1
  %v4106 = vmax.f32 %v4098, %v4102
  %v4107 = vmax.f32 %v4099, %v4103
  %v4111 = vunpack.c.l.s4 1983009808
  %v4112 = vunpack.c.0.s8 %v4111
  %v4113 = vlaneseq
  %v4114 = vshrl.u32 %v4113, 7
  %v4115 = vsub.s32 %v4112, %v4114
  %v4116 = vrot.slane %v4106, %v4115
  %v4118 = vunpack.c.l.s4 1983009808
  %v4119 = vunpack.c.0.s8 %v4118
  %v4120 = vlaneseq
  %v4121 = vshrl.u32 %v4120, 7
  %v4122 = vsub.s32 %v4119, %v4121
  %v4123 = vrot.slane %v4107, %v4122
  %v4124 = vsel %vm3932, %v4116, %v4116
  %v4125 = vsel %vm3934, %v4116, %v4124
  %v4126 = vrot.slane %v4123, 7
  %v4127 = vsel %vm3937, %v4126, %v4125
  %v4128 = vsel %vm3939, %v4126, %v4127
  %v4129 = vsel %vm3941, %v4126, %v4128
  %v4130 = vsel %vm3943, %v4126, %v4129
  %4132 = vst.msk [vmem:[#allocation4 + $0x2] sm:$0x3] %vm3946, %v4130
  %v4133 = vcombine.high %v4116, %v4116
  %v4134 = vcombine.high %v4123, %v4123
  %v4135 = vsel %vm3932, %v4133, %v4133
  %v4136 = vsel %vm3934, %v4133, %v4135
  %v4137 = vrot.slane %v4134, 7
  %v4138 = vsel %vm3937, %v4137, %v4136
  %v4139 = vsel %vm3939, %v4137, %v4138
  %v4140 = vsel %vm3941, %v4137, %v4139
  %v4141 = vsel %vm3943, %v4137, %v4140
  %4142 = vrot.lane.b32.xlu0 %v4141, 16
  %v4143 = vpop.permute.xlu0 %4142
  %4145 = vst.msk [vmem:[#allocation4 + $0x2] sm:$0x3] %vm3960, %v4143
  %v4146 = vcombine.high %v4106, %v4106
  %v4148 = vunpack.c.l.s4 1983009808
  %v4149 = vunpack.c.0.s8 %v4148
  %v4150 = vlaneseq
  %v4151 = vshrl.u32 %v4150, 7
  %v4152 = vsub.s32 %v4149, %v4151
  %v4153 = vrot.slane %v4146, %v4152
  %v4154 = vcombine.high %v4107, %v4107
  %v4156 = vunpack.c.l.s4 1983009808
  %v4157 = vunpack.c.0.s8 %v4156
  %v4158 = vlaneseq
  %v4159 = vshrl.u32 %v4158, 7
  %v4160 = vsub.s32 %v4157, %v4159
  %v4161 = vrot.slane %v4154, %v4160
  %v4162 = vsel %vm3932, %v4153, %v4153
  %v4163 = vsel %vm3934, %v4153, %v4162
  %v4164 = vrot.slane %v4161, 7
  %v4165 = vsel %vm3937, %v4164, %v4163
  %v4166 = vsel %vm3939, %v4164, %v4165
  %v4167 = vsel %vm3941, %v4164, %v4166
  %v4168 = vsel %vm3943, %v4164, %v4167
  %4169 = vrot.lane.b32.xlu0 %v4168, 32
  %v4170 = vpop.permute.xlu0 %4169
  %4172 = vst.msk [vmem:[#allocation4 + $0x2] sm:$0x3] %vm3988, %v4170
  %v4173 = vcombine.high %v4153, %v4153
  %v4174 = vcombine.high %v4161, %v4161
  %v4175 = vsel %vm3932, %v4173, %v4173
  %v4176 = vsel %vm3934, %v4173, %v4175
  %v4177 = vrot.slane %v4174, 7
  %v4178 = vsel %vm3937, %v4177, %v4176
  %v4179 = vsel %vm3939, %v4177, %v4178
  %v4180 = vsel %vm3941, %v4177, %v4179
  %v4181 = vsel %vm3943, %v4177, %v4180
  %4182 = vrot.lane.b32.xlu0 %v4181, 48
  %v4183 = vpop.permute.xlu0 %4182
  %4185 = vst.msk [vmem:[#allocation4 + $0x2] sm:$0x3] %vm4002, %v4183
  %v4186 = vmax.f32 %v3896, %v3897
  %v4187 = vmax.f32 %v3904, %v3905
  %v4190 = vrot.slane %v4186, 1
  %v4191 = vrot.slane %v4187, 1
  %v4194 = vmax.f32 %v4186, %v4190
  %v4195 = vmax.f32 %v4187, %v4191
  %v4199 = vunpack.c.l.s4 1983009808
  %v4200 = vunpack.c.0.s8 %v4199
  %v4201 = vlaneseq
  %v4202 = vshrl.u32 %v4201, 7
  %v4203 = vsub.s32 %v4200, %v4202
  %v4204 = vrot.slane %v4194, %v4203
  %v4206 = vunpack.c.l.s4 1983009808
  %v4207 = vunpack.c.0.s8 %v4206
  %v4208 = vlaneseq
  %v4209 = vshrl.u32 %v4208, 7
  %v4210 = vsub.s32 %v4207, %v4209
  %v4211 = vrot.slane %v4195, %v4210
  %v4212 = vsel %vm3932, %v4204, %v4204
  %v4213 = vsel %vm3934, %v4204, %v4212
  %v4214 = vrot.slane %v4211, 7
  %v4215 = vsel %vm3937, %v4214, %v4213
  %v4216 = vsel %vm3939, %v4214, %v4215
  %v4217 = vsel %vm3941, %v4214, %v4216
  %v4218 = vsel %vm3943, %v4214, %v4217
  %4219 = vrot.lane.b32.xlu0 %v4218, 64
  %v4220 = vpop.permute.xlu0 %4219
  %4222 = vst.msk [vmem:[#allocation4 + $0x2] sm:$0x3] %vm4040, %v4220
  %v4223 = vcombine.high %v4204, %v4204
  %v4224 = vcombine.high %v4211, %v4211
  %v4225 = vsel %vm3932, %v4223, %v4223
  %v4226 = vsel %vm3934, %v4223, %v4225
  %v4227 = vrot.slane %v4224, 7
  %v4228 = vsel %vm3937, %v4227, %v4226
  %v4229 = vsel %vm3939, %v4227, %v4228
  %v4230 = vsel %vm3941, %v4227, %v4229
  %v4231 = vsel %vm3943, %v4227, %v4230
  %4232 = vrot.lane.b32.xlu0 %v4231, 80
  %v4233 = vpop.permute.xlu0 %4232
  %4235 = vst.msk [vmem:[#allocation4 + $0x2] sm:$0x3] %vm4054, %v4233
  %v4236 = vcombine.high %v4194, %v4194
  %v4238 = vunpack.c.l.s4 1983009808
  %v4239 = vunpack.c.0.s8 %v4238
  %v4240 = vlaneseq
  %v4241 = vshrl.u32 %v4240, 7
  %v4242 = vsub.s32 %v4239, %v4241
  %v4243 = vrot.slane %v4236, %v4242
  %v4244 = vcombine.high %v4195, %v4195
  %v4246 = vunpack.c.l.s4 1983009808
  %v4247 = vunpack.c.0.s8 %v4246
  %v4248 = vlaneseq
  %v4249 = vshrl.u32 %v4248, 7
  %v4250 = vsub.s32 %v4247, %v4249
  %v4251 = vrot.slane %v4244, %v4250
  %v4252 = vsel %vm3932, %v4243, %v4243
  %v4253 = vsel %vm3934, %v4243, %v4252
  %v4254 = vrot.slane %v4251, 7
  %v4255 = vsel %vm3937, %v4254, %v4253
  %v4256 = vsel %vm3939, %v4254, %v4255
  %v4257 = vsel %vm3941, %v4254, %v4256
  %v4258 = vsel %vm3943, %v4254, %v4257
  %4259 = vrot.lane.b32.xlu0 %v4258, 96
  %v4260 = vpop.permute.xlu0 %4259
  %4262 = vst.msk [vmem:[#allocation4 + $0x2] sm:$0x3] %vm4082, %v4260
  %v4263 = vcombine.high %v4243, %v4243
  %v4264 = vcombine.high %v4251, %v4251
  %v4265 = vsel %vm3932, %v4263, %v4263
  %v4266 = vsel %vm3934, %v4263, %v4265
  %v4267 = vrot.slane %v4264, 7
  %v4268 = vsel %vm3937, %v4267, %v4266
  %v4269 = vsel %vm3939, %v4267, %v4268
  %v4270 = vsel %vm3941, %v4267, %v4269
  %v4271 = vsel %vm3943, %v4267, %v4270
  %4272 = vrot.lane.b32.xlu0 %v4271, 112
  %v4273 = vpop.permute.xlu0 %4272
  %4275 = vst.msk [vmem:[#allocation4 + $0x2] sm:$0x3] %vm4096, %v4273
  %v4276 = vld [vmem:[#allocation4] sm:$0xf]
  %v4277 = vld [vmem:[%s5] sm:$0xff]
  %v4278 = vld [vmem:[%s5 + $0x8] sm:$0xff]
  %v4279 = vld [vmem:[%s5 + $0x10] sm:$0xff]
  %v4280 = vld [vmem:[%s5 + $0x18] sm:$0xff]
  %v4281 = vld [vmem:[%s5 + $0x20] sm:$0xff]
  %v4282 = vld [vmem:[%s5 + $0x28] sm:$0xff]
  %v4283 = vld [vmem:[%s5 + $0x30] sm:$0xff]
  %v4284 = vld [vmem:[%s5 + $0x38] sm:$0xff]
  %v4285 = vld [vmem:[%s5 + $0x40] sm:$0xff]
  %v4286 = vld [vmem:[%s5 + $0x48] sm:$0xff]
  %v4287 = vld [vmem:[%s5 + $0x50] sm:$0xff]
  %v4288 = vld [vmem:[%s5 + $0x58] sm:$0xff]
  %v4289 = vld [vmem:[%s5 + $0x60] sm:$0xff]
  %v4290 = vld [vmem:[%s5 + $0x68] sm:$0xff]
  %v4291 = vld [vmem:[%s5 + $0x70] sm:$0xff]
  %v4292 = vld [vmem:[%s5 + $0x78] sm:$0xff]
  %v4293 = vld [vmem:[%s5 + $0x80] sm:$0xff]
  %v4294 = vld [vmem:[%s5 + $0x88] sm:$0xff]
  %v4295 = vld [vmem:[%s5 + $0x90] sm:$0xff]
  %v4296 = vld [vmem:[%s5 + $0x98] sm:$0xff]
  %v4297 = vld [vmem:[%s5 + $0xa0] sm:$0xff]
  %v4298 = vld [vmem:[%s5 + $0xa8] sm:$0xff]
  %v4299 = vld [vmem:[%s5 + $0xb0] sm:$0xff]
  %v4300 = vld [vmem:[%s5 + $0xb8] sm:$0xff]
  %v4301 = vld [vmem:[%s5 + $0xc0] sm:$0xff]
  %v4302 = vld [vmem:[%s5 + $0xc8] sm:$0xff]
  %v4303 = vld [vmem:[%s5 + $0xd0] sm:$0xff]
  %v4304 = vld [vmem:[%s5 + $0xd8] sm:$0xff]
  %v4305 = vld [vmem:[%s5 + $0xe0] sm:$0xff]
  %v4306 = vld [vmem:[%s5 + $0xe8] sm:$0xff]
  %v4307 = vld [vmem:[%s5 + $0xf0] sm:$0xff]
  %v4308 = vld [vmem:[%s5 + $0xf8] sm:$0xff]
  %v4309 = vld [vmem:[%s6] sm:$0x1]
  %v4311 = vlaneseq
  %v4312 = vshrl.u32 %v4311, 7
  %v4313 = vsub.s32 0, %v4312
  %v4314 = vrot.slane %v4309, %v4313
  %v4318 = vunpack.c.l.s4 1983009808
  %v4319 = vunpack.c.0.s8 %v4318
  %v4320 = vlaneseq
  %v4321 = vshrl.u32 %v4320, 7
  %v4322 = vsub.s32 %v4319, %v4321
  %v4323 = vrot.slane %v4276, %v4322
  %v4324 = vcombine.high %v4323, %v4323
  %4327 = vmatprep.subr.mxu0 0.0
  %4328 = vmatpush1.msra.mxu0 %v4277
  %4329 = vmatprep.subr.mxu0 0.0
  %4330 = vmatpush1.msra.mxu0 %v4278
  %4331 = vmatprep.subr.mxu0 0.0
  %4332 = vmatpush1.msra.mxu0 %v4279
  %4333 = vmatprep.subr.mxu0 0.0
  %4334 = vmatpush1.msra.mxu0 %v4280
  %4335 = vmatprep.subr.mxu0 0.0
  %4336 = vmatpush1.msra.mxu0 %v4281
  %4337 = vmatprep.subr.mxu0 0.0
  %4338 = vmatpush1.msra.mxu0 %v4282
  %4339 = vmatprep.subr.mxu0 0.0
  %4340 = vmatpush1.msra.mxu0 %v4283
  %4341 = vmatprep.subr.mxu0 0.0
  %4342 = vmatpush1.msra.mxu0 %v4284
  %4343 = vmatprep.subr.mxu0 0.0
  %4344 = vmatpush1.msra.mxu0 %v4285
  %4345 = vmatprep.subr.mxu0 0.0
  %4346 = vmatpush1.msra.mxu0 %v4286
  %4347 = vmatprep.subr.mxu0 0.0
  %4348 = vmatpush1.msra.mxu0 %v4287
  %4349 = vmatprep.subr.mxu0 0.0
  %4350 = vmatpush1.msra.mxu0 %v4288
  %4351 = vmatprep.subr.mxu0 0.0
  %4352 = vmatpush1.msra.mxu0 %v4289
  %4353 = vmatprep.subr.mxu0 0.0
  %4354 = vmatpush1.msra.mxu0 %v4290
  %4355 = vmatprep.subr.mxu0 0.0
  %4356 = vmatpush1.msra.mxu0 %v4291
  %4357 = vmatprep.subr.mxu0 0.0
  %4358 = vmatpush1.msra.mxu0 %v4292
  %4359 = vmatprep.subr.mxu0 0.0
  %4360 = vmatpush1.msra.mxu0 %v4293
  %4361 = vmatprep.subr.mxu0 0.0
  %4362 = vmatpush1.msra.mxu0 %v4294
  %4363 = vmatprep.subr.mxu0 0.0
  %4364 = vmatpush1.msra.mxu0 %v4295
  %4365 = vmatprep.subr.mxu0 0.0
  %4366 = vmatpush1.msra.mxu0 %v4296
  %4367 = vmatprep.subr.mxu0 0.0
  %4368 = vmatpush1.msra.mxu0 %v4297
  %4369 = vmatprep.subr.mxu0 0.0
  %4370 = vmatpush1.msra.mxu0 %v4298
  %4371 = vmatprep.subr.mxu0 0.0
  %4372 = vmatpush1.msra.mxu0 %v4299
  %4373 = vmatprep.subr.mxu0 0.0
  %4374 = vmatpush1.msra.mxu0 %v4300
  %4375 = vmatprep.subr.mxu0 0.0
  %4376 = vmatpush1.msra.mxu0 %v4301
  %4377 = vmatprep.subr.mxu0 0.0
  %4378 = vmatpush1.msra.mxu0 %v4302
  %4379 = vmatprep.subr.mxu0 0.0
  %4380 = vmatpush1.msra.mxu0 %v4303
  %4381 = vmatprep.subr.mxu0 0.0
  %4382 = vmatpush1.msra.mxu0 %v4304
  %4383 = vmatprep.subr.mxu0 0.0
  %4384 = vmatpush1.msra.mxu0 %v4305
  %4385 = vmatprep.subr.mxu0 0.0
  %4386 = vmatpush1.msra.mxu0 %v4306
  %4387 = vmatprep.subr.mxu0 0.0
  %4388 = vmatpush1.msra.mxu0 %v4307
  %4389 = vmatprep.subr.mxu0 0.0
  %4390 = vmatpush1.msra.mxu0 %v4308
  %4391 = vmatprep.mubr.f32.mxu0 %v4324
  %4392 = vmatmul.mubr.f32.gmra.mrb[0].mxu0 %v4323
  %v4393 = vpop.f32.mrb[0].mxu0
  %v4394 = vadd.f32 %v4314, %v4393
  %v4395 = vpop.f32.mrb[0].mxu0
  %4396 = vdwg.mxu0
  %v4397 = vmax.f32 %v4394, 0.0
  %v4398 = vld [vmem:[%s7] sm:$0xff]
  %v4399 = vld [vmem:[%s7 + $0x8] sm:$0xff]
  %v4400 = vld [vmem:[%s7 + $0x10] sm:$0xff]
  %v4401 = vld [vmem:[%s7 + $0x18] sm:$0xff]
  %v4402 = vld [vmem:[%s7 + $0x20] sm:$0xff]
  %v4403 = vld [vmem:[%s7 + $0x28] sm:$0xff]
  %v4404 = vld [vmem:[%s7 + $0x30] sm:$0xff]
  %v4405 = vld [vmem:[%s7 + $0x38] sm:$0xff]
  %v4406 = vld [vmem:[#allocation5] sm:$0x1]
  %v4408 = vlaneseq
  %v4409 = vshrl.u32 %v4408, 7
  %v4410 = vsub.s32 0, %v4409
  %v4411 = vrot.slane %v4406, %v4410
  %vm4413 = vcmask 523264
  %v4415 = vsel %vm4413, %v4397, 0
  %4417 = vmatprep.subr.mxu0 0.0
  %4418 = vmatpush1.msra.mxu0 %v4398
  %4419 = vmatprep.subr.mxu0 0.0
  %4420 = vmatpush1.msra.mxu0 %v4399
  %4421 = vmatprep.subr.mxu0 0.0
  %4422 = vmatpush1.msra.mxu0 %v4400
  %4423 = vmatprep.subr.mxu0 0.0
  %4424 = vmatpush1.msra.mxu0 %v4401
  %4425 = vmatprep.subr.mxu0 0.0
  %4426 = vmatpush1.msra.mxu0 %v4402
  %4427 = vmatprep.subr.mxu0 0.0
  %4428 = vmatpush1.msra.mxu0 %v4403
  %4429 = vmatprep.subr.mxu0 0.0
  %4430 = vmatpush1.msra.mxu0 %v4404
  %4431 = vmatprep.subr.mxu0 0.0
  %4432 = vmatpush1.msra.mxu0 %v4405
  %4433 = vmatprep.subr.mxu0 0.0
  %4434 = vmatpush1.msra.mxu0 0.0
  %4435 = vmatprep.subr.mxu0 0.0
  %4436 = vmatpush1.msra.mxu0 0.0
  %4437 = vmatprep.subr.mxu0 0.0
  %4438 = vmatpush1.msra.mxu0 0.0
  %4439 = vmatprep.subr.mxu0 0.0
  %4440 = vmatpush1.msra.mxu0 0.0
  %4441 = vmatprep.subr.mxu0 0.0
  %4442 = vmatpush1.msra.mxu0 0.0
  %4443 = vmatprep.subr.mxu0 0.0
  %4444 = vmatpush1.msra.mxu0 0.0
  %4445 = vmatprep.subr.mxu0 0.0
  %4446 = vmatpush1.msra.mxu0 0.0
  %4447 = vmatprep.subr.mxu0 0.0
  %4448 = vmatpush1.msra.mxu0 0.0
  %4449 = vmatprep.subr.mxu0 0.0
  %4450 = vmatpush1.msra.mxu0 0.0
  %4451 = vmatprep.subr.mxu0 0.0
  %4452 = vmatpush1.msra.mxu0 0.0
  %4453 = vmatprep.subr.mxu0 0.0
  %4454 = vmatpush1.msra.mxu0 0.0
  %4455 = vmatprep.subr.mxu0 0.0
  %4456 = vmatpush1.msra.mxu0 0.0
  %4457 = vmatprep.subr.mxu0 0.0
  %4458 = vmatpush1.msra.mxu0 0.0
  %4459 = vmatprep.subr.mxu0 0.0
  %4460 = vmatpush1.msra.mxu0 0.0
  %4461 = vmatprep.subr.mxu0 0.0
  %4462 = vmatpush1.msra.mxu0 0.0
  %4463 = vmatprep.subr.mxu0 0.0
  %4464 = vmatpush1.msra.mxu0 0.0
  %4465 = vmatprep.subr.mxu0 0.0
  %4466 = vmatpush1.msra.mxu0 0.0
  %4467 = vmatprep.subr.mxu0 0.0
  %4468 = vmatpush1.msra.mxu0 0.0
  %4469 = vmatprep.subr.mxu0 0.0
  %4470 = vmatpush1.msra.mxu0 0.0
  %4471 = vmatprep.subr.mxu0 0.0
  %4472 = vmatpush1.msra.mxu0 0.0
  %4473 = vmatprep.subr.mxu0 0.0
  %4474 = vmatpush1.msra.mxu0 0.0
  %4475 = vmatprep.subr.mxu0 0.0
  %4476 = vmatpush1.msra.mxu0 0.0
  %4477 = vmatprep.subr.mxu0 0.0
  %4478 = vmatpush1.msra.mxu0 0.0
  %4479 = vmatprep.subr.mxu0 0.0
  %4480 = vmatpush1.msra.mxu0 0.0
  %4481 = vmatprep.mubr.f32.mxu0 0.0
  %4482 = vmatmul.mubr.f32.gmra.mrb[0].mxu0 %v4415
  %v4483 = vpop.f32.mrb[0].mxu0
  %v4484 = vadd.f32 %v4411, %v4483
  %v4485 = vpop.f32.mrb[0].mxu0
  %4486 = vdwg.mxu0
  %v4487 = vxor.u32 %v4484, 2147483648
  %v4488 = vmul.f32 %v4487, 1.442695
  %v4489 = vpow.pop %v4488
  %v4490 = vadd.f32 %v4489, 1.0
  %v4491 = vrcp.pop %v4490
  %v4492 = vmul.f32 1.0, %v4491
  %vm4493 = vcmask 1024
  %4494 = vst.msk [vmem:[%s9] sm:$0x3] %vm4493, %v4492
  // Predicated region
  $region38: #{chessnet_forward.1} parent=0 // pred_check
    _
  $region39: #{chessnet_forward.1} parent=0 // pred_check_branch
    %4496 = sbr.rel (0) target = $region41
  $region40: #{chessnet_forward.1} parent=0 // pred_region
    _
  $region41: #{chessnet_forward.1} parent=0 // pred_fallthru
    _
  // Predicated region
  $region42: #{chessnet_forward.1} parent=0 // pred_check
    _
  $region43: #{chessnet_forward.1} parent=0 // pred_check_branch
    %4498 = sbr.rel (0) target = $region45
  $region44: #{chessnet_forward.1} parent=0 // pred_region
    _
  $region45: #{chessnet_forward.1} parent=0 // pred_fallthru
    _

</llo_original>
